<compile_context>
chip_gen: v6e
topology: v6e:2x2x1
jax: 0.10.0
libtpu: 0.0.40
codegen_flags: <defaults>
</compile_context>

<pallas_src>
import jax
import jax.numpy as jnp
from jax import lax
from jax.experimental import pallas as pl
from jax.experimental.pallas import tpu as pltpu


def _double_conv_kernel(x_ref, w1_ref, b1_ref, w2_ref, b2_ref, o_ref,
                        xpad, hpad):
    """One batch element per grid step.

    x_ref : (1, H, W, Cin)    NHWC input tile (interior only; halo built here)
    w1_ref: (9, Cin, Cmid)    conv1 taps, tap index = kh*3 + kw
    b1_ref: (1, Cmid)
    w2_ref: (9, Cout, Cmid)   conv2 taps, output-channel major (for A @ B^T)
    b2_ref: (Cout, 1)
    o_ref : (1, Cout, H*W)    flattened-NCHW output tile (lane dense)
    xpad  : (H+2, W+2, Cin)   VMEM scratch, zero halo
    hpad  : (H+2, W+2, Cmid)  VMEM scratch, zero halo (fused intermediate)
    """
    H = x_ref.shape[1]
    W = x_ref.shape[2]
    Cin = x_ref.shape[3]
    Cmid = w1_ref.shape[2]
    Cout = w2_ref.shape[1]

    # Build the padding=1 halo in VMEM (cheap; avoids a full HBM pad pass).
    # Re-zeroed every grid step so megacore grid sharding stays correct.
    xpad[...] = jnp.zeros_like(xpad)
    hpad[...] = jnp.zeros_like(hpad)
    xpad[1:H + 1, 1:W + 1, :] = x_ref[0].astype(jnp.float32)

    # ---- conv1: 9 shifted (H*W, Cin) x (Cin, Cmid) matmuls, f32 accumulate.
    acc1 = jnp.zeros((H * W, Cmid), dtype=jnp.float32)
    for kh in range(3):
        for kw in range(3):
            win = xpad[kh:kh + H, kw:kw + W, :].reshape(H * W, Cin)
            acc1 += jnp.dot(win, w1_ref[kh * 3 + kw],
                            preferred_element_type=jnp.float32)
    acc1 += b1_ref[...]
    # NOTE: no ReLU between the convs -- matches the PyTorch module exactly.

    # Intermediate stays in VMEM (fusion): write interior of the haloed tile.
    hpad[1:H + 1, 1:W + 1, :] = acc1.reshape(H, W, Cmid)

    # ---- conv2: computed directly transposed -> (Cout, H*W) so the store is
    # lane-dense and already in (flattened) NCHW layout.
    acc2 = jnp.zeros((Cout, H * W), dtype=jnp.float32)
    for kh in range(3):
        for kw in range(3):
            win = hpad[kh:kh + H, kw:kw + W, :].reshape(H * W, Cmid)
            # (Cout, Cmid) . (H*W, Cmid)^T -> (Cout, H*W)
            acc2 += lax.dot_general(
                w2_ref[kh * 3 + kw], win,
                dimension_numbers=(((1,), (1,)), ((), ())),
                preferred_element_type=jnp.float32)
    acc2 += b2_ref[...]
    o_ref[0] = jnp.maximum(acc2, 0.0).astype(o_ref.dtype)


def double_conv(x_nchw, params):
    """Matches DoubleConv.forward: conv1 -> conv2 -> ReLU, NCHW in / NCHW out."""
    w1, b1, w2, b2 = params
    N, Cin, H, W = x_nchw.shape
    Cmid = w1.shape[0]
    Cout = w2.shape[0]
    assert w1.shape == (Cmid, Cin, 3, 3)
    assert w2.shape == (Cout, Cmid, 3, 3)

    # Input goes channels-last (channels on lanes inside the kernel). The
    # output needs no transpose at all: the kernel emits flattened NCHW.
    x_nhwc = jnp.transpose(x_nchw, (0, 2, 3, 1))

    # conv1 taps: (Cmid, Cin, 3, 3) -> (9, Cin, Cmid)   [tap = kh*3 + kw]
    w1t = jnp.transpose(w1, (2, 3, 1, 0)).reshape(9, Cin, Cmid)
    # conv2 taps kept output-channel major: (Cout, Cmid, 3, 3) -> (9, Cout, Cmid)
    w2t = jnp.transpose(w2, (2, 3, 0, 1)).reshape(9, Cout, Cmid)
    b1r = b1.reshape(1, Cmid)
    b2r = b2.reshape(Cout, 1)

    out_flat = pl.pallas_call(
        _double_conv_kernel,
        out_shape=jax.ShapeDtypeStruct((N, Cout, H * W), x_nchw.dtype),
        grid_spec=pltpu.PrefetchScalarGridSpec(
            num_scalar_prefetch=0,
            grid=(N,),
            in_specs=[
                pl.BlockSpec((1, H, W, Cin), lambda n: (n, 0, 0, 0)),
                pl.BlockSpec((9, Cin, Cmid), lambda n: (0, 0, 0)),
                pl.BlockSpec((1, Cmid), lambda n: (0, 0)),
                pl.BlockSpec((9, Cout, Cmid), lambda n: (0, 0, 0)),
                pl.BlockSpec((Cout, 1), lambda n: (0, 0)),
            ],
            out_specs=pl.BlockSpec((1, Cout, H * W), lambda n: (n, 0, 0)),
            scratch_shapes=[
                pltpu.VMEM((H + 2, W + 2, Cin), jnp.float32),
                pltpu.VMEM((H + 2, W + 2, Cmid), jnp.float32),
            ],
        ),
        # Batch axis is independent -> megacore (v7x) can shard it.
        # For real UNet sizes, add spatial row-tiling with a 1-row halo and
        # raise vmem_limit_bytes here; unnecessary at these toy shapes.
        compiler_params=pltpu.CompilerParams(
            dimension_semantics=("parallel",),
        ),
    )(x_nhwc, w1t, b1r, w2t, b2r)

    # (N, Cout, H*W) -> (N, Cout, H, W): free reshape, already NCHW.
    return out_flat.reshape(N, Cout, H, W)


def init_params(key, in_ch, out_ch, dtype=jnp.float32):
    """Deterministic init mimicking PyTorch Conv2d default (kaiming-uniform-ish)."""
    k1, k2, k3, k4 = jax.random.split(key, 4)
    bound1 = 1.0 / jnp.sqrt(in_ch * 9)
    bound2 = 1.0 / jnp.sqrt(out_ch * 9)
    w1 = jax.random.uniform(k1, (out_ch, in_ch, 3, 3), dtype, -bound1, bound1)
    b1 = jax.random.uniform(k2, (out_ch,), dtype, -bound1, bound1)
    w2 = jax.random.uniform(k3, (out_ch, out_ch, 3, 3), dtype, -bound2, bound2)
    b2 = jax.random.uniform(k4, (out_ch,), dtype, -bound2, bound2)
    return (w1, b1, w2, b2)


def _reference_double_conv(x_nchw, params):
    """Pure-JAX reference (lax conv) for correctness checking."""
    w1, b1, w2, b2 = params
    dn = lax.conv_dimension_numbers(x_nchw.shape, w1.shape,
                                    ("NCHW", "OIHW", "NCHW"))
    h = lax.conv_general_dilated(
        x_nchw, w1, (1, 1), ((1, 1), (1, 1)), dimension_numbers=dn
    ) + b1[None, :, None, None]
    y = lax.conv_general_dilated(
        h, w2, (1, 1), ((1, 1), (1, 1)), dimension_numbers=dn
    ) + b2[None, :, None, None]
    return jnp.maximum(y, 0.0)


if __name__ == "__main__":
    key = jax.random.PRNGKey(0)
    k_x, k_p = jax.random.split(key)

    batch, in_ch, out_ch, hw = 2, 4, 8, 16
    x = jax.random.normal(k_x, (batch, in_ch, hw, hw), dtype=jnp.float32)
    params = init_params(k_p, in_ch, out_ch)

    out = double_conv(x, params)
    out = jax.block_until_ready(out)

    ref = _reference_double_conv(x, params)
    assert out.shape == (batch, out_ch, hw, hw), out.shape
    assert jnp.allclose(out, ref, atol=1e-4, rtol=1e-4), (
        float(jnp.max(jnp.abs(out - ref)))
    )
    print("KERNEL_OK")
</pallas_src>

<mosaic_0001>
module attributes {stable_mosaic.version = 11 : i64} {
  func.func @_double_conv_kernel(%arg0: i32, %arg1: memref<1x16x16x4xf32, #tpu.memory_space<vmem>>, %arg2: memref<9x4x8xf32, #tpu.memory_space<vmem>>, %arg3: memref<1x8xf32, #tpu.memory_space<vmem>>, %arg4: memref<9x8x8xf32, #tpu.memory_space<vmem>>, %arg5: memref<8x1xf32, #tpu.memory_space<vmem>>, %arg6: memref<1x8x256xf32, #tpu.memory_space<vmem>>, %arg7: memref<18x18x4xf32, #tpu.memory_space<vmem>>, %arg8: memref<18x18x8xf32, #tpu.memory_space<vmem>>) attributes {dimension_semantics = [#tpu.dimension_semantics<parallel>], iteration_bounds = array<i64: 2>, scalar_prefetch = 0 : i64, scratch_operands = 2 : i64, tpu.core_type = #tpu.core_type<tc>, window_params = [{transform_indices = @transform_0, window_bounds = array<i64: 1, 16, 16, 4>}, {pipeline_mode = #tpu.pipeline_mode<synchronous>, transform_indices = @transform_1, window_bounds = array<i64: 9, 4, 8>}, {pipeline_mode = #tpu.pipeline_mode<synchronous>, transform_indices = @transform_2, window_bounds = array<i64: 1, 8>}, {pipeline_mode = #tpu.pipeline_mode<synchronous>, transform_indices = @transform_3, window_bounds = array<i64: 9, 8, 8>}, {pipeline_mode = #tpu.pipeline_mode<synchronous>, transform_indices = @transform_4, window_bounds = array<i64: 8, 1>}, {transform_indices = @transform_5, window_bounds = array<i64: 1, 8, 256>}]} {
    %cst = arith.constant 0.000000e+00 : f32
    %0 = vector.broadcast %cst : f32 to vector<18x18x4xf32>
    %c0 = arith.constant 0 : index
    %c0_0 = arith.constant 0 : index
    %c0_1 = arith.constant 0 : index
    %1 = vector.load %arg7[%c0, %c0_0, %c0_1] : memref<18x18x4xf32, #tpu.memory_space<vmem>>, vector<18x18x4xf32>
    tpu.vector_store %arg7[%c0, %c0_0, %c0_1], %0 {strides = array<i32>} : memref<18x18x4xf32, #tpu.memory_space<vmem>>, vector<18x18x4xf32>,
    %cst_2 = arith.constant 0.000000e+00 : f32
    %2 = vector.broadcast %cst_2 : f32 to vector<18x18x8xf32>
    %c0_3 = arith.constant 0 : index
    %c0_4 = arith.constant 0 : index
    %c0_5 = arith.constant 0 : index
    %3 = vector.load %arg8[%c0_3, %c0_4, %c0_5] : memref<18x18x8xf32, #tpu.memory_space<vmem>>, vector<18x18x8xf32>
    tpu.vector_store %arg8[%c0_3, %c0_4, %c0_5], %2 {strides = array<i32>} : memref<18x18x8xf32, #tpu.memory_space<vmem>>, vector<18x18x8xf32>,
    %c0_6 = arith.constant 0 : index
    %c0_7 = arith.constant 0 : index
    %c0_8 = arith.constant 0 : index
    %c0_9 = arith.constant 0 : index
    %4 = vector.load %arg1[%c0_6, %c0_7, %c0_8, %c0_9] : memref<1x16x16x4xf32, #tpu.memory_space<vmem>>, vector<1x16x16x4xf32>
    %5 = vector.shape_cast %4 : vector<1x16x16x4xf32> to vector<16x16x4xf32>
    %c1 = arith.constant 1 : index
    %c1_10 = arith.constant 1 : index
    %c0_11 = arith.constant 0 : index
    %6 = vector.load %arg7[%c1, %c1_10, %c0_11] : memref<18x18x4xf32, #tpu.memory_space<vmem>>, vector<16x16x4xf32>
    tpu.vector_store %arg7[%c1, %c1_10, %c0_11], %5 {strides = array<i32>} : memref<18x18x4xf32, #tpu.memory_space<vmem>>, vector<16x16x4xf32>,
    %cst_12 = arith.constant 0.000000e+00 : f32
    %7 = vector.broadcast %cst_12 : f32 to vector<256x8xf32>
    %c0_13 = arith.constant 0 : index
    %c0_14 = arith.constant 0 : index
    %c0_15 = arith.constant 0 : index
    %8 = vector.load %arg7[%c0_13, %c0_14, %c0_15] : memref<18x18x4xf32, #tpu.memory_space<vmem>>, vector<16x16x4xf32>
    %9 = vector.shape_cast %8 : vector<16x16x4xf32> to vector<256x4xf32>
    %c0_16 = arith.constant 0 : index
    %c0_17 = arith.constant 0 : index
    %c0_18 = arith.constant 0 : index
    %10 = vector.load %arg2[%c0_16, %c0_17, %c0_18] : memref<9x4x8xf32, #tpu.memory_space<vmem>>, vector<1x4x8xf32>
    %11 = vector.shape_cast %10 : vector<1x4x8xf32> to vector<4x8xf32>
    %cst_19 = arith.constant dense<0.000000e+00> : vector<256x8xf32>
    %12 = tpu.matmul %9, %11, %cst_19 {dimension_numbers = #tpu.dot_dimension_numbers<[1], [0], [0], [1], [0, 0, 1, 1], [], []>} : vector<256x4xf32>, vector<4x8xf32>, vector<256x8xf32> -> vector<256x8xf32>
    %13 = arith.addf %7, %12 : vector<256x8xf32>
    %c0_20 = arith.constant 0 : index
    %c1_21 = arith.constant 1 : index
    %c0_22 = arith.constant 0 : index
    %14 = vector.load %arg7[%c0_20, %c1_21, %c0_22] : memref<18x18x4xf32, #tpu.memory_space<vmem>>, vector<16x16x4xf32>
    %15 = vector.shape_cast %14 : vector<16x16x4xf32> to vector<256x4xf32>
    %c1_23 = arith.constant 1 : index
    %c0_24 = arith.constant 0 : index
    %c0_25 = arith.constant 0 : index
    %16 = vector.load %arg2[%c1_23, %c0_24, %c0_25] : memref<9x4x8xf32, #tpu.memory_space<vmem>>, vector<1x4x8xf32>
    %17 = vector.shape_cast %16 : vector<1x4x8xf32> to vector<4x8xf32>
    %cst_26 = arith.constant dense<0.000000e+00> : vector<256x8xf32>
    %18 = tpu.matmul %15, %17, %cst_26 {dimension_numbers = #tpu.dot_dimension_numbers<[1], [0], [0], [1], [0, 0, 1, 1], [], []>} : vector<256x4xf32>, vector<4x8xf32>, vector<256x8xf32> -> vector<256x8xf32>
    %19 = arith.addf %13, %18 : vector<256x8xf32>
    %c0_27 = arith.constant 0 : index
    %c2 = arith.constant 2 : index
    %c0_28 = arith.constant 0 : index
    %20 = vector.load %arg7[%c0_27, %c2, %c0_28] : memref<18x18x4xf32, #tpu.memory_space<vmem>>, vector<16x16x4xf32>
    %21 = vector.shape_cast %20 : vector<16x16x4xf32> to vector<256x4xf32>
    %c2_29 = arith.constant 2 : index
    %c0_30 = arith.constant 0 : index
    %c0_31 = arith.constant 0 : index
    %22 = vector.load %arg2[%c2_29, %c0_30, %c0_31] : memref<9x4x8xf32, #tpu.memory_space<vmem>>, vector<1x4x8xf32>
    %23 = vector.shape_cast %22 : vector<1x4x8xf32> to vector<4x8xf32>
    %cst_32 = arith.constant dense<0.000000e+00> : vector<256x8xf32>
    %24 = tpu.matmul %21, %23, %cst_32 {dimension_numbers = #tpu.dot_dimension_numbers<[1], [0], [0], [1], [0, 0, 1, 1], [], []>} : vector<256x4xf32>, vector<4x8xf32>, vector<256x8xf32> -> vector<256x8xf32>
    %25 = arith.addf %19, %24 : vector<256x8xf32>
    %c1_33 = arith.constant 1 : index
    %c0_34 = arith.constant 0 : index
    %c0_35 = arith.constant 0 : index
    %26 = vector.load %arg7[%c1_33, %c0_34, %c0_35] : memref<18x18x4xf32, #tpu.memory_space<vmem>>, vector<16x16x4xf32>
    %27 = vector.shape_cast %26 : vector<16x16x4xf32> to vector<256x4xf32>
    %c3 = arith.constant 3 : index
    %c0_36 = arith.constant 0 : index
    %c0_37 = arith.constant 0 : index
    %28 = vector.load %arg2[%c3, %c0_36, %c0_37] : memref<9x4x8xf32, #tpu.memory_space<vmem>>, vector<1x4x8xf32>
    %29 = vector.shape_cast %28 : vector<1x4x8xf32> to vector<4x8xf32>
    %cst_38 = arith.constant dense<0.000000e+00> : vector<256x8xf32>
    %30 = tpu.matmul %27, %29, %cst_38 {dimension_numbers = #tpu.dot_dimension_numbers<[1], [0], [0], [1], [0, 0, 1, 1], [], []>} : vector<256x4xf32>, vector<4x8xf32>, vector<256x8xf32> -> vector<256x8xf32>
    %31 = arith.addf %25, %30 : vector<256x8xf32>
    %c1_39 = arith.constant 1 : index
    %c1_40 = arith.constant 1 : index
    %c0_41 = arith.constant 0 : index
    %32 = vector.load %arg7[%c1_39, %c1_40, %c0_41] : memref<18x18x4xf32, #tpu.memory_space<vmem>>, vector<16x16x4xf32>
    %33 = vector.shape_cast %32 : vector<16x16x4xf32> to vector<256x4xf32>
    %c4 = arith.constant 4 : index
    %c0_42 = arith.constant 0 : index
    %c0_43 = arith.constant 0 : index
    %34 = vector.load %arg2[%c4, %c0_42, %c0_43] : memref<9x4x8xf32, #tpu.memory_space<vmem>>, vector<1x4x8xf32>
    %35 = vector.shape_cast %34 : vector<1x4x8xf32> to vector<4x8xf32>
    %cst_44 = arith.constant dense<0.000000e+00> : vector<256x8xf32>
    %36 = tpu.matmul %33, %35, %cst_44 {dimension_numbers = #tpu.dot_dimension_numbers<[1], [0], [0], [1], [0, 0, 1, 1], [], []>} : vector<256x4xf32>, vector<4x8xf32>, vector<256x8xf32> -> vector<256x8xf32>
    %37 = arith.addf %31, %36 : vector<256x8xf32>
    %c1_45 = arith.constant 1 : index
    %c2_46 = arith.constant 2 : index
    %c0_47 = arith.constant 0 : index
    %38 = vector.load %arg7[%c1_45, %c2_46, %c0_47] : memref<18x18x4xf32, #tpu.memory_space<vmem>>, vector<16x16x4xf32>
    %39 = vector.shape_cast %38 : vector<16x16x4xf32> to vector<256x4xf32>
    %c5 = arith.constant 5 : index
    %c0_48 = arith.constant 0 : index
    %c0_49 = arith.constant 0 : index
    %40 = vector.load %arg2[%c5, %c0_48, %c0_49] : memref<9x4x8xf32, #tpu.memory_space<vmem>>, vector<1x4x8xf32>
    %41 = vector.shape_cast %40 : vector<1x4x8xf32> to vector<4x8xf32>
    %cst_50 = arith.constant dense<0.000000e+00> : vector<256x8xf32>
    %42 = tpu.matmul %39, %41, %cst_50 {dimension_numbers = #tpu.dot_dimension_numbers<[1], [0], [0], [1], [0, 0, 1, 1], [], []>} : vector<256x4xf32>, vector<4x8xf32>, vector<256x8xf32> -> vector<256x8xf32>
    %43 = arith.addf %37, %42 : vector<256x8xf32>
    %c2_51 = arith.constant 2 : index
    %c0_52 = arith.constant 0 : index
    %c0_53 = arith.constant 0 : index
    %44 = vector.load %arg7[%c2_51, %c0_52, %c0_53] : memref<18x18x4xf32, #tpu.memory_space<vmem>>, vector<16x16x4xf32>
    %45 = vector.shape_cast %44 : vector<16x16x4xf32> to vector<256x4xf32>
    %c6 = arith.constant 6 : index
    %c0_54 = arith.constant 0 : index
    %c0_55 = arith.constant 0 : index
    %46 = vector.load %arg2[%c6, %c0_54, %c0_55] : memref<9x4x8xf32, #tpu.memory_space<vmem>>, vector<1x4x8xf32>
    %47 = vector.shape_cast %46 : vector<1x4x8xf32> to vector<4x8xf32>
    %cst_56 = arith.constant dense<0.000000e+00> : vector<256x8xf32>
    %48 = tpu.matmul %45, %47, %cst_56 {dimension_numbers = #tpu.dot_dimension_numbers<[1], [0], [0], [1], [0, 0, 1, 1], [], []>} : vector<256x4xf32>, vector<4x8xf32>, vector<256x8xf32> -> vector<256x8xf32>
    %49 = arith.addf %43, %48 : vector<256x8xf32>
    %c2_57 = arith.constant 2 : index
    %c1_58 = arith.constant 1 : index
    %c0_59 = arith.constant 0 : index
    %50 = vector.load %arg7[%c2_57, %c1_58, %c0_59] : memref<18x18x4xf32, #tpu.memory_space<vmem>>, vector<16x16x4xf32>
    %51 = vector.shape_cast %50 : vector<16x16x4xf32> to vector<256x4xf32>
    %c7 = arith.constant 7 : index
    %c0_60 = arith.constant 0 : index
    %c0_61 = arith.constant 0 : index
    %52 = vector.load %arg2[%c7, %c0_60, %c0_61] : memref<9x4x8xf32, #tpu.memory_space<vmem>>, vector<1x4x8xf32>
    %53 = vector.shape_cast %52 : vector<1x4x8xf32> to vector<4x8xf32>
    %cst_62 = arith.constant dense<0.000000e+00> : vector<256x8xf32>
    %54 = tpu.matmul %51, %53, %cst_62 {dimension_numbers = #tpu.dot_dimension_numbers<[1], [0], [0], [1], [0, 0, 1, 1], [], []>} : vector<256x4xf32>, vector<4x8xf32>, vector<256x8xf32> -> vector<256x8xf32>
    %55 = arith.addf %49, %54 : vector<256x8xf32>
    %c2_63 = arith.constant 2 : index
    %c2_64 = arith.constant 2 : index
    %c0_65 = arith.constant 0 : index
    %56 = vector.load %arg7[%c2_63, %c2_64, %c0_65] : memref<18x18x4xf32, #tpu.memory_space<vmem>>, vector<16x16x4xf32>
    %57 = vector.shape_cast %56 : vector<16x16x4xf32> to vector<256x4xf32>
    %c8 = arith.constant 8 : index
    %c0_66 = arith.constant 0 : index
    %c0_67 = arith.constant 0 : index
    %58 = vector.load %arg2[%c8, %c0_66, %c0_67] : memref<9x4x8xf32, #tpu.memory_space<vmem>>, vector<1x4x8xf32>
    %59 = vector.shape_cast %58 : vector<1x4x8xf32> to vector<4x8xf32>
    %cst_68 = arith.constant dense<0.000000e+00> : vector<256x8xf32>
    %60 = tpu.matmul %57, %59, %cst_68 {dimension_numbers = #tpu.dot_dimension_numbers<[1], [0], [0], [1], [0, 0, 1, 1], [], []>} : vector<256x4xf32>, vector<4x8xf32>, vector<256x8xf32> -> vector<256x8xf32>
    %61 = arith.addf %55, %60 : vector<256x8xf32>
    %c0_69 = arith.constant 0 : index
    %c0_70 = arith.constant 0 : index
    %62 = vector.load %arg3[%c0_69, %c0_70] : memref<1x8xf32, #tpu.memory_space<vmem>>, vector<1x8xf32>
    %63 = vector.broadcast %62 : vector<1x8xf32> to vector<256x8xf32>
    %64 = arith.addf %61, %63 : vector<256x8xf32>
    %65 = vector.shape_cast %64 : vector<256x8xf32> to vector<16x16x8xf32>
    %c1_71 = arith.constant 1 : index
    %c1_72 = arith.constant 1 : index
    %c0_73 = arith.constant 0 : index
    %66 = vector.load %arg8[%c1_71, %c1_72, %c0_73] : memref<18x18x8xf32, #tpu.memory_space<vmem>>, vector<16x16x8xf32>
    tpu.vector_store %arg8[%c1_71, %c1_72, %c0_73], %65 {strides = array<i32>} : memref<18x18x8xf32, #tpu.memory_space<vmem>>, vector<16x16x8xf32>,
    %cst_74 = arith.constant 0.000000e+00 : f32
    %67 = vector.broadcast %cst_74 : f32 to vector<8x256xf32>
    %c0_75 = arith.constant 0 : index
    %c0_76 = arith.constant 0 : index
    %c0_77 = arith.constant 0 : index
    %68 = vector.load %arg8[%c0_75, %c0_76, %c0_77] : memref<18x18x8xf32, #tpu.memory_space<vmem>>, vector<16x16x8xf32>
    %69 = vector.shape_cast %68 : vector<16x16x8xf32> to vector<256x8xf32>
    %c0_78 = arith.constant 0 : index
    %c0_79 = arith.constant 0 : index
    %c0_80 = arith.constant 0 : index
    %70 = vector.load %arg4[%c0_78, %c0_79, %c0_80] : memref<9x8x8xf32, #tpu.memory_space<vmem>>, vector<1x8x8xf32>
    %71 = vector.shape_cast %70 : vector<1x8x8xf32> to vector<8x8xf32>
    %cst_81 = arith.constant dense<0.000000e+00> : vector<8x256xf32>
    %72 = tpu.matmul %71, %69, %cst_81 {dimension_numbers = #tpu.dot_dimension_numbers<[1], [1], [0], [0], [0, 0, 1, 0], [], []>} : vector<8x8xf32>, vector<256x8xf32>, vector<8x256xf32> -> vector<8x256xf32>
    %73 = arith.addf %67, %72 : vector<8x256xf32>
    %c0_82 = arith.constant 0 : index
    %c1_83 = arith.constant 1 : index
    %c0_84 = arith.constant 0 : index
    %74 = vector.load %arg8[%c0_82, %c1_83, %c0_84] : memref<18x18x8xf32, #tpu.memory_space<vmem>>, vector<16x16x8xf32>
    %75 = vector.shape_cast %74 : vector<16x16x8xf32> to vector<256x8xf32>
    %c1_85 = arith.constant 1 : index
    %c0_86 = arith.constant 0 : index
    %c0_87 = arith.constant 0 : index
    %76 = vector.load %arg4[%c1_85, %c0_86, %c0_87] : memref<9x8x8xf32, #tpu.memory_space<vmem>>, vector<1x8x8xf32>
    %77 = vector.shape_cast %76 : vector<1x8x8xf32> to vector<8x8xf32>
    %cst_88 = arith.constant dense<0.000000e+00> : vector<8x256xf32>
    %78 = tpu.matmul %77, %75, %cst_88 {dimension_numbers = #tpu.dot_dimension_numbers<[1], [1], [0], [0], [0, 0, 1, 0], [], []>} : vector<8x8xf32>, vector<256x8xf32>, vector<8x256xf32> -> vector<8x256xf32>
    %79 = arith.addf %73, %78 : vector<8x256xf32>
    %c0_89 = arith.constant 0 : index
    %c2_90 = arith.constant 2 : index
    %c0_91 = arith.constant 0 : index
    %80 = vector.load %arg8[%c0_89, %c2_90, %c0_91] : memref<18x18x8xf32, #tpu.memory_space<vmem>>, vector<16x16x8xf32>
    %81 = vector.shape_cast %80 : vector<16x16x8xf32> to vector<256x8xf32>
    %c2_92 = arith.constant 2 : index
    %c0_93 = arith.constant 0 : index
    %c0_94 = arith.constant 0 : index
    %82 = vector.load %arg4[%c2_92, %c0_93, %c0_94] : memref<9x8x8xf32, #tpu.memory_space<vmem>>, vector<1x8x8xf32>
    %83 = vector.shape_cast %82 : vector<1x8x8xf32> to vector<8x8xf32>
    %cst_95 = arith.constant dense<0.000000e+00> : vector<8x256xf32>
    %84 = tpu.matmul %83, %81, %cst_95 {dimension_numbers = #tpu.dot_dimension_numbers<[1], [1], [0], [0], [0, 0, 1, 0], [], []>} : vector<8x8xf32>, vector<256x8xf32>, vector<8x256xf32> -> vector<8x256xf32>
    %85 = arith.addf %79, %84 : vector<8x256xf32>
    %c1_96 = arith.constant 1 : index
    %c0_97 = arith.constant 0 : index
    %c0_98 = arith.constant 0 : index
    %86 = vector.load %arg8[%c1_96, %c0_97, %c0_98] : memref<18x18x8xf32, #tpu.memory_space<vmem>>, vector<16x16x8xf32>
    %87 = vector.shape_cast %86 : vector<16x16x8xf32> to vector<256x8xf32>
    %c3_99 = arith.constant 3 : index
    %c0_100 = arith.constant 0 : index
    %c0_101 = arith.constant 0 : index
    %88 = vector.load %arg4[%c3_99, %c0_100, %c0_101] : memref<9x8x8xf32, #tpu.memory_space<vmem>>, vector<1x8x8xf32>
    %89 = vector.shape_cast %88 : vector<1x8x8xf32> to vector<8x8xf32>
    %cst_102 = arith.constant dense<0.000000e+00> : vector<8x256xf32>
    %90 = tpu.matmul %89, %87, %cst_102 {dimension_numbers = #tpu.dot_dimension_numbers<[1], [1], [0], [0], [0, 0, 1, 0], [], []>} : vector<8x8xf32>, vector<256x8xf32>, vector<8x256xf32> -> vector<8x256xf32>
    %91 = arith.addf %85, %90 : vector<8x256xf32>
    %c1_103 = arith.constant 1 : index
    %c1_104 = arith.constant 1 : index
    %c0_105 = arith.constant 0 : index
    %92 = vector.load %arg8[%c1_103, %c1_104, %c0_105] : memref<18x18x8xf32, #tpu.memory_space<vmem>>, vector<16x16x8xf32>
    %93 = vector.shape_cast %92 : vector<16x16x8xf32> to vector<256x8xf32>
    %c4_106 = arith.constant 4 : index
    %c0_107 = arith.constant 0 : index
    %c0_108 = arith.constant 0 : index
    %94 = vector.load %arg4[%c4_106, %c0_107, %c0_108] : memref<9x8x8xf32, #tpu.memory_space<vmem>>, vector<1x8x8xf32>
    %95 = vector.shape_cast %94 : vector<1x8x8xf32> to vector<8x8xf32>
    %cst_109 = arith.constant dense<0.000000e+00> : vector<8x256xf32>
    %96 = tpu.matmul %95, %93, %cst_109 {dimension_numbers = #tpu.dot_dimension_numbers<[1], [1], [0], [0], [0, 0, 1, 0], [], []>} : vector<8x8xf32>, vector<256x8xf32>, vector<8x256xf32> -> vector<8x256xf32>
    %97 = arith.addf %91, %96 : vector<8x256xf32>
    %c1_110 = arith.constant 1 : index
    %c2_111 = arith.constant 2 : index
    %c0_112 = arith.constant 0 : index
    %98 = vector.load %arg8[%c1_110, %c2_111, %c0_112] : memref<18x18x8xf32, #tpu.memory_space<vmem>>, vector<16x16x8xf32>
    %99 = vector.shape_cast %98 : vector<16x16x8xf32> to vector<256x8xf32>
    %c5_113 = arith.constant 5 : index
    %c0_114 = arith.constant 0 : index
    %c0_115 = arith.constant 0 : index
    %100 = vector.load %arg4[%c5_113, %c0_114, %c0_115] : memref<9x8x8xf32, #tpu.memory_space<vmem>>, vector<1x8x8xf32>
    %101 = vector.shape_cast %100 : vector<1x8x8xf32> to vector<8x8xf32>
    %cst_116 = arith.constant dense<0.000000e+00> : vector<8x256xf32>
    %102 = tpu.matmul %101, %99, %cst_116 {dimension_numbers = #tpu.dot_dimension_numbers<[1], [1], [0], [0], [0, 0, 1, 0], [], []>} : vector<8x8xf32>, vector<256x8xf32>, vector<8x256xf32> -> vector<8x256xf32>
    %103 = arith.addf %97, %102 : vector<8x256xf32>
    %c2_117 = arith.constant 2 : index
    %c0_118 = arith.constant 0 : index
    %c0_119 = arith.constant 0 : index
    %104 = vector.load %arg8[%c2_117, %c0_118, %c0_119] : memref<18x18x8xf32, #tpu.memory_space<vmem>>, vector<16x16x8xf32>
    %105 = vector.shape_cast %104 : vector<16x16x8xf32> to vector<256x8xf32>
    %c6_120 = arith.constant 6 : index
    %c0_121 = arith.constant 0 : index
    %c0_122 = arith.constant 0 : index
    %106 = vector.load %arg4[%c6_120, %c0_121, %c0_122] : memref<9x8x8xf32, #tpu.memory_space<vmem>>, vector<1x8x8xf32>
    %107 = vector.shape_cast %106 : vector<1x8x8xf32> to vector<8x8xf32>
    %cst_123 = arith.constant dense<0.000000e+00> : vector<8x256xf32>
    %108 = tpu.matmul %107, %105, %cst_123 {dimension_numbers = #tpu.dot_dimension_numbers<[1], [1], [0], [0], [0, 0, 1, 0], [], []>} : vector<8x8xf32>, vector<256x8xf32>, vector<8x256xf32> -> vector<8x256xf32>
    %109 = arith.addf %103, %108 : vector<8x256xf32>
    %c2_124 = arith.constant 2 : index
    %c1_125 = arith.constant 1 : index
    %c0_126 = arith.constant 0 : index
    %110 = vector.load %arg8[%c2_124, %c1_125, %c0_126] : memref<18x18x8xf32, #tpu.memory_space<vmem>>, vector<16x16x8xf32>
    %111 = vector.shape_cast %110 : vector<16x16x8xf32> to vector<256x8xf32>
    %c7_127 = arith.constant 7 : index
    %c0_128 = arith.constant 0 : index
    %c0_129 = arith.constant 0 : index
    %112 = vector.load %arg4[%c7_127, %c0_128, %c0_129] : memref<9x8x8xf32, #tpu.memory_space<vmem>>, vector<1x8x8xf32>
    %113 = vector.shape_cast %112 : vector<1x8x8xf32> to vector<8x8xf32>
    %cst_130 = arith.constant dense<0.000000e+00> : vector<8x256xf32>
    %114 = tpu.matmul %113, %111, %cst_130 {dimension_numbers = #tpu.dot_dimension_numbers<[1], [1], [0], [0], [0, 0, 1, 0], [], []>} : vector<8x8xf32>, vector<256x8xf32>, vector<8x256xf32> -> vector<8x256xf32>
    %115 = arith.addf %109, %114 : vector<8x256xf32>
    %c2_131 = arith.constant 2 : index
    %c2_132 = arith.constant 2 : index
    %c0_133 = arith.constant 0 : index
    %116 = vector.load %arg8[%c2_131, %c2_132, %c0_133] : memref<18x18x8xf32, #tpu.memory_space<vmem>>, vector<16x16x8xf32>
    %117 = vector.shape_cast %116 : vector<16x16x8xf32> to vector<256x8xf32>
    %c8_134 = arith.constant 8 : index
    %c0_135 = arith.constant 0 : index
    %c0_136 = arith.constant 0 : index
    %118 = vector.load %arg4[%c8_134, %c0_135, %c0_136] : memref<9x8x8xf32, #tpu.memory_space<vmem>>, vector<1x8x8xf32>
    %119 = vector.shape_cast %118 : vector<1x8x8xf32> to vector<8x8xf32>
    %cst_137 = arith.constant dense<0.000000e+00> : vector<8x256xf32>
    %120 = tpu.matmul %119, %117, %cst_137 {dimension_numbers = #tpu.dot_dimension_numbers<[1], [1], [0], [0], [0, 0, 1, 0], [], []>} : vector<8x8xf32>, vector<256x8xf32>, vector<8x256xf32> -> vector<8x256xf32>
    %121 = arith.addf %115, %120 : vector<8x256xf32>
    %c0_138 = arith.constant 0 : index
    %c0_139 = arith.constant 0 : index
    %122 = vector.load %arg5[%c0_138, %c0_139] : memref<8x1xf32, #tpu.memory_space<vmem>>, vector<8x1xf32>
    %123 = vector.broadcast %122 : vector<8x1xf32> to vector<8x256xf32>
    %124 = arith.addf %121, %123 : vector<8x256xf32>
    %cst_140 = arith.constant 0.000000e+00 : f32
    %125 = vector.broadcast %cst_140 : f32 to vector<8x256xf32>
    %126 = arith.maximumf %124, %125 : vector<8x256xf32>
    %c0_141 = arith.constant 0 : index
    %c0_142 = arith.constant 0 : index
    %c0_143 = arith.constant 0 : index
    %127 = vector.load %arg6[%c0_141, %c0_142, %c0_143] : memref<1x8x256xf32, #tpu.memory_space<vmem>>, vector<1x8x256xf32>
    %128 = vector.shape_cast %127 : vector<1x8x256xf32> to vector<8x256xf32>
    %129 = vector.shape_cast %126 : vector<8x256xf32> to vector<1x8x256xf32>
    tpu.vector_store %arg6[%c0_141, %c0_142, %c0_143], %129 {strides = array<i32>} : memref<1x8x256xf32, #tpu.memory_space<vmem>>, vector<1x8x256xf32>,
    return
  }
  func.func @transform_0(%arg0: i32) -> (i32, i32, i32, i32) {
    %c0_i32 = arith.constant 0 : i32
    %c0_i32_0 = arith.constant 0 : i32
    %c0_i32_1 = arith.constant 0 : i32
    %c0_i32_2 = arith.constant 0 : i32
    return %arg0, %c0_i32, %c0_i32_0, %c0_i32_1 : i32, i32, i32, i32
  }
  func.func @transform_1(%arg0: i32) -> (i32, i32, i32) {
    %c0_i32 = arith.constant 0 : i32
    %c0_i32_0 = arith.constant 0 : i32
    %c0_i32_1 = arith.constant 0 : i32
    %c0_i32_2 = arith.constant 0 : i32
    return %c0_i32, %c0_i32_0, %c0_i32_1 : i32, i32, i32
  }
  func.func @transform_2(%arg0: i32) -> (i32, i32) {
    %c0_i32 = arith.constant 0 : i32
    %c0_i32_0 = arith.constant 0 : i32
    %c0_i32_1 = arith.constant 0 : i32
    return %c0_i32, %c0_i32_0 : i32, i32
  }
  func.func @transform_3(%arg0: i32) -> (i32, i32, i32) {
    %c0_i32 = arith.constant 0 : i32
    %c0_i32_0 = arith.constant 0 : i32
    %c0_i32_1 = arith.constant 0 : i32
    %c0_i32_2 = arith.constant 0 : i32
    return %c0_i32, %c0_i32_0, %c0_i32_1 : i32, i32, i32
  }
  func.func @transform_4(%arg0: i32) -> (i32, i32) {
    %c0_i32 = arith.constant 0 : i32
    %c0_i32_0 = arith.constant 0 : i32
    %c0_i32_1 = arith.constant 0 : i32
    return %c0_i32, %c0_i32_0 : i32, i32
  }
  func.func @transform_5(%arg0: i32) -> (i32, i32, i32) {
    %c0_i32 = arith.constant 0 : i32
    %c0_i32_0 = arith.constant 0 : i32
    %c0_i32_1 = arith.constant 0 : i32
    return %arg0, %c0_i32, %c0_i32_0 : i32, i32, i32
  }
}

</mosaic_0001>

<llo_original>
// kernel: tpu_custom_call.1
$region0: #{tpu_custom_call.1}
  #allocation0 [shape = 'u32[]', space=smem, size = 0x4, offset = 0x4, fixed_abs, tag = 'smem constant byte address 0x4 - core index']
  #allocation1 [shape = 'u32[144,128]{1,0:T(1,128)}', space=vmem, size = 0x12000, scoped, tag = 'internal scratch']
  #allocation2 [shape = 'f32[18,18,4]{2,1,0:T(8,128)}', space=vmem, size = 0x36000, scoped, tag = 'scratch operand']
  #allocation3 [shape = 'f32[18,18,8]{2,1,0:T(8,128)}', space=vmem, size = 0x36000, scoped, tag = 'scratch operand']
  %s0 = inlined_call_operand.vmem [shape: f32[2,16,16,4], index: 0, kind: input, shape index: {}]
  %s1 = inlined_call_operand.vmem [shape: f32[9,4,8], index: 1, kind: input, shape index: {}]
  %s2 = inlined_call_operand.vmem [shape: f32[1,8], index: 2, kind: input, shape index: {}]
  %s3 = inlined_call_operand.vmem [shape: f32[9,8,8], index: 3, kind: input, shape index: {}]
  %s4 = inlined_call_operand.vmem [shape: f32[8,1], index: 4, kind: input, shape index: {}]
  %s5 = inlined_call_operand.hbm [shape: f32[2,8,256], index: 5, kind: output, shape index: {}]
  %s6 = sld [smem:[#allocation0]]
  $region53: #{tpu_custom_call.1} parent=0
    _
  %s8 = ssub.s32 1, %s6
  %s9 = scalar_select 0, %s8, %s6
  $region1: #{tpu_custom_call.1} parent=0
    #allocation4 [shape = 'u8[16384]{0}', space=vmem, size = 0x4000, scoped, tag = 'output window, operand 0']
    #allocation5 [shape = 's32[2]{0}', space=sflag, size = 0x8, scoped, tag = 'scoped memory for tpu_custom_call.1']
    %10 = vsyncpa [#allocation5], 0
    %s11 = scalar_lea.sflag [#allocation5], 1
    %12 = vsyncpa %s11, 0
    loop: start=0, step=1, limit=4
    $region2: #{tpu_custom_call.1} parent=1 // loop_pre_header
      _
    $region3: #{tpu_custom_call.1} parent=1 // loop_header
      %s14 = sphi 0, %s18
      %p15 = scmp.ge.s32.totalorder %s14, 4
      %s24 = sphi 0, %s26
      %s27 = sphi 0, %s24
      %s28 = sphi 0, %s27
      %s44 = sphi 0, %s28
      %s48 = sphi 0, %s48
      %s50 = sphi 0, %s48
      %s51 = sphi 0, %s50
      %s65 = sphi 0, %s51
      %s69 = sphi 0, %s69
      %s71 = sphi 0, %s69
      %s72 = sphi 0, %s71
      %s86 = sphi 0, %s72
      %s90 = sphi 0, %s90
      %s92 = sphi 0, %s90
      %s93 = sphi 0, %s92
      %s107 = sphi 0, %s93
      %s111 = sphi 0, %s111
      %s113 = sphi 0, %s111
      %s114 = sphi 0, %s113
      %s128 = sphi 0, %s114
      %s134 = sphi 0, %s136
      %s137 = sphi 0, %s134
      %s138 = sphi 0, %s137
      %s154 = sphi 0, %s138
    $region4: #{tpu_custom_call.1} parent=1 // loop_header_branch
      %17 = sbr.rel (%p15) target = $region8
    $region5: #{tpu_custom_call.1} parent=1 // loop_body
      %s19 = ssub.s32 %s14, 1
      %s20 = ssub.s32 %s14, 2
      %s21 = sadd.s32 %s14, 1
      %s22 = ssub.s32 %s14, %s21
      %p23 = scmp.eq.s32.totalorder %s22, 0
      %s25 = sadd.s32 %s24, 1
      %s26 = scalar_select %p23, %s24, %s25
      %p29 = pneg %p23
      %p30 = scmp.eq.s32.totalorder %s14, 1
      %p31 = por %p29, %p30
      %p32 = scmp.ne.s32.totalorder %s24, %s27
      %p33 = scmp.eq.s32.totalorder %s14, 0
      %p34 = por %p32, %p33
      %p35 = scmp.ne.s32.totalorder %s24, %s27
      %p36 = scmp.eq.s32.totalorder %s19, 1
      %p37 = por %p35, %p36
      %p38 = scmp.ne.s32.totalorder %s27, %s28
      %p39 = scmp.eq.s32.totalorder %s19, 0
      %p40 = por %p38, %p39
      %p41 = scmp.ne.s32.totalorder %s27, %s28
      %p42 = scmp.eq.s32.totalorder %s20, 1
      %p43 = por %p41, %p42
      %p45 = scmp.ne.s32.totalorder %s28, %s44
      %p46 = scmp.eq.s32.totalorder %s20, 0
      %p47 = por %p45, %p46
      %s49 = sadd.s32 %s48, 1
      %p52 = scmp.eq.s32.totalorder %s14, 1
      %p53 = scmp.ne.s32.totalorder %s48, %s50
      %p54 = scmp.eq.s32.totalorder %s14, 0
      %p55 = por %p53, %p54
      %p56 = scmp.ne.s32.totalorder %s48, %s50
      %p57 = scmp.eq.s32.totalorder %s19, 1
      %p58 = por %p56, %p57
      %p59 = scmp.ne.s32.totalorder %s50, %s51
      %p60 = scmp.eq.s32.totalorder %s19, 0
      %p61 = por %p59, %p60
      %p62 = scmp.ne.s32.totalorder %s50, %s51
      %p63 = scmp.eq.s32.totalorder %s20, 1
      %p64 = por %p62, %p63
      %p66 = scmp.ne.s32.totalorder %s51, %s65
      %p67 = scmp.eq.s32.totalorder %s20, 0
      %p68 = por %p66, %p67
      %s70 = sadd.s32 %s69, 1
      %p73 = scmp.eq.s32.totalorder %s14, 1
      %p74 = scmp.ne.s32.totalorder %s69, %s71
      %p75 = scmp.eq.s32.totalorder %s14, 0
      %p76 = por %p74, %p75
      %p77 = scmp.ne.s32.totalorder %s69, %s71
      %p78 = scmp.eq.s32.totalorder %s19, 1
      %p79 = por %p77, %p78
      %p80 = scmp.ne.s32.totalorder %s71, %s72
      %p81 = scmp.eq.s32.totalorder %s19, 0
      %p82 = por %p80, %p81
      %p83 = scmp.ne.s32.totalorder %s71, %s72
      %p84 = scmp.eq.s32.totalorder %s20, 1
      %p85 = por %p83, %p84
      %p87 = scmp.ne.s32.totalorder %s72, %s86
      %p88 = scmp.eq.s32.totalorder %s20, 0
      %p89 = por %p87, %p88
      %s91 = sadd.s32 %s90, 1
      %p94 = scmp.eq.s32.totalorder %s14, 1
      %p95 = scmp.ne.s32.totalorder %s90, %s92
      %p96 = scmp.eq.s32.totalorder %s14, 0
      %p97 = por %p95, %p96
      %p98 = scmp.ne.s32.totalorder %s90, %s92
      %p99 = scmp.eq.s32.totalorder %s19, 1
      %p100 = por %p98, %p99
      %p101 = scmp.ne.s32.totalorder %s92, %s93
      %p102 = scmp.eq.s32.totalorder %s19, 0
      %p103 = por %p101, %p102
      %p104 = scmp.ne.s32.totalorder %s92, %s93
      %p105 = scmp.eq.s32.totalorder %s20, 1
      %p106 = por %p104, %p105
      %p108 = scmp.ne.s32.totalorder %s93, %s107
      %p109 = scmp.eq.s32.totalorder %s20, 0
      %p110 = por %p108, %p109
      %s112 = sadd.s32 %s111, 1
      %p115 = scmp.eq.s32.totalorder %s14, 1
      %p116 = scmp.ne.s32.totalorder %s111, %s113
      %p117 = scmp.eq.s32.totalorder %s14, 0
      %p118 = por %p116, %p117
      %p119 = scmp.ne.s32.totalorder %s111, %s113
      %p120 = scmp.eq.s32.totalorder %s19, 1
      %p121 = por %p119, %p120
      %p122 = scmp.ne.s32.totalorder %s113, %s114
      %p123 = scmp.eq.s32.totalorder %s19, 0
      %p124 = por %p122, %p123
      %p125 = scmp.ne.s32.totalorder %s113, %s114
      %p126 = scmp.eq.s32.totalorder %s20, 1
      %p127 = por %p125, %p126
      %p129 = scmp.ne.s32.totalorder %s114, %s128
      %p130 = scmp.eq.s32.totalorder %s20, 0
      %p131 = por %p129, %p130
      %s132 = ssub.s32 %s14, %s21
      %p133 = scmp.eq.s32.totalorder %s132, 0
      %s135 = sadd.s32 %s134, 1
      %s136 = scalar_select %p133, %s134, %s135
      %p139 = pneg %p133
      %p140 = scmp.eq.s32.totalorder %s14, 1
      %p141 = por %p139, %p140
      %p142 = scmp.ne.s32.totalorder %s134, %s137
      %p143 = scmp.eq.s32.totalorder %s14, 0
      %p144 = por %p142, %p143
      %p145 = scmp.ne.s32.totalorder %s134, %s137
      %p146 = scmp.eq.s32.totalorder %s19, 1
      %p147 = por %p145, %p146
      %p148 = scmp.ne.s32.totalorder %s137, %s138
      %p149 = scmp.eq.s32.totalorder %s19, 0
      %p150 = por %p148, %p149
      %p151 = scmp.ne.s32.totalorder %s137, %s138
      %p152 = scmp.eq.s32.totalorder %s20, 1
      %p153 = por %p151, %p152
      %p155 = scmp.ne.s32.totalorder %s138, %s154
      %p156 = scmp.eq.s32.totalorder %s20, 0
      %p157 = por %p155, %p156
      %p158 = scmp.le.s32.totalorder 1, %s14
      %p159 = scmp.lt.s32.totalorder %s14, 3
      %p160 = pnand %p158, %p159
      %p161 = pneg %p160
      // Predicated region
      $region9: #{tpu_custom_call.1} parent=5 // pred_check
        _
      $region10: #{tpu_custom_call.1} parent=5 // pred_check_branch
        %163 = sbr.rel (%p160) target = $region12
      $region11: #{tpu_custom_call.1} parent=5 // pred_region
        %s164 = ssub.s32 %s14, 1
        // Predicated region
        $region13: #{tpu_custom_call.1} parent=11 // pred_check
          %p165 = pneg %p61
        $region14: #{tpu_custom_call.1} parent=11 // pred_check_branch
          %167 = sbr.rel (%p165) target = $region16
        $region15: #{tpu_custom_call.1} parent=11 // pred_region
          _
        $region16: #{tpu_custom_call.1} parent=11 // pred_fallthru
          _
        // Predicated region
        $region17: #{tpu_custom_call.1} parent=11 // pred_check
          %p168 = pneg %p82
        $region18: #{tpu_custom_call.1} parent=11 // pred_check_branch
          %170 = sbr.rel (%p168) target = $region20
        $region19: #{tpu_custom_call.1} parent=11 // pred_region
          _
        $region20: #{tpu_custom_call.1} parent=11 // pred_fallthru
          _
        // Predicated region
        $region21: #{tpu_custom_call.1} parent=11 // pred_check
          %p171 = pneg %p103
        $region22: #{tpu_custom_call.1} parent=11 // pred_check_branch
          %173 = sbr.rel (%p171) target = $region24
        $region23: #{tpu_custom_call.1} parent=11 // pred_region
          _
        $region24: #{tpu_custom_call.1} parent=11 // pred_fallthru
          _
        // Predicated region
        $region25: #{tpu_custom_call.1} parent=11 // pred_check
          %p174 = pneg %p124
        $region26: #{tpu_custom_call.1} parent=11 // pred_check_branch
          %176 = sbr.rel (%p174) target = $region28
        $region27: #{tpu_custom_call.1} parent=11 // pred_region
          _
        $region28: #{tpu_custom_call.1} parent=11 // pred_fallthru
          _
      $region12: #{tpu_custom_call.1} parent=5 // pred_fallthru
        _
      %p177 = scmp.lt.s32.totalorder %s14, 2
      // Predicated region
      $region29: #{tpu_custom_call.1} parent=5 // pred_check
        %p178 = pneg %p177
      $region30: #{tpu_custom_call.1} parent=5 // pred_check_branch
        %180 = sbr.rel (%p178) target = $region32
      $region31: #{tpu_custom_call.1} parent=5 // pred_region
        // Predicated region
        $region33: #{tpu_custom_call.1} parent=31 // pred_check
          %p181 = pneg %p34
        $region34: #{tpu_custom_call.1} parent=31 // pred_check_branch
          %183 = sbr.rel (%p181) target = $region36
        $region35: #{tpu_custom_call.1} parent=31 // pred_region
          %p184 = scmp.lt.s32.totalorder %s14, 1
          %s185 = scalar_select %p184, %s14, 1
          %s186 = smul.addr %s185, 32
          %s187 = smul.addr %s186, 8
          %s188 = scalar_lea.vmem %s0, %s187
        $region36: #{tpu_custom_call.1} parent=31 // pred_fallthru
          _
      $region32: #{tpu_custom_call.1} parent=5 // pred_fallthru
        _
      %p189 = scmp.le.s32.totalorder 1, %s14
      %p190 = scmp.lt.s32.totalorder %s14, 3
      %p191 = pnand %p189, %p190
      %p192 = pneg %p191
      // Predicated region
      $region37: #{tpu_custom_call.1} parent=5 // pred_check
        _
      $region38: #{tpu_custom_call.1} parent=5 // pred_check_branch
        %194 = sbr.rel (%p191) target = $region40
      $region39: #{tpu_custom_call.1} parent=5 // pred_region
        %s195 = ssub.s32 %s14, 1
        %p196 = scmp.lt.s32.totalorder %s19, 1
        %s197 = scalar_select %p196, %s19, 1
        %s198 = smul.addr %s197, 32
        %s199 = smul.addr %s198, 8
        %s200 = scalar_lea.vmem %s0, %s199
        %p201 = pneg %p40
        %p202 = pneg %p37
        %p203 = pneg %p61
        %p204 = pneg %p58
        %p205 = pneg %p82
        %p206 = pneg %p79
        %p207 = pneg %p103
        %p208 = pneg %p100
        %p209 = pneg %p124
        %p210 = pneg %p121
        %p211 = pneg %p150
        %p212 = pneg %p147
        %s213 = sand.u32 %s137, 1
        %s214 = scalar_lea.sflag [#allocation5], %s213
        %s215 = sand.u32 %s137, 1
        %s216 = smul.addr %s215, 16
        %s217 = scalar_lea.vmem [#allocation4], %s216
        %p218 = scmp.lt.s32.totalorder %s19, 1
        %s219 = scalar_select %p218, %s19, 1
        %s220 = smul.addr %s219, 32
        %s221 = smul.addr %s220, 8
        %s222 = scalar_lea.vmem %s0, %s221
        %vm223 = vcmask 31744
        %224 = vst.msk [vmem:[#allocation2] sm:$0xff] %vm223, 0.0
        %225 = vst.msk [vmem:[#allocation2 + $0x8] sm:$0xff] %vm223, 0.0
        %vm226 = vcmask 25600
        %227 = vst.msk [vmem:[#allocation2 + $0x10] sm:$0x3] %vm226, 0.0
        %228 = vst.msk [vmem:[#allocation2 + $0x18] sm:$0xff] %vm223, 0.0
        %229 = vst.msk [vmem:[#allocation2 + $0x20] sm:$0xff] %vm223, 0.0
        %230 = vst.msk [vmem:[#allocation2 + $0x28] sm:$0x3] %vm226, 0.0
        %231 = vst.msk [vmem:[#allocation2 + $0x30] sm:$0xff] %vm223, 0.0
        %232 = vst.msk [vmem:[#allocation2 + $0x38] sm:$0xff] %vm223, 0.0
        %233 = vst.msk [vmem:[#allocation2 + $0x40] sm:$0x3] %vm226, 0.0
        %234 = vst.msk [vmem:[#allocation2 + $0x48] sm:$0xff] %vm223, 0.0
        %235 = vst.msk [vmem:[#allocation2 + $0x50] sm:$0xff] %vm223, 0.0
        %236 = vst.msk [vmem:[#allocation2 + $0x58] sm:$0x3] %vm226, 0.0
        %237 = vst.msk [vmem:[#allocation2 + $0x60] sm:$0xff] %vm223, 0.0
        %238 = vst.msk [vmem:[#allocation2 + $0x68] sm:$0xff] %vm223, 0.0
        %239 = vst.msk [vmem:[#allocation2 + $0x70] sm:$0x3] %vm226, 0.0
        %240 = vst.msk [vmem:[#allocation2 + $0x78] sm:$0xff] %vm223, 0.0
        %241 = vst.msk [vmem:[#allocation2 + $0x80] sm:$0xff] %vm223, 0.0
        %242 = vst.msk [vmem:[#allocation2 + $0x88] sm:$0x3] %vm226, 0.0
        %243 = vst.msk [vmem:[#allocation2 + $0x90] sm:$0xff] %vm223, 0.0
        %244 = vst.msk [vmem:[#allocation2 + $0x98] sm:$0xff] %vm223, 0.0
        %245 = vst.msk [vmem:[#allocation2 + $0xa0] sm:$0x3] %vm226, 0.0
        %246 = vst.msk [vmem:[#allocation2 + $0xa8] sm:$0xff] %vm223, 0.0
        %247 = vst.msk [vmem:[#allocation2 + $0xb0] sm:$0xff] %vm223, 0.0
        %248 = vst.msk [vmem:[#allocation2 + $0xb8] sm:$0x3] %vm226, 0.0
        %249 = vst.msk [vmem:[#allocation2 + $0xc0] sm:$0xff] %vm223, 0.0
        %250 = vst.msk [vmem:[#allocation2 + $0xc8] sm:$0xff] %vm223, 0.0
        %251 = vst.msk [vmem:[#allocation2 + $0xd0] sm:$0x3] %vm226, 0.0
        %252 = vst.msk [vmem:[#allocation2 + $0xd8] sm:$0xff] %vm223, 0.0
        %253 = vst.msk [vmem:[#allocation2 + $0xe0] sm:$0xff] %vm223, 0.0
        %254 = vst.msk [vmem:[#allocation2 + $0xe8] sm:$0x3] %vm226, 0.0
        %255 = vst.msk [vmem:[#allocation2 + $0xf0] sm:$0xff] %vm223, 0.0
        %256 = vst.msk [vmem:[#allocation2 + $0xf8] sm:$0xff] %vm223, 0.0
        %257 = vst.msk [vmem:[#allocation2 + $0x100] sm:$0x3] %vm226, 0.0
        %258 = vst.msk [vmem:[#allocation2 + $0x108] sm:$0xff] %vm223, 0.0
        %259 = vst.msk [vmem:[#allocation2 + $0x110] sm:$0xff] %vm223, 0.0
        %260 = vst.msk [vmem:[#allocation2 + $0x118] sm:$0x3] %vm226, 0.0
        %261 = vst.msk [vmem:[#allocation2 + $0x120] sm:$0xff] %vm223, 0.0
        %262 = vst.msk [vmem:[#allocation2 + $0x128] sm:$0xff] %vm223, 0.0
        %263 = vst.msk [vmem:[#allocation2 + $0x130] sm:$0x3] %vm226, 0.0
        %264 = vst.msk [vmem:[#allocation2 + $0x138] sm:$0xff] %vm223, 0.0
        %265 = vst.msk [vmem:[#allocation2 + $0x140] sm:$0xff] %vm223, 0.0
        %266 = vst.msk [vmem:[#allocation2 + $0x148] sm:$0x3] %vm226, 0.0
        %267 = vst.msk [vmem:[#allocation2 + $0x150] sm:$0xff] %vm223, 0.0
        %268 = vst.msk [vmem:[#allocation2 + $0x158] sm:$0xff] %vm223, 0.0
        %269 = vst.msk [vmem:[#allocation2 + $0x160] sm:$0x3] %vm226, 0.0
        %270 = vst.msk [vmem:[#allocation2 + $0x168] sm:$0xff] %vm223, 0.0
        %271 = vst.msk [vmem:[#allocation2 + $0x170] sm:$0xff] %vm223, 0.0
        %272 = vst.msk [vmem:[#allocation2 + $0x178] sm:$0x3] %vm226, 0.0
        %273 = vst.msk [vmem:[#allocation2 + $0x180] sm:$0xff] %vm223, 0.0
        %274 = vst.msk [vmem:[#allocation2 + $0x188] sm:$0xff] %vm223, 0.0
        %275 = vst.msk [vmem:[#allocation2 + $0x190] sm:$0x3] %vm226, 0.0
        %276 = vst.msk [vmem:[#allocation2 + $0x198] sm:$0xff] %vm223, 0.0
        %277 = vst.msk [vmem:[#allocation2 + $0x1a0] sm:$0xff] %vm223, 0.0
        %278 = vst.msk [vmem:[#allocation2 + $0x1a8] sm:$0x3] %vm226, 0.0
        %vm279 = vcmask 64512
        %280 = vst.msk [vmem:[#allocation3] sm:$0xff] %vm279, 0.0
        %281 = vst.msk [vmem:[#allocation3 + $0x8] sm:$0xff] %vm279, 0.0
        %vm282 = vcmask 58368
        %283 = vst.msk [vmem:[#allocation3 + $0x10] sm:$0x3] %vm282, 0.0
        %284 = vst.msk [vmem:[#allocation3 + $0x18] sm:$0xff] %vm279, 0.0
        %285 = vst.msk [vmem:[#allocation3 + $0x20] sm:$0xff] %vm279, 0.0
        %286 = vst.msk [vmem:[#allocation3 + $0x28] sm:$0x3] %vm282, 0.0
        %287 = vst.msk [vmem:[#allocation3 + $0x30] sm:$0xff] %vm279, 0.0
        %288 = vst.msk [vmem:[#allocation3 + $0x38] sm:$0xff] %vm279, 0.0
        %289 = vst.msk [vmem:[#allocation3 + $0x40] sm:$0x3] %vm282, 0.0
        %290 = vst.msk [vmem:[#allocation3 + $0x48] sm:$0xff] %vm279, 0.0
        %291 = vst.msk [vmem:[#allocation3 + $0x50] sm:$0xff] %vm279, 0.0
        %292 = vst.msk [vmem:[#allocation3 + $0x58] sm:$0x3] %vm282, 0.0
        %293 = vst.msk [vmem:[#allocation3 + $0x60] sm:$0xff] %vm279, 0.0
        %294 = vst.msk [vmem:[#allocation3 + $0x68] sm:$0xff] %vm279, 0.0
        %295 = vst.msk [vmem:[#allocation3 + $0x70] sm:$0x3] %vm282, 0.0
        %296 = vst.msk [vmem:[#allocation3 + $0x78] sm:$0xff] %vm279, 0.0
        %297 = vst.msk [vmem:[#allocation3 + $0x80] sm:$0xff] %vm279, 0.0
        %298 = vst.msk [vmem:[#allocation3 + $0x88] sm:$0x3] %vm282, 0.0
        %299 = vst.msk [vmem:[#allocation3 + $0x90] sm:$0xff] %vm279, 0.0
        %300 = vst.msk [vmem:[#allocation3 + $0x98] sm:$0xff] %vm279, 0.0
        %301 = vst.msk [vmem:[#allocation3 + $0xa0] sm:$0x3] %vm282, 0.0
        %302 = vst.msk [vmem:[#allocation3 + $0xa8] sm:$0xff] %vm279, 0.0
        %303 = vst.msk [vmem:[#allocation3 + $0xb0] sm:$0xff] %vm279, 0.0
        %304 = vst.msk [vmem:[#allocation3 + $0xb8] sm:$0x3] %vm282, 0.0
        %305 = vst.msk [vmem:[#allocation3 + $0xc0] sm:$0xff] %vm279, 0.0
        %306 = vst.msk [vmem:[#allocation3 + $0xc8] sm:$0xff] %vm279, 0.0
        %307 = vst.msk [vmem:[#allocation3 + $0xd0] sm:$0x3] %vm282, 0.0
        %308 = vst.msk [vmem:[#allocation3 + $0xd8] sm:$0xff] %vm279, 0.0
        %309 = vst.msk [vmem:[#allocation3 + $0xe0] sm:$0xff] %vm279, 0.0
        %310 = vst.msk [vmem:[#allocation3 + $0xe8] sm:$0x3] %vm282, 0.0
        %311 = vst.msk [vmem:[#allocation3 + $0xf0] sm:$0xff] %vm279, 0.0
        %312 = vst.msk [vmem:[#allocation3 + $0xf8] sm:$0xff] %vm279, 0.0
        %313 = vst.msk [vmem:[#allocation3 + $0x100] sm:$0x3] %vm282, 0.0
        %314 = vst.msk [vmem:[#allocation3 + $0x108] sm:$0xff] %vm279, 0.0
        %315 = vst.msk [vmem:[#allocation3 + $0x110] sm:$0xff] %vm279, 0.0
        %316 = vst.msk [vmem:[#allocation3 + $0x118] sm:$0x3] %vm282, 0.0
        %317 = vst.msk [vmem:[#allocation3 + $0x120] sm:$0xff] %vm279, 0.0
        %318 = vst.msk [vmem:[#allocation3 + $0x128] sm:$0xff] %vm279, 0.0
        %319 = vst.msk [vmem:[#allocation3 + $0x130] sm:$0x3] %vm282, 0.0
        %320 = vst.msk [vmem:[#allocation3 + $0x138] sm:$0xff] %vm279, 0.0
        %321 = vst.msk [vmem:[#allocation3 + $0x140] sm:$0xff] %vm279, 0.0
        %322 = vst.msk [vmem:[#allocation3 + $0x148] sm:$0x3] %vm282, 0.0
        %323 = vst.msk [vmem:[#allocation3 + $0x150] sm:$0xff] %vm279, 0.0
        %324 = vst.msk [vmem:[#allocation3 + $0x158] sm:$0xff] %vm279, 0.0
        %325 = vst.msk [vmem:[#allocation3 + $0x160] sm:$0x3] %vm282, 0.0
        %326 = vst.msk [vmem:[#allocation3 + $0x168] sm:$0xff] %vm279, 0.0
        %327 = vst.msk [vmem:[#allocation3 + $0x170] sm:$0xff] %vm279, 0.0
        %328 = vst.msk [vmem:[#allocation3 + $0x178] sm:$0x3] %vm282, 0.0
        %329 = vst.msk [vmem:[#allocation3 + $0x180] sm:$0xff] %vm279, 0.0
        %330 = vst.msk [vmem:[#allocation3 + $0x188] sm:$0xff] %vm279, 0.0
        %331 = vst.msk [vmem:[#allocation3 + $0x190] sm:$0x3] %vm282, 0.0
        %332 = vst.msk [vmem:[#allocation3 + $0x198] sm:$0xff] %vm279, 0.0
        %333 = vst.msk [vmem:[#allocation3 + $0x1a0] sm:$0xff] %vm279, 0.0
        %334 = vst.msk [vmem:[#allocation3 + $0x1a8] sm:$0x3] %vm282, 0.0
        %v335 = vld [vmem:[%s222] sm:$0xff]
        %v336 = vld [vmem:[%s222 + $0x8] sm:$0xff]
        %v337 = vld [vmem:[%s222 + $0x10] sm:$0xff]
        %v338 = vld [vmem:[%s222 + $0x18] sm:$0xff]
        %v339 = vld [vmem:[%s222 + $0x20] sm:$0xff]
        %v340 = vld [vmem:[%s222 + $0x28] sm:$0xff]
        %v341 = vld [vmem:[%s222 + $0x30] sm:$0xff]
        %v342 = vld [vmem:[%s222 + $0x38] sm:$0xff]
        %v343 = vld [vmem:[%s222 + $0x40] sm:$0xff]
        %v344 = vld [vmem:[%s222 + $0x48] sm:$0xff]
        %v345 = vld [vmem:[%s222 + $0x50] sm:$0xff]
        %v346 = vld [vmem:[%s222 + $0x58] sm:$0xff]
        %v347 = vld [vmem:[%s222 + $0x60] sm:$0xff]
        %v348 = vld [vmem:[%s222 + $0x68] sm:$0xff]
        %v349 = vld [vmem:[%s222 + $0x70] sm:$0xff]
        %v350 = vld [vmem:[%s222 + $0x78] sm:$0xff]
        %v351 = vld [vmem:[%s222 + $0x80] sm:$0xff]
        %v352 = vld [vmem:[%s222 + $0x88] sm:$0xff]
        %v353 = vld [vmem:[%s222 + $0x90] sm:$0xff]
        %v354 = vld [vmem:[%s222 + $0x98] sm:$0xff]
        %v355 = vld [vmem:[%s222 + $0xa0] sm:$0xff]
        %v356 = vld [vmem:[%s222 + $0xa8] sm:$0xff]
        %v357 = vld [vmem:[%s222 + $0xb0] sm:$0xff]
        %v358 = vld [vmem:[%s222 + $0xb8] sm:$0xff]
        %v359 = vld [vmem:[%s222 + $0xc0] sm:$0xff]
        %v360 = vld [vmem:[%s222 + $0xc8] sm:$0xff]
        %v361 = vld [vmem:[%s222 + $0xd0] sm:$0xff]
        %v362 = vld [vmem:[%s222 + $0xd8] sm:$0xff]
        %v363 = vld [vmem:[%s222 + $0xe0] sm:$0xff]
        %v364 = vld [vmem:[%s222 + $0xe8] sm:$0xff]
        %v365 = vld [vmem:[%s222 + $0xf0] sm:$0xff]
        %v366 = vld [vmem:[%s222 + $0xf8] sm:$0xff]
        %s367 = scalar_lea.vmem [#allocation2], 24
        %368 = vst.msk [vmem:[%s367 + $0x1] sm:$0xff] %vm223, %v335
        %369 = vst.msk [vmem:[%s367 + $0x9] sm:$0xff] %vm223, %v336
        %370 = vst.msk [vmem:[%s367 + $0x19] sm:$0xff] %vm223, %v337
        %371 = vst.msk [vmem:[%s367 + $0x21] sm:$0xff] %vm223, %v338
        %372 = vst.msk [vmem:[%s367 + $0x31] sm:$0xff] %vm223, %v339
        %373 = vst.msk [vmem:[%s367 + $0x39] sm:$0xff] %vm223, %v340
        %374 = vst.msk [vmem:[%s367 + $0x49] sm:$0xff] %vm223, %v341
        %375 = vst.msk [vmem:[%s367 + $0x51] sm:$0xff] %vm223, %v342
        %376 = vst.msk [vmem:[%s367 + $0x61] sm:$0xff] %vm223, %v343
        %377 = vst.msk [vmem:[%s367 + $0x69] sm:$0xff] %vm223, %v344
        %378 = vst.msk [vmem:[%s367 + $0x79] sm:$0xff] %vm223, %v345
        %379 = vst.msk [vmem:[%s367 + $0x81] sm:$0xff] %vm223, %v346
        %380 = vst.msk [vmem:[%s367 + $0x91] sm:$0xff] %vm223, %v347
        %381 = vst.msk [vmem:[%s367 + $0x99] sm:$0xff] %vm223, %v348
        %382 = vst.msk [vmem:[%s367 + $0xa9] sm:$0xff] %vm223, %v349
        %383 = vst.msk [vmem:[%s367 + $0xb1] sm:$0xff] %vm223, %v350
        %384 = vst.msk [vmem:[%s367 + $0xc1] sm:$0xff] %vm223, %v351
        %385 = vst.msk [vmem:[%s367 + $0xc9] sm:$0xff] %vm223, %v352
        %386 = vst.msk [vmem:[%s367 + $0xd9] sm:$0xff] %vm223, %v353
        %387 = vst.msk [vmem:[%s367 + $0xe1] sm:$0xff] %vm223, %v354
        %388 = vst.msk [vmem:[%s367 + $0xf1] sm:$0xff] %vm223, %v355
        %389 = vst.msk [vmem:[%s367 + $0xf9] sm:$0xff] %vm223, %v356
        %390 = vst.msk [vmem:[%s367 + $0x109] sm:$0xff] %vm223, %v357
        %391 = vst.msk [vmem:[%s367 + $0x111] sm:$0xff] %vm223, %v358
        %392 = vst.msk [vmem:[%s367 + $0x121] sm:$0xff] %vm223, %v359
        %393 = vst.msk [vmem:[%s367 + $0x129] sm:$0xff] %vm223, %v360
        %394 = vst.msk [vmem:[%s367 + $0x139] sm:$0xff] %vm223, %v361
        %395 = vst.msk [vmem:[%s367 + $0x141] sm:$0xff] %vm223, %v362
        %396 = vst.msk [vmem:[%s367 + $0x151] sm:$0xff] %vm223, %v363
        %397 = vst.msk [vmem:[%s367 + $0x159] sm:$0xff] %vm223, %v364
        %398 = vst.msk [vmem:[%s367 + $0x169] sm:$0xff] %vm223, %v365
        %399 = vst.msk [vmem:[%s367 + $0x171] sm:$0xff] %vm223, %v366
        %v400 = vld [vmem:[#allocation2] sm:$0xff]
        %v401 = vld [vmem:[#allocation2 + $0x8] sm:$0xff]
        %v402 = vld [vmem:[#allocation2 + $0x18] sm:$0xff]
        %v403 = vld [vmem:[#allocation2 + $0x20] sm:$0xff]
        %v404 = vld [vmem:[#allocation2 + $0x30] sm:$0xff]
        %v405 = vld [vmem:[#allocation2 + $0x38] sm:$0xff]
        %v406 = vld [vmem:[#allocation2 + $0x48] sm:$0xff]
        %v407 = vld [vmem:[#allocation2 + $0x50] sm:$0xff]
        %v408 = vld [vmem:[#allocation2 + $0x60] sm:$0xff]
        %v409 = vld [vmem:[#allocation2 + $0x68] sm:$0xff]
        %v410 = vld [vmem:[#allocation2 + $0x78] sm:$0xff]
        %v411 = vld [vmem:[#allocation2 + $0x80] sm:$0xff]
        %v412 = vld [vmem:[#allocation2 + $0x90] sm:$0xff]
        %v413 = vld [vmem:[#allocation2 + $0x98] sm:$0xff]
        %v414 = vld [vmem:[#allocation2 + $0xa8] sm:$0xff]
        %v415 = vld [vmem:[#allocation2 + $0xb0] sm:$0xff]
        %v416 = vld [vmem:[#allocation2 + $0xc0] sm:$0xff]
        %v417 = vld [vmem:[#allocation2 + $0xc8] sm:$0xff]
        %v418 = vld [vmem:[#allocation2 + $0xd8] sm:$0xff]
        %v419 = vld [vmem:[#allocation2 + $0xe0] sm:$0xff]
        %v420 = vld [vmem:[#allocation2 + $0xf0] sm:$0xff]
        %v421 = vld [vmem:[#allocation2 + $0xf8] sm:$0xff]
        %v422 = vld [vmem:[#allocation2 + $0x108] sm:$0xff]
        %v423 = vld [vmem:[#allocation2 + $0x110] sm:$0xff]
        %v424 = vld [vmem:[#allocation2 + $0x120] sm:$0xff]
        %v425 = vld [vmem:[#allocation2 + $0x128] sm:$0xff]
        %v426 = vld [vmem:[#allocation2 + $0x138] sm:$0xff]
        %v427 = vld [vmem:[#allocation2 + $0x140] sm:$0xff]
        %v428 = vld [vmem:[#allocation2 + $0x150] sm:$0xff]
        %v429 = vld [vmem:[#allocation2 + $0x158] sm:$0xff]
        %v430 = vld [vmem:[#allocation2 + $0x168] sm:$0xff]
        %v431 = vld [vmem:[#allocation2 + $0x170] sm:$0xff]
        %v432 = vld [vmem:[%s1] sm:$0xf]
        %v433 = vld [vmem:[#allocation2 + $0x1] sm:$0xff]
        %v434 = vld [vmem:[#allocation2 + $0x9] sm:$0xff]
        %v435 = vld [vmem:[#allocation2 + $0x19] sm:$0xff]
        %v436 = vld [vmem:[#allocation2 + $0x21] sm:$0xff]
        %v437 = vld [vmem:[#allocation2 + $0x31] sm:$0xff]
        %v438 = vld [vmem:[#allocation2 + $0x39] sm:$0xff]
        %v439 = vld [vmem:[#allocation2 + $0x49] sm:$0xff]
        %v440 = vld [vmem:[#allocation2 + $0x51] sm:$0xff]
        %v441 = vld [vmem:[#allocation2 + $0x61] sm:$0xff]
        %v442 = vld [vmem:[#allocation2 + $0x69] sm:$0xff]
        %v443 = vld [vmem:[#allocation2 + $0x79] sm:$0xff]
        %v444 = vld [vmem:[#allocation2 + $0x81] sm:$0xff]
        %v445 = vld [vmem:[#allocation2 + $0x91] sm:$0xff]
        %v446 = vld [vmem:[#allocation2 + $0x99] sm:$0xff]
        %v447 = vld [vmem:[#allocation2 + $0xa9] sm:$0xff]
        %v448 = vld [vmem:[#allocation2 + $0xb1] sm:$0xff]
        %v449 = vld [vmem:[#allocation2 + $0xc1] sm:$0xff]
        %v450 = vld [vmem:[#allocation2 + $0xc9] sm:$0xff]
        %v451 = vld [vmem:[#allocation2 + $0xd9] sm:$0xff]
        %v452 = vld [vmem:[#allocation2 + $0xe1] sm:$0xff]
        %v453 = vld [vmem:[#allocation2 + $0xf1] sm:$0xff]
        %v454 = vld [vmem:[#allocation2 + $0xf9] sm:$0xff]
        %v455 = vld [vmem:[#allocation2 + $0x109] sm:$0xff]
        %v456 = vld [vmem:[#allocation2 + $0x111] sm:$0xff]
        %v457 = vld [vmem:[#allocation2 + $0x121] sm:$0xff]
        %v458 = vld [vmem:[#allocation2 + $0x129] sm:$0xff]
        %v459 = vld [vmem:[#allocation2 + $0x139] sm:$0xff]
        %v460 = vld [vmem:[#allocation2 + $0x141] sm:$0xff]
        %v461 = vld [vmem:[#allocation2 + $0x151] sm:$0xff]
        %v462 = vld [vmem:[#allocation2 + $0x159] sm:$0xff]
        %v463 = vld [vmem:[#allocation2 + $0x169] sm:$0xff]
        %v464 = vld [vmem:[#allocation2 + $0x171] sm:$0xff]
        %s465 = scalar_lea.vmem %s1, 4
        %v466 = vld [vmem:[%s465] sm:$0xf]
        %v468 = vsel %vm223, %v433, 0
        %v471 = vsel %vm223, %v434, 0
        %v474 = vsel %vm223, %v435, 0
        %v477 = vsel %vm223, %v436, 0
        %v480 = vsel %vm223, %v437, 0
        %v483 = vsel %vm223, %v438, 0
        %v486 = vsel %vm223, %v439, 0
        %v489 = vsel %vm223, %v440, 0
        %v492 = vsel %vm223, %v441, 0
        %v495 = vsel %vm223, %v442, 0
        %v498 = vsel %vm223, %v443, 0
        %v501 = vsel %vm223, %v444, 0
        %v504 = vsel %vm223, %v445, 0
        %v507 = vsel %vm223, %v446, 0
        %v510 = vsel %vm223, %v447, 0
        %v513 = vsel %vm223, %v448, 0
        %v516 = vsel %vm223, %v449, 0
        %v519 = vsel %vm223, %v450, 0
        %v522 = vsel %vm223, %v451, 0
        %v525 = vsel %vm223, %v452, 0
        %v528 = vsel %vm223, %v453, 0
        %v531 = vsel %vm223, %v454, 0
        %v534 = vsel %vm223, %v455, 0
        %v537 = vsel %vm223, %v456, 0
        %v540 = vsel %vm223, %v457, 0
        %v543 = vsel %vm223, %v458, 0
        %v546 = vsel %vm223, %v459, 0
        %v549 = vsel %vm223, %v460, 0
        %v552 = vsel %vm223, %v461, 0
        %v555 = vsel %vm223, %v462, 0
        %v558 = vsel %vm223, %v463, 0
        %v561 = vsel %vm223, %v464, 0
        %vm563 = vcmask 1043456
        %v565 = vsel %vm563, %v466, 0
        %567 = vmatprep.subr.mxu0 0.0
        %568 = vmatpush1.msra.mxu0 0.0
        %569 = vmatprep.subr.mxu0 0.0
        %570 = vmatpush1.msra.mxu0 0.0
        %571 = vmatprep.subr.mxu0 0.0
        %572 = vmatpush1.msra.mxu0 0.0
        %573 = vmatprep.subr.mxu0 0.0
        %574 = vmatpush1.msra.mxu0 0.0
        %575 = vmatprep.subr.mxu0 0.0
        %576 = vmatpush1.msra.mxu0 0.0
        %577 = vmatprep.subr.mxu0 0.0
        %578 = vmatpush1.msra.mxu0 0.0
        %579 = vmatprep.subr.mxu0 0.0
        %580 = vmatpush1.msra.mxu0 0.0
        %581 = vmatprep.subr.mxu0 0.0
        %582 = vmatpush1.msra.mxu0 0.0
        %583 = vmatprep.subr.mxu0 0.0
        %584 = vmatpush1.msra.mxu0 0.0
        %585 = vmatprep.subr.mxu0 0.0
        %586 = vmatpush1.msra.mxu0 0.0
        %587 = vmatprep.subr.mxu0 0.0
        %588 = vmatpush1.msra.mxu0 0.0
        %589 = vmatprep.subr.mxu0 0.0
        %590 = vmatpush1.msra.mxu0 0.0
        %591 = vmatprep.subr.mxu0 0.0
        %592 = vmatpush1.msra.mxu0 0.0
        %593 = vmatprep.subr.mxu0 0.0
        %594 = vmatpush1.msra.mxu0 0.0
        %595 = vmatprep.subr.mxu0 0.0
        %596 = vmatpush1.msra.mxu0 0.0
        %597 = vmatprep.subr.mxu0 0.0
        %598 = vmatpush1.msra.mxu0 %v565
        %599 = vmatprep.subr.mxu0 0.0
        %600 = vmatpush2.msra.mxu0 0.0
        %601 = vmatprep.subr.mxu0 0.0
        %602 = vmatpush2.msra.mxu0 0.0
        %603 = vmatprep.subr.mxu0 0.0
        %604 = vmatpush2.msra.mxu0 0.0
        %605 = vmatprep.subr.mxu0 0.0
        %606 = vmatpush2.msra.mxu0 0.0
        %607 = vmatprep.subr.mxu0 0.0
        %608 = vmatpush2.msra.mxu0 0.0
        %609 = vmatprep.subr.mxu0 0.0
        %610 = vmatpush2.msra.mxu0 0.0
        %611 = vmatprep.subr.mxu0 0.0
        %612 = vmatpush2.msra.mxu0 0.0
        %613 = vmatprep.subr.mxu0 0.0
        %614 = vmatpush2.msra.mxu0 0.0
        %615 = vmatprep.subr.mxu0 0.0
        %616 = vmatpush2.msra.mxu0 0.0
        %617 = vmatprep.subr.mxu0 0.0
        %618 = vmatpush2.msra.mxu0 0.0
        %619 = vmatprep.subr.mxu0 0.0
        %620 = vmatpush2.msra.mxu0 0.0
        %621 = vmatprep.subr.mxu0 0.0
        %622 = vmatpush2.msra.mxu0 0.0
        %623 = vmatprep.subr.mxu0 0.0
        %624 = vmatpush2.msra.mxu0 0.0
        %625 = vmatprep.subr.mxu0 0.0
        %626 = vmatpush2.msra.mxu0 0.0
        %627 = vmatprep.subr.mxu0 0.0
        %628 = vmatpush2.msra.mxu0 0.0
        %629 = vmatprep.subr.mxu0 0.0
        %630 = vmatpush2.msra.mxu0 0.0
        %631 = vmatprep.mubr.f32.mxu0 0.0
        %632 = vmatmul.mubr.f32.gmra.mxu0 %v468
        %v633 = vpop.f32.mrf.mxu0
        %v634 = vadd.f32 0.0, %v633
        %v635 = vpop.f32.mrf.mxu0
        %636 = vmatprep.mubr.f32.mxu0 0.0
        %637 = vmatmul.mubr.f32.gmra.mxu0 %v471
        %v638 = vpop.f32.mrf.mxu0
        %v639 = vadd.f32 0.0, %v638
        %v640 = vpop.f32.mrf.mxu0
        %641 = vmatprep.mubr.f32.mxu0 0.0
        %642 = vmatmul.mubr.f32.gmra.mxu0 %v474
        %v643 = vpop.f32.mrf.mxu0
        %v644 = vadd.f32 0.0, %v643
        %v645 = vpop.f32.mrf.mxu0
        %646 = vmatprep.mubr.f32.mxu0 0.0
        %647 = vmatmul.mubr.f32.gmra.mxu0 %v477
        %v648 = vpop.f32.mrf.mxu0
        %v649 = vadd.f32 0.0, %v648
        %v650 = vpop.f32.mrf.mxu0
        %651 = vmatprep.mubr.f32.mxu0 0.0
        %652 = vmatmul.mubr.f32.gmra.mxu0 %v480
        %v653 = vpop.f32.mrf.mxu0
        %v654 = vadd.f32 0.0, %v653
        %v655 = vpop.f32.mrf.mxu0
        %656 = vmatprep.mubr.f32.mxu0 0.0
        %657 = vmatmul.mubr.f32.gmra.mxu0 %v483
        %v658 = vpop.f32.mrf.mxu0
        %v659 = vadd.f32 0.0, %v658
        %v660 = vpop.f32.mrf.mxu0
        %661 = vmatprep.mubr.f32.mxu0 0.0
        %662 = vmatmul.mubr.f32.gmra.mxu0 %v486
        %v663 = vpop.f32.mrf.mxu0
        %v664 = vadd.f32 0.0, %v663
        %v665 = vpop.f32.mrf.mxu0
        %666 = vmatprep.mubr.f32.mxu0 0.0
        %667 = vmatmul.mubr.f32.gmra.mxu0 %v489
        %v668 = vpop.f32.mrf.mxu0
        %v669 = vadd.f32 0.0, %v668
        %v670 = vpop.f32.mrf.mxu0
        %671 = vmatprep.mubr.f32.mxu0 0.0
        %672 = vmatmul.mubr.f32.gmra.mxu0 %v492
        %v673 = vpop.f32.mrf.mxu0
        %v674 = vadd.f32 0.0, %v673
        %v675 = vpop.f32.mrf.mxu0
        %676 = vmatprep.mubr.f32.mxu0 0.0
        %677 = vmatmul.mubr.f32.gmra.mxu0 %v495
        %v678 = vpop.f32.mrf.mxu0
        %v679 = vadd.f32 0.0, %v678
        %v680 = vpop.f32.mrf.mxu0
        %681 = vmatprep.mubr.f32.mxu0 0.0
        %682 = vmatmul.mubr.f32.gmra.mxu0 %v498
        %v683 = vpop.f32.mrf.mxu0
        %v684 = vadd.f32 0.0, %v683
        %v685 = vpop.f32.mrf.mxu0
        %686 = vmatprep.mubr.f32.mxu0 0.0
        %687 = vmatmul.mubr.f32.gmra.mxu0 %v501
        %v688 = vpop.f32.mrf.mxu0
        %v689 = vadd.f32 0.0, %v688
        %v690 = vpop.f32.mrf.mxu0
        %691 = vmatprep.mubr.f32.mxu0 0.0
        %692 = vmatmul.mubr.f32.gmra.mxu0 %v504
        %v693 = vpop.f32.mrf.mxu0
        %v694 = vadd.f32 0.0, %v693
        %v695 = vpop.f32.mrf.mxu0
        %696 = vmatprep.mubr.f32.mxu0 0.0
        %697 = vmatmul.mubr.f32.gmra.mxu0 %v507
        %v698 = vpop.f32.mrf.mxu0
        %v699 = vadd.f32 0.0, %v698
        %v700 = vpop.f32.mrf.mxu0
        %701 = vmatprep.mubr.f32.mxu0 0.0
        %702 = vmatmul.mubr.f32.gmra.mxu0 %v510
        %v703 = vpop.f32.mrf.mxu0
        %v704 = vadd.f32 0.0, %v703
        %v705 = vpop.f32.mrf.mxu0
        %706 = vmatprep.mubr.f32.mxu0 0.0
        %707 = vmatmul.mubr.f32.gmra.mxu0 %v513
        %v708 = vpop.f32.mrf.mxu0
        %v709 = vadd.f32 0.0, %v708
        %v710 = vpop.f32.mrf.mxu0
        %711 = vmatprep.mubr.f32.mxu0 0.0
        %712 = vmatmul.mubr.f32.gmra.mxu0 %v516
        %v713 = vpop.f32.mrf.mxu0
        %v714 = vadd.f32 0.0, %v713
        %v715 = vpop.f32.mrf.mxu0
        %716 = vmatprep.mubr.f32.mxu0 0.0
        %717 = vmatmul.mubr.f32.gmra.mxu0 %v519
        %v718 = vpop.f32.mrf.mxu0
        %v719 = vadd.f32 0.0, %v718
        %v720 = vpop.f32.mrf.mxu0
        %721 = vmatprep.mubr.f32.mxu0 0.0
        %722 = vmatmul.mubr.f32.gmra.mxu0 %v522
        %v723 = vpop.f32.mrf.mxu0
        %v724 = vadd.f32 0.0, %v723
        %v725 = vpop.f32.mrf.mxu0
        %726 = vmatprep.mubr.f32.mxu0 0.0
        %727 = vmatmul.mubr.f32.gmra.mxu0 %v525
        %v728 = vpop.f32.mrf.mxu0
        %v729 = vadd.f32 0.0, %v728
        %v730 = vpop.f32.mrf.mxu0
        %731 = vmatprep.mubr.f32.mxu0 0.0
        %732 = vmatmul.mubr.f32.gmra.mxu0 %v528
        %v733 = vpop.f32.mrf.mxu0
        %v734 = vadd.f32 0.0, %v733
        %v735 = vpop.f32.mrf.mxu0
        %736 = vmatprep.mubr.f32.mxu0 0.0
        %737 = vmatmul.mubr.f32.gmra.mxu0 %v531
        %v738 = vpop.f32.mrf.mxu0
        %v739 = vadd.f32 0.0, %v738
        %v740 = vpop.f32.mrf.mxu0
        %741 = vmatprep.mubr.f32.mxu0 0.0
        %742 = vmatmul.mubr.f32.gmra.mxu0 %v534
        %v743 = vpop.f32.mrf.mxu0
        %v744 = vadd.f32 0.0, %v743
        %v745 = vpop.f32.mrf.mxu0
        %746 = vmatprep.mubr.f32.mxu0 0.0
        %747 = vmatmul.mubr.f32.gmra.mxu0 %v537
        %v748 = vpop.f32.mrf.mxu0
        %v749 = vadd.f32 0.0, %v748
        %v750 = vpop.f32.mrf.mxu0
        %751 = vmatprep.mubr.f32.mxu0 0.0
        %752 = vmatmul.mubr.f32.gmra.mxu0 %v540
        %v753 = vpop.f32.mrf.mxu0
        %v754 = vadd.f32 0.0, %v753
        %v755 = vpop.f32.mrf.mxu0
        %756 = vmatprep.mubr.f32.mxu0 0.0
        %757 = vmatmul.mubr.f32.gmra.mxu0 %v543
        %v758 = vpop.f32.mrf.mxu0
        %v759 = vadd.f32 0.0, %v758
        %v760 = vpop.f32.mrf.mxu0
        %761 = vmatprep.mubr.f32.mxu0 0.0
        %762 = vmatmul.mubr.f32.gmra.mxu0 %v546
        %v763 = vpop.f32.mrf.mxu0
        %v764 = vadd.f32 0.0, %v763
        %v765 = vpop.f32.mrf.mxu0
        %766 = vmatprep.mubr.f32.mxu0 0.0
        %767 = vmatmul.mubr.f32.gmra.mxu0 %v549
        %v768 = vpop.f32.mrf.mxu0
        %v769 = vadd.f32 0.0, %v768
        %v770 = vpop.f32.mrf.mxu0
        %771 = vmatprep.mubr.f32.mxu0 0.0
        %772 = vmatmul.mubr.f32.gmra.mxu0 %v552
        %v773 = vpop.f32.mrf.mxu0
        %v774 = vadd.f32 0.0, %v773
        %v775 = vpop.f32.mrf.mxu0
        %776 = vmatprep.mubr.f32.mxu0 0.0
        %777 = vmatmul.mubr.f32.gmra.mxu0 %v555
        %v778 = vpop.f32.mrf.mxu0
        %v779 = vadd.f32 0.0, %v778
        %v780 = vpop.f32.mrf.mxu0
        %781 = vmatprep.mubr.f32.mxu0 0.0
        %782 = vmatmul.mubr.f32.gmra.mxu0 %v558
        %v783 = vpop.f32.mrf.mxu0
        %v784 = vadd.f32 0.0, %v783
        %v785 = vpop.f32.mrf.mxu0
        %786 = vmatprep.mubr.f32.mxu0 0.0
        %787 = vmatmul.mubr.f32.gmra.mxu0 %v561
        %v788 = vpop.f32.mrf.mxu0
        %v789 = vadd.f32 0.0, %v788
        %v790 = vpop.f32.mrf.mxu0
        %791 = vdwg.mxu0
        %v793 = vsel %vm223, %v400, 0
        %v796 = vsel %vm223, %v401, 0
        %v799 = vsel %vm223, %v402, 0
        %v802 = vsel %vm223, %v403, 0
        %v805 = vsel %vm223, %v404, 0
        %v808 = vsel %vm223, %v405, 0
        %v811 = vsel %vm223, %v406, 0
        %v814 = vsel %vm223, %v407, 0
        %v817 = vsel %vm223, %v408, 0
        %v820 = vsel %vm223, %v409, 0
        %v823 = vsel %vm223, %v410, 0
        %v826 = vsel %vm223, %v411, 0
        %v829 = vsel %vm223, %v412, 0
        %v832 = vsel %vm223, %v413, 0
        %v835 = vsel %vm223, %v414, 0
        %v838 = vsel %vm223, %v415, 0
        %v841 = vsel %vm223, %v416, 0
        %v844 = vsel %vm223, %v417, 0
        %v847 = vsel %vm223, %v418, 0
        %v850 = vsel %vm223, %v419, 0
        %v853 = vsel %vm223, %v420, 0
        %v856 = vsel %vm223, %v421, 0
        %v859 = vsel %vm223, %v422, 0
        %v862 = vsel %vm223, %v423, 0
        %v865 = vsel %vm223, %v424, 0
        %v868 = vsel %vm223, %v425, 0
        %v871 = vsel %vm223, %v426, 0
        %v874 = vsel %vm223, %v427, 0
        %v877 = vsel %vm223, %v428, 0
        %v880 = vsel %vm223, %v429, 0
        %v883 = vsel %vm223, %v430, 0
        %v886 = vsel %vm223, %v431, 0
        %v889 = vsel %vm563, %v432, 0
        %891 = vmatprep.subr.mxu0 0.0
        %892 = vmatpush1.msra.mxu0 0.0
        %893 = vmatprep.subr.mxu0 0.0
        %894 = vmatpush1.msra.mxu0 0.0
        %895 = vmatprep.subr.mxu0 0.0
        %896 = vmatpush1.msra.mxu0 0.0
        %897 = vmatprep.subr.mxu0 0.0
        %898 = vmatpush1.msra.mxu0 0.0
        %899 = vmatprep.subr.mxu0 0.0
        %900 = vmatpush1.msra.mxu0 0.0
        %901 = vmatprep.subr.mxu0 0.0
        %902 = vmatpush1.msra.mxu0 0.0
        %903 = vmatprep.subr.mxu0 0.0
        %904 = vmatpush1.msra.mxu0 0.0
        %905 = vmatprep.subr.mxu0 0.0
        %906 = vmatpush1.msra.mxu0 0.0
        %907 = vmatprep.subr.mxu0 0.0
        %908 = vmatpush1.msra.mxu0 0.0
        %909 = vmatprep.subr.mxu0 0.0
        %910 = vmatpush1.msra.mxu0 0.0
        %911 = vmatprep.subr.mxu0 0.0
        %912 = vmatpush1.msra.mxu0 0.0
        %913 = vmatprep.subr.mxu0 0.0
        %914 = vmatpush1.msra.mxu0 0.0
        %915 = vmatprep.subr.mxu0 0.0
        %916 = vmatpush1.msra.mxu0 0.0
        %917 = vmatprep.subr.mxu0 0.0
        %918 = vmatpush1.msra.mxu0 0.0
        %919 = vmatprep.subr.mxu0 0.0
        %920 = vmatpush1.msra.mxu0 0.0
        %921 = vmatprep.subr.mxu0 0.0
        %922 = vmatpush1.msra.mxu0 %v889
        %923 = vmatprep.subr.mxu0 0.0
        %924 = vmatpush2.msra.mxu0 0.0
        %925 = vmatprep.subr.mxu0 0.0
        %926 = vmatpush2.msra.mxu0 0.0
        %927 = vmatprep.subr.mxu0 0.0
        %928 = vmatpush2.msra.mxu0 0.0
        %929 = vmatprep.subr.mxu0 0.0
        %930 = vmatpush2.msra.mxu0 0.0
        %931 = vmatprep.subr.mxu0 0.0
        %932 = vmatpush2.msra.mxu0 0.0
        %933 = vmatprep.subr.mxu0 0.0
        %934 = vmatpush2.msra.mxu0 0.0
        %935 = vmatprep.subr.mxu0 0.0
        %936 = vmatpush2.msra.mxu0 0.0
        %937 = vmatprep.subr.mxu0 0.0
        %938 = vmatpush2.msra.mxu0 0.0
        %939 = vmatprep.subr.mxu0 0.0
        %940 = vmatpush2.msra.mxu0 0.0
        %941 = vmatprep.subr.mxu0 0.0
        %942 = vmatpush2.msra.mxu0 0.0
        %943 = vmatprep.subr.mxu0 0.0
        %944 = vmatpush2.msra.mxu0 0.0
        %945 = vmatprep.subr.mxu0 0.0
        %946 = vmatpush2.msra.mxu0 0.0
        %947 = vmatprep.subr.mxu0 0.0
        %948 = vmatpush2.msra.mxu0 0.0
        %949 = vmatprep.subr.mxu0 0.0
        %950 = vmatpush2.msra.mxu0 0.0
        %951 = vmatprep.subr.mxu0 0.0
        %952 = vmatpush2.msra.mxu0 0.0
        %953 = vmatprep.subr.mxu0 0.0
        %954 = vmatpush2.msra.mxu0 0.0
        %955 = vmatprep.mubr.f32.mxu0 0.0
        %956 = vmatmul.mubr.f32.gmra.mxu0 %v793
        %v957 = vpop.f32.mrf.mxu0
        %v958 = vadd.f32 %v634, %v957
        %v959 = vpop.f32.mrf.mxu0
        %960 = vmatprep.mubr.f32.mxu0 0.0
        %961 = vmatmul.mubr.f32.gmra.mxu0 %v796
        %v962 = vpop.f32.mrf.mxu0
        %v963 = vadd.f32 %v639, %v962
        %v964 = vpop.f32.mrf.mxu0
        %965 = vmatprep.mubr.f32.mxu0 0.0
        %966 = vmatmul.mubr.f32.gmra.mxu0 %v799
        %v967 = vpop.f32.mrf.mxu0
        %v968 = vadd.f32 %v644, %v967
        %v969 = vpop.f32.mrf.mxu0
        %970 = vmatprep.mubr.f32.mxu0 0.0
        %971 = vmatmul.mubr.f32.gmra.mxu0 %v802
        %v972 = vpop.f32.mrf.mxu0
        %v973 = vadd.f32 %v649, %v972
        %v974 = vpop.f32.mrf.mxu0
        %975 = vmatprep.mubr.f32.mxu0 0.0
        %976 = vmatmul.mubr.f32.gmra.mxu0 %v805
        %v977 = vpop.f32.mrf.mxu0
        %v978 = vadd.f32 %v654, %v977
        %v979 = vpop.f32.mrf.mxu0
        %980 = vmatprep.mubr.f32.mxu0 0.0
        %981 = vmatmul.mubr.f32.gmra.mxu0 %v808
        %v982 = vpop.f32.mrf.mxu0
        %v983 = vadd.f32 %v659, %v982
        %v984 = vpop.f32.mrf.mxu0
        %985 = vmatprep.mubr.f32.mxu0 0.0
        %986 = vmatmul.mubr.f32.gmra.mxu0 %v811
        %v987 = vpop.f32.mrf.mxu0
        %v988 = vadd.f32 %v664, %v987
        %v989 = vpop.f32.mrf.mxu0
        %990 = vmatprep.mubr.f32.mxu0 0.0
        %991 = vmatmul.mubr.f32.gmra.mxu0 %v814
        %v992 = vpop.f32.mrf.mxu0
        %v993 = vadd.f32 %v669, %v992
        %v994 = vpop.f32.mrf.mxu0
        %995 = vmatprep.mubr.f32.mxu0 0.0
        %996 = vmatmul.mubr.f32.gmra.mxu0 %v817
        %v997 = vpop.f32.mrf.mxu0
        %v998 = vadd.f32 %v674, %v997
        %v999 = vpop.f32.mrf.mxu0
        %1000 = vmatprep.mubr.f32.mxu0 0.0
        %1001 = vmatmul.mubr.f32.gmra.mxu0 %v820
        %v1002 = vpop.f32.mrf.mxu0
        %v1003 = vadd.f32 %v679, %v1002
        %v1004 = vpop.f32.mrf.mxu0
        %1005 = vmatprep.mubr.f32.mxu0 0.0
        %1006 = vmatmul.mubr.f32.gmra.mxu0 %v823
        %v1007 = vpop.f32.mrf.mxu0
        %v1008 = vadd.f32 %v684, %v1007
        %v1009 = vpop.f32.mrf.mxu0
        %1010 = vmatprep.mubr.f32.mxu0 0.0
        %1011 = vmatmul.mubr.f32.gmra.mxu0 %v826
        %v1012 = vpop.f32.mrf.mxu0
        %v1013 = vadd.f32 %v689, %v1012
        %v1014 = vpop.f32.mrf.mxu0
        %1015 = vmatprep.mubr.f32.mxu0 0.0
        %1016 = vmatmul.mubr.f32.gmra.mxu0 %v829
        %v1017 = vpop.f32.mrf.mxu0
        %v1018 = vadd.f32 %v694, %v1017
        %v1019 = vpop.f32.mrf.mxu0
        %1020 = vmatprep.mubr.f32.mxu0 0.0
        %1021 = vmatmul.mubr.f32.gmra.mxu0 %v832
        %v1022 = vpop.f32.mrf.mxu0
        %v1023 = vadd.f32 %v699, %v1022
        %v1024 = vpop.f32.mrf.mxu0
        %1025 = vmatprep.mubr.f32.mxu0 0.0
        %1026 = vmatmul.mubr.f32.gmra.mxu0 %v835
        %v1027 = vpop.f32.mrf.mxu0
        %v1028 = vadd.f32 %v704, %v1027
        %v1029 = vpop.f32.mrf.mxu0
        %1030 = vmatprep.mubr.f32.mxu0 0.0
        %1031 = vmatmul.mubr.f32.gmra.mxu0 %v838
        %v1032 = vpop.f32.mrf.mxu0
        %v1033 = vadd.f32 %v709, %v1032
        %v1034 = vpop.f32.mrf.mxu0
        %1035 = vmatprep.mubr.f32.mxu0 0.0
        %1036 = vmatmul.mubr.f32.gmra.mxu0 %v841
        %v1037 = vpop.f32.mrf.mxu0
        %v1038 = vadd.f32 %v714, %v1037
        %v1039 = vpop.f32.mrf.mxu0
        %1040 = vmatprep.mubr.f32.mxu0 0.0
        %1041 = vmatmul.mubr.f32.gmra.mxu0 %v844
        %v1042 = vpop.f32.mrf.mxu0
        %v1043 = vadd.f32 %v719, %v1042
        %v1044 = vpop.f32.mrf.mxu0
        %1045 = vmatprep.mubr.f32.mxu0 0.0
        %1046 = vmatmul.mubr.f32.gmra.mxu0 %v847
        %v1047 = vpop.f32.mrf.mxu0
        %v1048 = vadd.f32 %v724, %v1047
        %v1049 = vpop.f32.mrf.mxu0
        %1050 = vmatprep.mubr.f32.mxu0 0.0
        %1051 = vmatmul.mubr.f32.gmra.mxu0 %v850
        %v1052 = vpop.f32.mrf.mxu0
        %v1053 = vadd.f32 %v729, %v1052
        %v1054 = vpop.f32.mrf.mxu0
        %1055 = vmatprep.mubr.f32.mxu0 0.0
        %1056 = vmatmul.mubr.f32.gmra.mxu0 %v853
        %v1057 = vpop.f32.mrf.mxu0
        %v1058 = vadd.f32 %v734, %v1057
        %v1059 = vpop.f32.mrf.mxu0
        %1060 = vmatprep.mubr.f32.mxu0 0.0
        %1061 = vmatmul.mubr.f32.gmra.mxu0 %v856
        %v1062 = vpop.f32.mrf.mxu0
        %v1063 = vadd.f32 %v739, %v1062
        %v1064 = vpop.f32.mrf.mxu0
        %1065 = vmatprep.mubr.f32.mxu0 0.0
        %1066 = vmatmul.mubr.f32.gmra.mxu0 %v859
        %v1067 = vpop.f32.mrf.mxu0
        %v1068 = vadd.f32 %v744, %v1067
        %v1069 = vpop.f32.mrf.mxu0
        %1070 = vmatprep.mubr.f32.mxu0 0.0
        %1071 = vmatmul.mubr.f32.gmra.mxu0 %v862
        %v1072 = vpop.f32.mrf.mxu0
        %v1073 = vadd.f32 %v749, %v1072
        %v1074 = vpop.f32.mrf.mxu0
        %1075 = vmatprep.mubr.f32.mxu0 0.0
        %1076 = vmatmul.mubr.f32.gmra.mxu0 %v865
        %v1077 = vpop.f32.mrf.mxu0
        %v1078 = vadd.f32 %v754, %v1077
        %v1079 = vpop.f32.mrf.mxu0
        %1080 = vmatprep.mubr.f32.mxu0 0.0
        %1081 = vmatmul.mubr.f32.gmra.mxu0 %v868
        %v1082 = vpop.f32.mrf.mxu0
        %v1083 = vadd.f32 %v759, %v1082
        %v1084 = vpop.f32.mrf.mxu0
        %1085 = vmatprep.mubr.f32.mxu0 0.0
        %1086 = vmatmul.mubr.f32.gmra.mxu0 %v871
        %v1087 = vpop.f32.mrf.mxu0
        %v1088 = vadd.f32 %v764, %v1087
        %v1089 = vpop.f32.mrf.mxu0
        %1090 = vmatprep.mubr.f32.mxu0 0.0
        %1091 = vmatmul.mubr.f32.gmra.mxu0 %v874
        %v1092 = vpop.f32.mrf.mxu0
        %v1093 = vadd.f32 %v769, %v1092
        %v1094 = vpop.f32.mrf.mxu0
        %1095 = vmatprep.mubr.f32.mxu0 0.0
        %1096 = vmatmul.mubr.f32.gmra.mxu0 %v877
        %v1097 = vpop.f32.mrf.mxu0
        %v1098 = vadd.f32 %v774, %v1097
        %v1099 = vpop.f32.mrf.mxu0
        %1100 = vmatprep.mubr.f32.mxu0 0.0
        %1101 = vmatmul.mubr.f32.gmra.mxu0 %v880
        %v1102 = vpop.f32.mrf.mxu0
        %v1103 = vadd.f32 %v779, %v1102
        %v1104 = vpop.f32.mrf.mxu0
        %1105 = vmatprep.mubr.f32.mxu0 0.0
        %1106 = vmatmul.mubr.f32.gmra.mxu0 %v883
        %v1107 = vpop.f32.mrf.mxu0
        %v1108 = vadd.f32 %v784, %v1107
        %v1109 = vpop.f32.mrf.mxu0
        %1110 = vmatprep.mubr.f32.mxu0 0.0
        %1111 = vmatmul.mubr.f32.gmra.mxu0 %v886
        %v1112 = vpop.f32.mrf.mxu0
        %v1113 = vadd.f32 %v789, %v1112
        %v1114 = vpop.f32.mrf.mxu0
        %1115 = vdwg.mxu0
        %v1116 = vld [vmem:[#allocation2 + $0x2] sm:$0xff]
        %v1117 = vld [vmem:[#allocation2 + $0xa] sm:$0xff]
        %v1118 = vld [vmem:[#allocation2 + $0x1a] sm:$0xff]
        %v1119 = vld [vmem:[#allocation2 + $0x22] sm:$0xff]
        %v1120 = vld [vmem:[#allocation2 + $0x32] sm:$0xff]
        %v1121 = vld [vmem:[#allocation2 + $0x3a] sm:$0xff]
        %v1122 = vld [vmem:[#allocation2 + $0x4a] sm:$0xff]
        %v1123 = vld [vmem:[#allocation2 + $0x52] sm:$0xff]
        %v1124 = vld [vmem:[#allocation2 + $0x62] sm:$0xff]
        %v1125 = vld [vmem:[#allocation2 + $0x6a] sm:$0xff]
        %v1126 = vld [vmem:[#allocation2 + $0x7a] sm:$0xff]
        %v1127 = vld [vmem:[#allocation2 + $0x82] sm:$0xff]
        %v1128 = vld [vmem:[#allocation2 + $0x92] sm:$0xff]
        %v1129 = vld [vmem:[#allocation2 + $0x9a] sm:$0xff]
        %v1130 = vld [vmem:[#allocation2 + $0xaa] sm:$0xff]
        %v1131 = vld [vmem:[#allocation2 + $0xb2] sm:$0xff]
        %v1132 = vld [vmem:[#allocation2 + $0xc2] sm:$0xff]
        %v1133 = vld [vmem:[#allocation2 + $0xca] sm:$0xff]
        %v1134 = vld [vmem:[#allocation2 + $0xda] sm:$0xff]
        %v1135 = vld [vmem:[#allocation2 + $0xe2] sm:$0xff]
        %v1136 = vld [vmem:[#allocation2 + $0xf2] sm:$0xff]
        %v1137 = vld [vmem:[#allocation2 + $0xfa] sm:$0xff]
        %v1138 = vld [vmem:[#allocation2 + $0x10a] sm:$0xff]
        %v1139 = vld [vmem:[#allocation2 + $0x112] sm:$0xff]
        %v1140 = vld [vmem:[#allocation2 + $0x122] sm:$0xff]
        %v1141 = vld [vmem:[#allocation2 + $0x12a] sm:$0xff]
        %v1142 = vld [vmem:[#allocation2 + $0x13a] sm:$0xff]
        %v1143 = vld [vmem:[#allocation2 + $0x142] sm:$0xff]
        %v1144 = vld [vmem:[#allocation2 + $0x152] sm:$0xff]
        %v1145 = vld [vmem:[#allocation2 + $0x15a] sm:$0xff]
        %v1146 = vld [vmem:[#allocation2 + $0x16a] sm:$0xff]
        %v1147 = vld [vmem:[#allocation2 + $0x172] sm:$0xff]
        %s1148 = scalar_lea.vmem %s1, 8
        %v1149 = vld [vmem:[%s1148] sm:$0xf]
        %v1151 = vsel %vm223, %v1116, 0
        %v1154 = vsel %vm223, %v1117, 0
        %v1157 = vsel %vm223, %v1118, 0
        %v1160 = vsel %vm223, %v1119, 0
        %v1163 = vsel %vm223, %v1120, 0
        %v1166 = vsel %vm223, %v1121, 0
        %v1169 = vsel %vm223, %v1122, 0
        %v1172 = vsel %vm223, %v1123, 0
        %v1175 = vsel %vm223, %v1124, 0
        %v1178 = vsel %vm223, %v1125, 0
        %v1181 = vsel %vm223, %v1126, 0
        %v1184 = vsel %vm223, %v1127, 0
        %v1187 = vsel %vm223, %v1128, 0
        %v1190 = vsel %vm223, %v1129, 0
        %v1193 = vsel %vm223, %v1130, 0
        %v1196 = vsel %vm223, %v1131, 0
        %v1199 = vsel %vm223, %v1132, 0
        %v1202 = vsel %vm223, %v1133, 0
        %v1205 = vsel %vm223, %v1134, 0
        %v1208 = vsel %vm223, %v1135, 0
        %v1211 = vsel %vm223, %v1136, 0
        %v1214 = vsel %vm223, %v1137, 0
        %v1217 = vsel %vm223, %v1138, 0
        %v1220 = vsel %vm223, %v1139, 0
        %v1223 = vsel %vm223, %v1140, 0
        %v1226 = vsel %vm223, %v1141, 0
        %v1229 = vsel %vm223, %v1142, 0
        %v1232 = vsel %vm223, %v1143, 0
        %v1235 = vsel %vm223, %v1144, 0
        %v1238 = vsel %vm223, %v1145, 0
        %v1241 = vsel %vm223, %v1146, 0
        %v1244 = vsel %vm223, %v1147, 0
        %v1247 = vsel %vm563, %v1149, 0
        %1249 = vmatprep.subr.mxu0 0.0
        %1250 = vmatpush1.msra.mxu0 0.0
        %1251 = vmatprep.subr.mxu0 0.0
        %1252 = vmatpush1.msra.mxu0 0.0
        %1253 = vmatprep.subr.mxu0 0.0
        %1254 = vmatpush1.msra.mxu0 0.0
        %1255 = vmatprep.subr.mxu0 0.0
        %1256 = vmatpush1.msra.mxu0 0.0
        %1257 = vmatprep.subr.mxu0 0.0
        %1258 = vmatpush1.msra.mxu0 0.0
        %1259 = vmatprep.subr.mxu0 0.0
        %1260 = vmatpush1.msra.mxu0 0.0
        %1261 = vmatprep.subr.mxu0 0.0
        %1262 = vmatpush1.msra.mxu0 0.0
        %1263 = vmatprep.subr.mxu0 0.0
        %1264 = vmatpush1.msra.mxu0 0.0
        %1265 = vmatprep.subr.mxu0 0.0
        %1266 = vmatpush1.msra.mxu0 0.0
        %1267 = vmatprep.subr.mxu0 0.0
        %1268 = vmatpush1.msra.mxu0 0.0
        %1269 = vmatprep.subr.mxu0 0.0
        %1270 = vmatpush1.msra.mxu0 0.0
        %1271 = vmatprep.subr.mxu0 0.0
        %1272 = vmatpush1.msra.mxu0 0.0
        %1273 = vmatprep.subr.mxu0 0.0
        %1274 = vmatpush1.msra.mxu0 0.0
        %1275 = vmatprep.subr.mxu0 0.0
        %1276 = vmatpush1.msra.mxu0 0.0
        %1277 = vmatprep.subr.mxu0 0.0
        %1278 = vmatpush1.msra.mxu0 0.0
        %1279 = vmatprep.subr.mxu0 0.0
        %1280 = vmatpush1.msra.mxu0 %v1247
        %1281 = vmatprep.subr.mxu0 0.0
        %1282 = vmatpush2.msra.mxu0 0.0
        %1283 = vmatprep.subr.mxu0 0.0
        %1284 = vmatpush2.msra.mxu0 0.0
        %1285 = vmatprep.subr.mxu0 0.0
        %1286 = vmatpush2.msra.mxu0 0.0
        %1287 = vmatprep.subr.mxu0 0.0
        %1288 = vmatpush2.msra.mxu0 0.0
        %1289 = vmatprep.subr.mxu0 0.0
        %1290 = vmatpush2.msra.mxu0 0.0
        %1291 = vmatprep.subr.mxu0 0.0
        %1292 = vmatpush2.msra.mxu0 0.0
        %1293 = vmatprep.subr.mxu0 0.0
        %1294 = vmatpush2.msra.mxu0 0.0
        %1295 = vmatprep.subr.mxu0 0.0
        %1296 = vmatpush2.msra.mxu0 0.0
        %1297 = vmatprep.subr.mxu0 0.0
        %1298 = vmatpush2.msra.mxu0 0.0
        %1299 = vmatprep.subr.mxu0 0.0
        %1300 = vmatpush2.msra.mxu0 0.0
        %1301 = vmatprep.subr.mxu0 0.0
        %1302 = vmatpush2.msra.mxu0 0.0
        %1303 = vmatprep.subr.mxu0 0.0
        %1304 = vmatpush2.msra.mxu0 0.0
        %1305 = vmatprep.subr.mxu0 0.0
        %1306 = vmatpush2.msra.mxu0 0.0
        %1307 = vmatprep.subr.mxu0 0.0
        %1308 = vmatpush2.msra.mxu0 0.0
        %1309 = vmatprep.subr.mxu0 0.0
        %1310 = vmatpush2.msra.mxu0 0.0
        %1311 = vmatprep.subr.mxu0 0.0
        %1312 = vmatpush2.msra.mxu0 0.0
        %1313 = vmatprep.mubr.f32.mxu0 0.0
        %1314 = vmatmul.mubr.f32.gmra.mxu0 %v1151
        %v1315 = vpop.f32.mrf.mxu0
        %v1316 = vadd.f32 0.0, %v1315
        %v1317 = vpop.f32.mrf.mxu0
        %1318 = vmatprep.mubr.f32.mxu0 0.0
        %1319 = vmatmul.mubr.f32.gmra.mxu0 %v1154
        %v1320 = vpop.f32.mrf.mxu0
        %v1321 = vadd.f32 0.0, %v1320
        %v1322 = vpop.f32.mrf.mxu0
        %1323 = vmatprep.mubr.f32.mxu0 0.0
        %1324 = vmatmul.mubr.f32.gmra.mxu0 %v1157
        %v1325 = vpop.f32.mrf.mxu0
        %v1326 = vadd.f32 0.0, %v1325
        %v1327 = vpop.f32.mrf.mxu0
        %1328 = vmatprep.mubr.f32.mxu0 0.0
        %1329 = vmatmul.mubr.f32.gmra.mxu0 %v1160
        %v1330 = vpop.f32.mrf.mxu0
        %v1331 = vadd.f32 0.0, %v1330
        %v1332 = vpop.f32.mrf.mxu0
        %1333 = vmatprep.mubr.f32.mxu0 0.0
        %1334 = vmatmul.mubr.f32.gmra.mxu0 %v1163
        %v1335 = vpop.f32.mrf.mxu0
        %v1336 = vadd.f32 0.0, %v1335
        %v1337 = vpop.f32.mrf.mxu0
        %1338 = vmatprep.mubr.f32.mxu0 0.0
        %1339 = vmatmul.mubr.f32.gmra.mxu0 %v1166
        %v1340 = vpop.f32.mrf.mxu0
        %v1341 = vadd.f32 0.0, %v1340
        %v1342 = vpop.f32.mrf.mxu0
        %1343 = vmatprep.mubr.f32.mxu0 0.0
        %1344 = vmatmul.mubr.f32.gmra.mxu0 %v1169
        %v1345 = vpop.f32.mrf.mxu0
        %v1346 = vadd.f32 0.0, %v1345
        %v1347 = vpop.f32.mrf.mxu0
        %1348 = vmatprep.mubr.f32.mxu0 0.0
        %1349 = vmatmul.mubr.f32.gmra.mxu0 %v1172
        %v1350 = vpop.f32.mrf.mxu0
        %v1351 = vadd.f32 0.0, %v1350
        %v1352 = vpop.f32.mrf.mxu0
        %1353 = vmatprep.mubr.f32.mxu0 0.0
        %1354 = vmatmul.mubr.f32.gmra.mxu0 %v1175
        %v1355 = vpop.f32.mrf.mxu0
        %v1356 = vadd.f32 0.0, %v1355
        %v1357 = vpop.f32.mrf.mxu0
        %1358 = vmatprep.mubr.f32.mxu0 0.0
        %1359 = vmatmul.mubr.f32.gmra.mxu0 %v1178
        %v1360 = vpop.f32.mrf.mxu0
        %v1361 = vadd.f32 0.0, %v1360
        %v1362 = vpop.f32.mrf.mxu0
        %1363 = vmatprep.mubr.f32.mxu0 0.0
        %1364 = vmatmul.mubr.f32.gmra.mxu0 %v1181
        %v1365 = vpop.f32.mrf.mxu0
        %v1366 = vadd.f32 0.0, %v1365
        %v1367 = vpop.f32.mrf.mxu0
        %1368 = vmatprep.mubr.f32.mxu0 0.0
        %1369 = vmatmul.mubr.f32.gmra.mxu0 %v1184
        %v1370 = vpop.f32.mrf.mxu0
        %v1371 = vadd.f32 0.0, %v1370
        %v1372 = vpop.f32.mrf.mxu0
        %1373 = vmatprep.mubr.f32.mxu0 0.0
        %1374 = vmatmul.mubr.f32.gmra.mxu0 %v1187
        %v1375 = vpop.f32.mrf.mxu0
        %v1376 = vadd.f32 0.0, %v1375
        %v1377 = vpop.f32.mrf.mxu0
        %1378 = vmatprep.mubr.f32.mxu0 0.0
        %1379 = vmatmul.mubr.f32.gmra.mxu0 %v1190
        %v1380 = vpop.f32.mrf.mxu0
        %v1381 = vadd.f32 0.0, %v1380
        %v1382 = vpop.f32.mrf.mxu0
        %1383 = vmatprep.mubr.f32.mxu0 0.0
        %1384 = vmatmul.mubr.f32.gmra.mxu0 %v1193
        %v1385 = vpop.f32.mrf.mxu0
        %v1386 = vadd.f32 0.0, %v1385
        %v1387 = vpop.f32.mrf.mxu0
        %1388 = vmatprep.mubr.f32.mxu0 0.0
        %1389 = vmatmul.mubr.f32.gmra.mxu0 %v1196
        %v1390 = vpop.f32.mrf.mxu0
        %v1391 = vadd.f32 0.0, %v1390
        %v1392 = vpop.f32.mrf.mxu0
        %1393 = vmatprep.mubr.f32.mxu0 0.0
        %1394 = vmatmul.mubr.f32.gmra.mxu0 %v1199
        %v1395 = vpop.f32.mrf.mxu0
        %v1396 = vadd.f32 0.0, %v1395
        %v1397 = vpop.f32.mrf.mxu0
        %1398 = vmatprep.mubr.f32.mxu0 0.0
        %1399 = vmatmul.mubr.f32.gmra.mxu0 %v1202
        %v1400 = vpop.f32.mrf.mxu0
        %v1401 = vadd.f32 0.0, %v1400
        %v1402 = vpop.f32.mrf.mxu0
        %1403 = vmatprep.mubr.f32.mxu0 0.0
        %1404 = vmatmul.mubr.f32.gmra.mxu0 %v1205
        %v1405 = vpop.f32.mrf.mxu0
        %v1406 = vadd.f32 0.0, %v1405
        %v1407 = vpop.f32.mrf.mxu0
        %1408 = vmatprep.mubr.f32.mxu0 0.0
        %1409 = vmatmul.mubr.f32.gmra.mxu0 %v1208
        %v1410 = vpop.f32.mrf.mxu0
        %v1411 = vadd.f32 0.0, %v1410
        %v1412 = vpop.f32.mrf.mxu0
        %1413 = vmatprep.mubr.f32.mxu0 0.0
        %1414 = vmatmul.mubr.f32.gmra.mxu0 %v1211
        %v1415 = vpop.f32.mrf.mxu0
        %v1416 = vadd.f32 0.0, %v1415
        %v1417 = vpop.f32.mrf.mxu0
        %1418 = vmatprep.mubr.f32.mxu0 0.0
        %1419 = vmatmul.mubr.f32.gmra.mxu0 %v1214
        %v1420 = vpop.f32.mrf.mxu0
        %v1421 = vadd.f32 0.0, %v1420
        %v1422 = vpop.f32.mrf.mxu0
        %1423 = vmatprep.mubr.f32.mxu0 0.0
        %1424 = vmatmul.mubr.f32.gmra.mxu0 %v1217
        %v1425 = vpop.f32.mrf.mxu0
        %v1426 = vadd.f32 0.0, %v1425
        %v1427 = vpop.f32.mrf.mxu0
        %1428 = vmatprep.mubr.f32.mxu0 0.0
        %1429 = vmatmul.mubr.f32.gmra.mxu0 %v1220
        %v1430 = vpop.f32.mrf.mxu0
        %v1431 = vadd.f32 0.0, %v1430
        %v1432 = vpop.f32.mrf.mxu0
        %1433 = vmatprep.mubr.f32.mxu0 0.0
        %1434 = vmatmul.mubr.f32.gmra.mxu0 %v1223
        %v1435 = vpop.f32.mrf.mxu0
        %v1436 = vadd.f32 0.0, %v1435
        %v1437 = vpop.f32.mrf.mxu0
        %1438 = vmatprep.mubr.f32.mxu0 0.0
        %1439 = vmatmul.mubr.f32.gmra.mxu0 %v1226
        %v1440 = vpop.f32.mrf.mxu0
        %v1441 = vadd.f32 0.0, %v1440
        %v1442 = vpop.f32.mrf.mxu0
        %1443 = vmatprep.mubr.f32.mxu0 0.0
        %1444 = vmatmul.mubr.f32.gmra.mxu0 %v1229
        %v1445 = vpop.f32.mrf.mxu0
        %v1446 = vadd.f32 0.0, %v1445
        %v1447 = vpop.f32.mrf.mxu0
        %1448 = vmatprep.mubr.f32.mxu0 0.0
        %1449 = vmatmul.mubr.f32.gmra.mxu0 %v1232
        %v1450 = vpop.f32.mrf.mxu0
        %v1451 = vadd.f32 0.0, %v1450
        %v1452 = vpop.f32.mrf.mxu0
        %1453 = vmatprep.mubr.f32.mxu0 0.0
        %1454 = vmatmul.mubr.f32.gmra.mxu0 %v1235
        %v1455 = vpop.f32.mrf.mxu0
        %v1456 = vadd.f32 0.0, %v1455
        %v1457 = vpop.f32.mrf.mxu0
        %1458 = vmatprep.mubr.f32.mxu0 0.0
        %1459 = vmatmul.mubr.f32.gmra.mxu0 %v1238
        %v1460 = vpop.f32.mrf.mxu0
        %v1461 = vadd.f32 0.0, %v1460
        %v1462 = vpop.f32.mrf.mxu0
        %1463 = vmatprep.mubr.f32.mxu0 0.0
        %1464 = vmatmul.mubr.f32.gmra.mxu0 %v1241
        %v1465 = vpop.f32.mrf.mxu0
        %v1466 = vadd.f32 0.0, %v1465
        %v1467 = vpop.f32.mrf.mxu0
        %1468 = vmatprep.mubr.f32.mxu0 0.0
        %1469 = vmatmul.mubr.f32.gmra.mxu0 %v1244
        %v1470 = vpop.f32.mrf.mxu0
        %v1471 = vadd.f32 0.0, %v1470
        %v1472 = vpop.f32.mrf.mxu0
        %1473 = vdwg.mxu0
        %v1474 = vadd.f32 %v958, %v1316
        %v1475 = vadd.f32 %v963, %v1321
        %v1476 = vadd.f32 %v968, %v1326
        %v1477 = vadd.f32 %v973, %v1331
        %v1478 = vadd.f32 %v978, %v1336
        %v1479 = vadd.f32 %v983, %v1341
        %v1480 = vadd.f32 %v988, %v1346
        %v1481 = vadd.f32 %v993, %v1351
        %v1482 = vadd.f32 %v998, %v1356
        %v1483 = vadd.f32 %v1003, %v1361
        %v1484 = vadd.f32 %v1008, %v1366
        %v1485 = vadd.f32 %v1013, %v1371
        %v1486 = vadd.f32 %v1018, %v1376
        %v1487 = vadd.f32 %v1023, %v1381
        %v1488 = vadd.f32 %v1028, %v1386
        %v1489 = vadd.f32 %v1033, %v1391
        %v1490 = vadd.f32 %v1038, %v1396
        %v1491 = vadd.f32 %v1043, %v1401
        %v1492 = vadd.f32 %v1048, %v1406
        %v1493 = vadd.f32 %v1053, %v1411
        %v1494 = vadd.f32 %v1058, %v1416
        %v1495 = vadd.f32 %v1063, %v1421
        %v1496 = vadd.f32 %v1068, %v1426
        %v1497 = vadd.f32 %v1073, %v1431
        %v1498 = vadd.f32 %v1078, %v1436
        %v1499 = vadd.f32 %v1083, %v1441
        %v1500 = vadd.f32 %v1088, %v1446
        %v1501 = vadd.f32 %v1093, %v1451
        %v1502 = vadd.f32 %v1098, %v1456
        %v1503 = vadd.f32 %v1103, %v1461
        %v1504 = vadd.f32 %v1108, %v1466
        %v1505 = vadd.f32 %v1113, %v1471
        %v1506 = vld [vmem:[%s367] sm:$0xff]
        %v1507 = vld [vmem:[%s367 + $0x8] sm:$0xff]
        %v1508 = vld [vmem:[%s367 + $0x18] sm:$0xff]
        %v1509 = vld [vmem:[%s367 + $0x20] sm:$0xff]
        %v1510 = vld [vmem:[%s367 + $0x30] sm:$0xff]
        %v1511 = vld [vmem:[%s367 + $0x38] sm:$0xff]
        %v1512 = vld [vmem:[%s367 + $0x48] sm:$0xff]
        %v1513 = vld [vmem:[%s367 + $0x50] sm:$0xff]
        %v1514 = vld [vmem:[%s367 + $0x60] sm:$0xff]
        %v1515 = vld [vmem:[%s367 + $0x68] sm:$0xff]
        %v1516 = vld [vmem:[%s367 + $0x78] sm:$0xff]
        %v1517 = vld [vmem:[%s367 + $0x80] sm:$0xff]
        %v1518 = vld [vmem:[%s367 + $0x90] sm:$0xff]
        %v1519 = vld [vmem:[%s367 + $0x98] sm:$0xff]
        %v1520 = vld [vmem:[%s367 + $0xa8] sm:$0xff]
        %v1521 = vld [vmem:[%s367 + $0xb0] sm:$0xff]
        %v1522 = vld [vmem:[%s367 + $0xc0] sm:$0xff]
        %v1523 = vld [vmem:[%s367 + $0xc8] sm:$0xff]
        %v1524 = vld [vmem:[%s367 + $0xd8] sm:$0xff]
        %v1525 = vld [vmem:[%s367 + $0xe0] sm:$0xff]
        %v1526 = vld [vmem:[%s367 + $0xf0] sm:$0xff]
        %v1527 = vld [vmem:[%s367 + $0xf8] sm:$0xff]
        %v1528 = vld [vmem:[%s367 + $0x108] sm:$0xff]
        %v1529 = vld [vmem:[%s367 + $0x110] sm:$0xff]
        %v1530 = vld [vmem:[%s367 + $0x120] sm:$0xff]
        %v1531 = vld [vmem:[%s367 + $0x128] sm:$0xff]
        %v1532 = vld [vmem:[%s367 + $0x138] sm:$0xff]
        %v1533 = vld [vmem:[%s367 + $0x140] sm:$0xff]
        %v1534 = vld [vmem:[%s367 + $0x150] sm:$0xff]
        %v1535 = vld [vmem:[%s367 + $0x158] sm:$0xff]
        %v1536 = vld [vmem:[%s367 + $0x168] sm:$0xff]
        %v1537 = vld [vmem:[%s367 + $0x170] sm:$0xff]
        %s1538 = scalar_lea.vmem %s1, 12
        %v1539 = vld [vmem:[%s1538] sm:$0xf]
        %v1541 = vsel %vm223, %v1506, 0
        %v1544 = vsel %vm223, %v1507, 0
        %v1547 = vsel %vm223, %v1508, 0
        %v1550 = vsel %vm223, %v1509, 0
        %v1553 = vsel %vm223, %v1510, 0
        %v1556 = vsel %vm223, %v1511, 0
        %v1559 = vsel %vm223, %v1512, 0
        %v1562 = vsel %vm223, %v1513, 0
        %v1565 = vsel %vm223, %v1514, 0
        %v1568 = vsel %vm223, %v1515, 0
        %v1571 = vsel %vm223, %v1516, 0
        %v1574 = vsel %vm223, %v1517, 0
        %v1577 = vsel %vm223, %v1518, 0
        %v1580 = vsel %vm223, %v1519, 0
        %v1583 = vsel %vm223, %v1520, 0
        %v1586 = vsel %vm223, %v1521, 0
        %v1589 = vsel %vm223, %v1522, 0
        %v1592 = vsel %vm223, %v1523, 0
        %v1595 = vsel %vm223, %v1524, 0
        %v1598 = vsel %vm223, %v1525, 0
        %v1601 = vsel %vm223, %v1526, 0
        %v1604 = vsel %vm223, %v1527, 0
        %v1607 = vsel %vm223, %v1528, 0
        %v1610 = vsel %vm223, %v1529, 0
        %v1613 = vsel %vm223, %v1530, 0
        %v1616 = vsel %vm223, %v1531, 0
        %v1619 = vsel %vm223, %v1532, 0
        %v1622 = vsel %vm223, %v1533, 0
        %v1625 = vsel %vm223, %v1534, 0
        %v1628 = vsel %vm223, %v1535, 0
        %v1631 = vsel %vm223, %v1536, 0
        %v1634 = vsel %vm223, %v1537, 0
        %v1637 = vsel %vm563, %v1539, 0
        %1639 = vmatprep.subr.mxu0 0.0
        %1640 = vmatpush1.msra.mxu0 0.0
        %1641 = vmatprep.subr.mxu0 0.0
        %1642 = vmatpush1.msra.mxu0 0.0
        %1643 = vmatprep.subr.mxu0 0.0
        %1644 = vmatpush1.msra.mxu0 0.0
        %1645 = vmatprep.subr.mxu0 0.0
        %1646 = vmatpush1.msra.mxu0 0.0
        %1647 = vmatprep.subr.mxu0 0.0
        %1648 = vmatpush1.msra.mxu0 0.0
        %1649 = vmatprep.subr.mxu0 0.0
        %1650 = vmatpush1.msra.mxu0 0.0
        %1651 = vmatprep.subr.mxu0 0.0
        %1652 = vmatpush1.msra.mxu0 0.0
        %1653 = vmatprep.subr.mxu0 0.0
        %1654 = vmatpush1.msra.mxu0 0.0
        %1655 = vmatprep.subr.mxu0 0.0
        %1656 = vmatpush1.msra.mxu0 0.0
        %1657 = vmatprep.subr.mxu0 0.0
        %1658 = vmatpush1.msra.mxu0 0.0
        %1659 = vmatprep.subr.mxu0 0.0
        %1660 = vmatpush1.msra.mxu0 0.0
        %1661 = vmatprep.subr.mxu0 0.0
        %1662 = vmatpush1.msra.mxu0 0.0
        %1663 = vmatprep.subr.mxu0 0.0
        %1664 = vmatpush1.msra.mxu0 0.0
        %1665 = vmatprep.subr.mxu0 0.0
        %1666 = vmatpush1.msra.mxu0 0.0
        %1667 = vmatprep.subr.mxu0 0.0
        %1668 = vmatpush1.msra.mxu0 0.0
        %1669 = vmatprep.subr.mxu0 0.0
        %1670 = vmatpush1.msra.mxu0 %v1637
        %1671 = vmatprep.subr.mxu0 0.0
        %1672 = vmatpush2.msra.mxu0 0.0
        %1673 = vmatprep.subr.mxu0 0.0
        %1674 = vmatpush2.msra.mxu0 0.0
        %1675 = vmatprep.subr.mxu0 0.0
        %1676 = vmatpush2.msra.mxu0 0.0
        %1677 = vmatprep.subr.mxu0 0.0
        %1678 = vmatpush2.msra.mxu0 0.0
        %1679 = vmatprep.subr.mxu0 0.0
        %1680 = vmatpush2.msra.mxu0 0.0
        %1681 = vmatprep.subr.mxu0 0.0
        %1682 = vmatpush2.msra.mxu0 0.0
        %1683 = vmatprep.subr.mxu0 0.0
        %1684 = vmatpush2.msra.mxu0 0.0
        %1685 = vmatprep.subr.mxu0 0.0
        %1686 = vmatpush2.msra.mxu0 0.0
        %1687 = vmatprep.subr.mxu0 0.0
        %1688 = vmatpush2.msra.mxu0 0.0
        %1689 = vmatprep.subr.mxu0 0.0
        %1690 = vmatpush2.msra.mxu0 0.0
        %1691 = vmatprep.subr.mxu0 0.0
        %1692 = vmatpush2.msra.mxu0 0.0
        %1693 = vmatprep.subr.mxu0 0.0
        %1694 = vmatpush2.msra.mxu0 0.0
        %1695 = vmatprep.subr.mxu0 0.0
        %1696 = vmatpush2.msra.mxu0 0.0
        %1697 = vmatprep.subr.mxu0 0.0
        %1698 = vmatpush2.msra.mxu0 0.0
        %1699 = vmatprep.subr.mxu0 0.0
        %1700 = vmatpush2.msra.mxu0 0.0
        %1701 = vmatprep.subr.mxu0 0.0
        %1702 = vmatpush2.msra.mxu0 0.0
        %1703 = vmatprep.mubr.f32.mxu0 0.0
        %1704 = vmatmul.mubr.f32.gmra.mxu0 %v1541
        %v1705 = vpop.f32.mrf.mxu0
        %v1706 = vadd.f32 0.0, %v1705
        %v1707 = vpop.f32.mrf.mxu0
        %1708 = vmatprep.mubr.f32.mxu0 0.0
        %1709 = vmatmul.mubr.f32.gmra.mxu0 %v1544
        %v1710 = vpop.f32.mrf.mxu0
        %v1711 = vadd.f32 0.0, %v1710
        %v1712 = vpop.f32.mrf.mxu0
        %1713 = vmatprep.mubr.f32.mxu0 0.0
        %1714 = vmatmul.mubr.f32.gmra.mxu0 %v1547
        %v1715 = vpop.f32.mrf.mxu0
        %v1716 = vadd.f32 0.0, %v1715
        %v1717 = vpop.f32.mrf.mxu0
        %1718 = vmatprep.mubr.f32.mxu0 0.0
        %1719 = vmatmul.mubr.f32.gmra.mxu0 %v1550
        %v1720 = vpop.f32.mrf.mxu0
        %v1721 = vadd.f32 0.0, %v1720
        %v1722 = vpop.f32.mrf.mxu0
        %1723 = vmatprep.mubr.f32.mxu0 0.0
        %1724 = vmatmul.mubr.f32.gmra.mxu0 %v1553
        %v1725 = vpop.f32.mrf.mxu0
        %v1726 = vadd.f32 0.0, %v1725
        %v1727 = vpop.f32.mrf.mxu0
        %1728 = vmatprep.mubr.f32.mxu0 0.0
        %1729 = vmatmul.mubr.f32.gmra.mxu0 %v1556
        %v1730 = vpop.f32.mrf.mxu0
        %v1731 = vadd.f32 0.0, %v1730
        %v1732 = vpop.f32.mrf.mxu0
        %1733 = vmatprep.mubr.f32.mxu0 0.0
        %1734 = vmatmul.mubr.f32.gmra.mxu0 %v1559
        %v1735 = vpop.f32.mrf.mxu0
        %v1736 = vadd.f32 0.0, %v1735
        %v1737 = vpop.f32.mrf.mxu0
        %1738 = vmatprep.mubr.f32.mxu0 0.0
        %1739 = vmatmul.mubr.f32.gmra.mxu0 %v1562
        %v1740 = vpop.f32.mrf.mxu0
        %v1741 = vadd.f32 0.0, %v1740
        %v1742 = vpop.f32.mrf.mxu0
        %1743 = vmatprep.mubr.f32.mxu0 0.0
        %1744 = vmatmul.mubr.f32.gmra.mxu0 %v1565
        %v1745 = vpop.f32.mrf.mxu0
        %v1746 = vadd.f32 0.0, %v1745
        %v1747 = vpop.f32.mrf.mxu0
        %1748 = vmatprep.mubr.f32.mxu0 0.0
        %1749 = vmatmul.mubr.f32.gmra.mxu0 %v1568
        %v1750 = vpop.f32.mrf.mxu0
        %v1751 = vadd.f32 0.0, %v1750
        %v1752 = vpop.f32.mrf.mxu0
        %1753 = vmatprep.mubr.f32.mxu0 0.0
        %1754 = vmatmul.mubr.f32.gmra.mxu0 %v1571
        %v1755 = vpop.f32.mrf.mxu0
        %v1756 = vadd.f32 0.0, %v1755
        %v1757 = vpop.f32.mrf.mxu0
        %1758 = vmatprep.mubr.f32.mxu0 0.0
        %1759 = vmatmul.mubr.f32.gmra.mxu0 %v1574
        %v1760 = vpop.f32.mrf.mxu0
        %v1761 = vadd.f32 0.0, %v1760
        %v1762 = vpop.f32.mrf.mxu0
        %1763 = vmatprep.mubr.f32.mxu0 0.0
        %1764 = vmatmul.mubr.f32.gmra.mxu0 %v1577
        %v1765 = vpop.f32.mrf.mxu0
        %v1766 = vadd.f32 0.0, %v1765
        %v1767 = vpop.f32.mrf.mxu0
        %1768 = vmatprep.mubr.f32.mxu0 0.0
        %1769 = vmatmul.mubr.f32.gmra.mxu0 %v1580
        %v1770 = vpop.f32.mrf.mxu0
        %v1771 = vadd.f32 0.0, %v1770
        %v1772 = vpop.f32.mrf.mxu0
        %1773 = vmatprep.mubr.f32.mxu0 0.0
        %1774 = vmatmul.mubr.f32.gmra.mxu0 %v1583
        %v1775 = vpop.f32.mrf.mxu0
        %v1776 = vadd.f32 0.0, %v1775
        %v1777 = vpop.f32.mrf.mxu0
        %1778 = vmatprep.mubr.f32.mxu0 0.0
        %1779 = vmatmul.mubr.f32.gmra.mxu0 %v1586
        %v1780 = vpop.f32.mrf.mxu0
        %v1781 = vadd.f32 0.0, %v1780
        %v1782 = vpop.f32.mrf.mxu0
        %1783 = vmatprep.mubr.f32.mxu0 0.0
        %1784 = vmatmul.mubr.f32.gmra.mxu0 %v1589
        %v1785 = vpop.f32.mrf.mxu0
        %v1786 = vadd.f32 0.0, %v1785
        %v1787 = vpop.f32.mrf.mxu0
        %1788 = vmatprep.mubr.f32.mxu0 0.0
        %1789 = vmatmul.mubr.f32.gmra.mxu0 %v1592
        %v1790 = vpop.f32.mrf.mxu0
        %v1791 = vadd.f32 0.0, %v1790
        %v1792 = vpop.f32.mrf.mxu0
        %1793 = vmatprep.mubr.f32.mxu0 0.0
        %1794 = vmatmul.mubr.f32.gmra.mxu0 %v1595
        %v1795 = vpop.f32.mrf.mxu0
        %v1796 = vadd.f32 0.0, %v1795
        %v1797 = vpop.f32.mrf.mxu0
        %1798 = vmatprep.mubr.f32.mxu0 0.0
        %1799 = vmatmul.mubr.f32.gmra.mxu0 %v1598
        %v1800 = vpop.f32.mrf.mxu0
        %v1801 = vadd.f32 0.0, %v1800
        %v1802 = vpop.f32.mrf.mxu0
        %1803 = vmatprep.mubr.f32.mxu0 0.0
        %1804 = vmatmul.mubr.f32.gmra.mxu0 %v1601
        %v1805 = vpop.f32.mrf.mxu0
        %v1806 = vadd.f32 0.0, %v1805
        %v1807 = vpop.f32.mrf.mxu0
        %1808 = vmatprep.mubr.f32.mxu0 0.0
        %1809 = vmatmul.mubr.f32.gmra.mxu0 %v1604
        %v1810 = vpop.f32.mrf.mxu0
        %v1811 = vadd.f32 0.0, %v1810
        %v1812 = vpop.f32.mrf.mxu0
        %1813 = vmatprep.mubr.f32.mxu0 0.0
        %1814 = vmatmul.mubr.f32.gmra.mxu0 %v1607
        %v1815 = vpop.f32.mrf.mxu0
        %v1816 = vadd.f32 0.0, %v1815
        %v1817 = vpop.f32.mrf.mxu0
        %1818 = vmatprep.mubr.f32.mxu0 0.0
        %1819 = vmatmul.mubr.f32.gmra.mxu0 %v1610
        %v1820 = vpop.f32.mrf.mxu0
        %v1821 = vadd.f32 0.0, %v1820
        %v1822 = vpop.f32.mrf.mxu0
        %1823 = vmatprep.mubr.f32.mxu0 0.0
        %1824 = vmatmul.mubr.f32.gmra.mxu0 %v1613
        %v1825 = vpop.f32.mrf.mxu0
        %v1826 = vadd.f32 0.0, %v1825
        %v1827 = vpop.f32.mrf.mxu0
        %1828 = vmatprep.mubr.f32.mxu0 0.0
        %1829 = vmatmul.mubr.f32.gmra.mxu0 %v1616
        %v1830 = vpop.f32.mrf.mxu0
        %v1831 = vadd.f32 0.0, %v1830
        %v1832 = vpop.f32.mrf.mxu0
        %1833 = vmatprep.mubr.f32.mxu0 0.0
        %1834 = vmatmul.mubr.f32.gmra.mxu0 %v1619
        %v1835 = vpop.f32.mrf.mxu0
        %v1836 = vadd.f32 0.0, %v1835
        %v1837 = vpop.f32.mrf.mxu0
        %1838 = vmatprep.mubr.f32.mxu0 0.0
        %1839 = vmatmul.mubr.f32.gmra.mxu0 %v1622
        %v1840 = vpop.f32.mrf.mxu0
        %v1841 = vadd.f32 0.0, %v1840
        %v1842 = vpop.f32.mrf.mxu0
        %1843 = vmatprep.mubr.f32.mxu0 0.0
        %1844 = vmatmul.mubr.f32.gmra.mxu0 %v1625
        %v1845 = vpop.f32.mrf.mxu0
        %v1846 = vadd.f32 0.0, %v1845
        %v1847 = vpop.f32.mrf.mxu0
        %1848 = vmatprep.mubr.f32.mxu0 0.0
        %1849 = vmatmul.mubr.f32.gmra.mxu0 %v1628
        %v1850 = vpop.f32.mrf.mxu0
        %v1851 = vadd.f32 0.0, %v1850
        %v1852 = vpop.f32.mrf.mxu0
        %1853 = vmatprep.mubr.f32.mxu0 0.0
        %1854 = vmatmul.mubr.f32.gmra.mxu0 %v1631
        %v1855 = vpop.f32.mrf.mxu0
        %v1856 = vadd.f32 0.0, %v1855
        %v1857 = vpop.f32.mrf.mxu0
        %1858 = vmatprep.mubr.f32.mxu0 0.0
        %1859 = vmatmul.mubr.f32.gmra.mxu0 %v1634
        %v1860 = vpop.f32.mrf.mxu0
        %v1861 = vadd.f32 0.0, %v1860
        %v1862 = vpop.f32.mrf.mxu0
        %1863 = vdwg.mxu0
        %v1864 = vadd.f32 %v1474, %v1706
        %v1865 = vadd.f32 %v1475, %v1711
        %v1866 = vadd.f32 %v1476, %v1716
        %v1867 = vadd.f32 %v1477, %v1721
        %v1868 = vadd.f32 %v1478, %v1726
        %v1869 = vadd.f32 %v1479, %v1731
        %v1870 = vadd.f32 %v1480, %v1736
        %v1871 = vadd.f32 %v1481, %v1741
        %v1872 = vadd.f32 %v1482, %v1746
        %v1873 = vadd.f32 %v1483, %v1751
        %v1874 = vadd.f32 %v1484, %v1756
        %v1875 = vadd.f32 %v1485, %v1761
        %v1876 = vadd.f32 %v1486, %v1766
        %v1877 = vadd.f32 %v1487, %v1771
        %v1878 = vadd.f32 %v1488, %v1776
        %v1879 = vadd.f32 %v1489, %v1781
        %v1880 = vadd.f32 %v1490, %v1786
        %v1881 = vadd.f32 %v1491, %v1791
        %v1882 = vadd.f32 %v1492, %v1796
        %v1883 = vadd.f32 %v1493, %v1801
        %v1884 = vadd.f32 %v1494, %v1806
        %v1885 = vadd.f32 %v1495, %v1811
        %v1886 = vadd.f32 %v1496, %v1816
        %v1887 = vadd.f32 %v1497, %v1821
        %v1888 = vadd.f32 %v1498, %v1826
        %v1889 = vadd.f32 %v1499, %v1831
        %v1890 = vadd.f32 %v1500, %v1836
        %v1891 = vadd.f32 %v1501, %v1841
        %v1892 = vadd.f32 %v1502, %v1846
        %v1893 = vadd.f32 %v1503, %v1851
        %v1894 = vadd.f32 %v1504, %v1856
        %v1895 = vadd.f32 %v1505, %v1861
        %v1896 = vld [vmem:[%s367 + $0x1] sm:$0xff]
        %v1897 = vld [vmem:[%s367 + $0x9] sm:$0xff]
        %v1898 = vld [vmem:[%s367 + $0x19] sm:$0xff]
        %v1899 = vld [vmem:[%s367 + $0x21] sm:$0xff]
        %v1900 = vld [vmem:[%s367 + $0x31] sm:$0xff]
        %v1901 = vld [vmem:[%s367 + $0x39] sm:$0xff]
        %v1902 = vld [vmem:[%s367 + $0x49] sm:$0xff]
        %v1903 = vld [vmem:[%s367 + $0x51] sm:$0xff]
        %v1904 = vld [vmem:[%s367 + $0x61] sm:$0xff]
        %v1905 = vld [vmem:[%s367 + $0x69] sm:$0xff]
        %v1906 = vld [vmem:[%s367 + $0x79] sm:$0xff]
        %v1907 = vld [vmem:[%s367 + $0x81] sm:$0xff]
        %v1908 = vld [vmem:[%s367 + $0x91] sm:$0xff]
        %v1909 = vld [vmem:[%s367 + $0x99] sm:$0xff]
        %v1910 = vld [vmem:[%s367 + $0xa9] sm:$0xff]
        %v1911 = vld [vmem:[%s367 + $0xb1] sm:$0xff]
        %v1912 = vld [vmem:[%s367 + $0xc1] sm:$0xff]
        %v1913 = vld [vmem:[%s367 + $0xc9] sm:$0xff]
        %v1914 = vld [vmem:[%s367 + $0xd9] sm:$0xff]
        %v1915 = vld [vmem:[%s367 + $0xe1] sm:$0xff]
        %v1916 = vld [vmem:[%s367 + $0xf1] sm:$0xff]
        %v1917 = vld [vmem:[%s367 + $0xf9] sm:$0xff]
        %v1918 = vld [vmem:[%s367 + $0x109] sm:$0xff]
        %v1919 = vld [vmem:[%s367 + $0x111] sm:$0xff]
        %v1920 = vld [vmem:[%s367 + $0x121] sm:$0xff]
        %v1921 = vld [vmem:[%s367 + $0x129] sm:$0xff]
        %v1922 = vld [vmem:[%s367 + $0x139] sm:$0xff]
        %v1923 = vld [vmem:[%s367 + $0x141] sm:$0xff]
        %v1924 = vld [vmem:[%s367 + $0x151] sm:$0xff]
        %v1925 = vld [vmem:[%s367 + $0x159] sm:$0xff]
        %v1926 = vld [vmem:[%s367 + $0x169] sm:$0xff]
        %v1927 = vld [vmem:[%s367 + $0x171] sm:$0xff]
        %s1928 = scalar_lea.vmem %s1, 16
        %v1929 = vld [vmem:[%s1928] sm:$0xf]
        %v1931 = vsel %vm223, %v1896, 0
        %v1934 = vsel %vm223, %v1897, 0
        %v1937 = vsel %vm223, %v1898, 0
        %v1940 = vsel %vm223, %v1899, 0
        %v1943 = vsel %vm223, %v1900, 0
        %v1946 = vsel %vm223, %v1901, 0
        %v1949 = vsel %vm223, %v1902, 0
        %v1952 = vsel %vm223, %v1903, 0
        %v1955 = vsel %vm223, %v1904, 0
        %v1958 = vsel %vm223, %v1905, 0
        %v1961 = vsel %vm223, %v1906, 0
        %v1964 = vsel %vm223, %v1907, 0
        %v1967 = vsel %vm223, %v1908, 0
        %v1970 = vsel %vm223, %v1909, 0
        %v1973 = vsel %vm223, %v1910, 0
        %v1976 = vsel %vm223, %v1911, 0
        %v1979 = vsel %vm223, %v1912, 0
        %v1982 = vsel %vm223, %v1913, 0
        %v1985 = vsel %vm223, %v1914, 0
        %v1988 = vsel %vm223, %v1915, 0
        %v1991 = vsel %vm223, %v1916, 0
        %v1994 = vsel %vm223, %v1917, 0
        %v1997 = vsel %vm223, %v1918, 0
        %v2000 = vsel %vm223, %v1919, 0
        %v2003 = vsel %vm223, %v1920, 0
        %v2006 = vsel %vm223, %v1921, 0
        %v2009 = vsel %vm223, %v1922, 0
        %v2012 = vsel %vm223, %v1923, 0
        %v2015 = vsel %vm223, %v1924, 0
        %v2018 = vsel %vm223, %v1925, 0
        %v2021 = vsel %vm223, %v1926, 0
        %v2024 = vsel %vm223, %v1927, 0
        %v2027 = vsel %vm563, %v1929, 0
        %2029 = vmatprep.subr.mxu0 0.0
        %2030 = vmatpush1.msra.mxu0 0.0
        %2031 = vmatprep.subr.mxu0 0.0
        %2032 = vmatpush1.msra.mxu0 0.0
        %2033 = vmatprep.subr.mxu0 0.0
        %2034 = vmatpush1.msra.mxu0 0.0
        %2035 = vmatprep.subr.mxu0 0.0
        %2036 = vmatpush1.msra.mxu0 0.0
        %2037 = vmatprep.subr.mxu0 0.0
        %2038 = vmatpush1.msra.mxu0 0.0
        %2039 = vmatprep.subr.mxu0 0.0
        %2040 = vmatpush1.msra.mxu0 0.0
        %2041 = vmatprep.subr.mxu0 0.0
        %2042 = vmatpush1.msra.mxu0 0.0
        %2043 = vmatprep.subr.mxu0 0.0
        %2044 = vmatpush1.msra.mxu0 0.0
        %2045 = vmatprep.subr.mxu0 0.0
        %2046 = vmatpush1.msra.mxu0 0.0
        %2047 = vmatprep.subr.mxu0 0.0
        %2048 = vmatpush1.msra.mxu0 0.0
        %2049 = vmatprep.subr.mxu0 0.0
        %2050 = vmatpush1.msra.mxu0 0.0
        %2051 = vmatprep.subr.mxu0 0.0
        %2052 = vmatpush1.msra.mxu0 0.0
        %2053 = vmatprep.subr.mxu0 0.0
        %2054 = vmatpush1.msra.mxu0 0.0
        %2055 = vmatprep.subr.mxu0 0.0
        %2056 = vmatpush1.msra.mxu0 0.0
        %2057 = vmatprep.subr.mxu0 0.0
        %2058 = vmatpush1.msra.mxu0 0.0
        %2059 = vmatprep.subr.mxu0 0.0
        %2060 = vmatpush1.msra.mxu0 %v2027
        %2061 = vmatprep.subr.mxu0 0.0
        %2062 = vmatpush2.msra.mxu0 0.0
        %2063 = vmatprep.subr.mxu0 0.0
        %2064 = vmatpush2.msra.mxu0 0.0
        %2065 = vmatprep.subr.mxu0 0.0
        %2066 = vmatpush2.msra.mxu0 0.0
        %2067 = vmatprep.subr.mxu0 0.0
        %2068 = vmatpush2.msra.mxu0 0.0
        %2069 = vmatprep.subr.mxu0 0.0
        %2070 = vmatpush2.msra.mxu0 0.0
        %2071 = vmatprep.subr.mxu0 0.0
        %2072 = vmatpush2.msra.mxu0 0.0
        %2073 = vmatprep.subr.mxu0 0.0
        %2074 = vmatpush2.msra.mxu0 0.0
        %2075 = vmatprep.subr.mxu0 0.0
        %2076 = vmatpush2.msra.mxu0 0.0
        %2077 = vmatprep.subr.mxu0 0.0
        %2078 = vmatpush2.msra.mxu0 0.0
        %2079 = vmatprep.subr.mxu0 0.0
        %2080 = vmatpush2.msra.mxu0 0.0
        %2081 = vmatprep.subr.mxu0 0.0
        %2082 = vmatpush2.msra.mxu0 0.0
        %2083 = vmatprep.subr.mxu0 0.0
        %2084 = vmatpush2.msra.mxu0 0.0
        %2085 = vmatprep.subr.mxu0 0.0
        %2086 = vmatpush2.msra.mxu0 0.0
        %2087 = vmatprep.subr.mxu0 0.0
        %2088 = vmatpush2.msra.mxu0 0.0
        %2089 = vmatprep.subr.mxu0 0.0
        %2090 = vmatpush2.msra.mxu0 0.0
        %2091 = vmatprep.subr.mxu0 0.0
        %2092 = vmatpush2.msra.mxu0 0.0
        %2093 = vmatprep.mubr.f32.mxu0 0.0
        %2094 = vmatmul.mubr.f32.gmra.mxu0 %v1931
        %v2095 = vpop.f32.mrf.mxu0
        %v2096 = vadd.f32 0.0, %v2095
        %v2097 = vpop.f32.mrf.mxu0
        %2098 = vmatprep.mubr.f32.mxu0 0.0
        %2099 = vmatmul.mubr.f32.gmra.mxu0 %v1934
        %v2100 = vpop.f32.mrf.mxu0
        %v2101 = vadd.f32 0.0, %v2100
        %v2102 = vpop.f32.mrf.mxu0
        %2103 = vmatprep.mubr.f32.mxu0 0.0
        %2104 = vmatmul.mubr.f32.gmra.mxu0 %v1937
        %v2105 = vpop.f32.mrf.mxu0
        %v2106 = vadd.f32 0.0, %v2105
        %v2107 = vpop.f32.mrf.mxu0
        %2108 = vmatprep.mubr.f32.mxu0 0.0
        %2109 = vmatmul.mubr.f32.gmra.mxu0 %v1940
        %v2110 = vpop.f32.mrf.mxu0
        %v2111 = vadd.f32 0.0, %v2110
        %v2112 = vpop.f32.mrf.mxu0
        %2113 = vmatprep.mubr.f32.mxu0 0.0
        %2114 = vmatmul.mubr.f32.gmra.mxu0 %v1943
        %v2115 = vpop.f32.mrf.mxu0
        %v2116 = vadd.f32 0.0, %v2115
        %v2117 = vpop.f32.mrf.mxu0
        %2118 = vmatprep.mubr.f32.mxu0 0.0
        %2119 = vmatmul.mubr.f32.gmra.mxu0 %v1946
        %v2120 = vpop.f32.mrf.mxu0
        %v2121 = vadd.f32 0.0, %v2120
        %v2122 = vpop.f32.mrf.mxu0
        %2123 = vmatprep.mubr.f32.mxu0 0.0
        %2124 = vmatmul.mubr.f32.gmra.mxu0 %v1949
        %v2125 = vpop.f32.mrf.mxu0
        %v2126 = vadd.f32 0.0, %v2125
        %v2127 = vpop.f32.mrf.mxu0
        %2128 = vmatprep.mubr.f32.mxu0 0.0
        %2129 = vmatmul.mubr.f32.gmra.mxu0 %v1952
        %v2130 = vpop.f32.mrf.mxu0
        %v2131 = vadd.f32 0.0, %v2130
        %v2132 = vpop.f32.mrf.mxu0
        %2133 = vmatprep.mubr.f32.mxu0 0.0
        %2134 = vmatmul.mubr.f32.gmra.mxu0 %v1955
        %v2135 = vpop.f32.mrf.mxu0
        %v2136 = vadd.f32 0.0, %v2135
        %v2137 = vpop.f32.mrf.mxu0
        %2138 = vmatprep.mubr.f32.mxu0 0.0
        %2139 = vmatmul.mubr.f32.gmra.mxu0 %v1958
        %v2140 = vpop.f32.mrf.mxu0
        %v2141 = vadd.f32 0.0, %v2140
        %v2142 = vpop.f32.mrf.mxu0
        %2143 = vmatprep.mubr.f32.mxu0 0.0
        %2144 = vmatmul.mubr.f32.gmra.mxu0 %v1961
        %v2145 = vpop.f32.mrf.mxu0
        %v2146 = vadd.f32 0.0, %v2145
        %v2147 = vpop.f32.mrf.mxu0
        %2148 = vmatprep.mubr.f32.mxu0 0.0
        %2149 = vmatmul.mubr.f32.gmra.mxu0 %v1964
        %v2150 = vpop.f32.mrf.mxu0
        %v2151 = vadd.f32 0.0, %v2150
        %v2152 = vpop.f32.mrf.mxu0
        %2153 = vmatprep.mubr.f32.mxu0 0.0
        %2154 = vmatmul.mubr.f32.gmra.mxu0 %v1967
        %v2155 = vpop.f32.mrf.mxu0
        %v2156 = vadd.f32 0.0, %v2155
        %v2157 = vpop.f32.mrf.mxu0
        %2158 = vmatprep.mubr.f32.mxu0 0.0
        %2159 = vmatmul.mubr.f32.gmra.mxu0 %v1970
        %v2160 = vpop.f32.mrf.mxu0
        %v2161 = vadd.f32 0.0, %v2160
        %v2162 = vpop.f32.mrf.mxu0
        %2163 = vmatprep.mubr.f32.mxu0 0.0
        %2164 = vmatmul.mubr.f32.gmra.mxu0 %v1973
        %v2165 = vpop.f32.mrf.mxu0
        %v2166 = vadd.f32 0.0, %v2165
        %v2167 = vpop.f32.mrf.mxu0
        %2168 = vmatprep.mubr.f32.mxu0 0.0
        %2169 = vmatmul.mubr.f32.gmra.mxu0 %v1976
        %v2170 = vpop.f32.mrf.mxu0
        %v2171 = vadd.f32 0.0, %v2170
        %v2172 = vpop.f32.mrf.mxu0
        %2173 = vmatprep.mubr.f32.mxu0 0.0
        %2174 = vmatmul.mubr.f32.gmra.mxu0 %v1979
        %v2175 = vpop.f32.mrf.mxu0
        %v2176 = vadd.f32 0.0, %v2175
        %v2177 = vpop.f32.mrf.mxu0
        %2178 = vmatprep.mubr.f32.mxu0 0.0
        %2179 = vmatmul.mubr.f32.gmra.mxu0 %v1982
        %v2180 = vpop.f32.mrf.mxu0
        %v2181 = vadd.f32 0.0, %v2180
        %v2182 = vpop.f32.mrf.mxu0
        %2183 = vmatprep.mubr.f32.mxu0 0.0
        %2184 = vmatmul.mubr.f32.gmra.mxu0 %v1985
        %v2185 = vpop.f32.mrf.mxu0
        %v2186 = vadd.f32 0.0, %v2185
        %v2187 = vpop.f32.mrf.mxu0
        %2188 = vmatprep.mubr.f32.mxu0 0.0
        %2189 = vmatmul.mubr.f32.gmra.mxu0 %v1988
        %v2190 = vpop.f32.mrf.mxu0
        %v2191 = vadd.f32 0.0, %v2190
        %v2192 = vpop.f32.mrf.mxu0
        %2193 = vmatprep.mubr.f32.mxu0 0.0
        %2194 = vmatmul.mubr.f32.gmra.mxu0 %v1991
        %v2195 = vpop.f32.mrf.mxu0
        %v2196 = vadd.f32 0.0, %v2195
        %v2197 = vpop.f32.mrf.mxu0
        %2198 = vmatprep.mubr.f32.mxu0 0.0
        %2199 = vmatmul.mubr.f32.gmra.mxu0 %v1994
        %v2200 = vpop.f32.mrf.mxu0
        %v2201 = vadd.f32 0.0, %v2200
        %v2202 = vpop.f32.mrf.mxu0
        %2203 = vmatprep.mubr.f32.mxu0 0.0
        %2204 = vmatmul.mubr.f32.gmra.mxu0 %v1997
        %v2205 = vpop.f32.mrf.mxu0
        %v2206 = vadd.f32 0.0, %v2205
        %v2207 = vpop.f32.mrf.mxu0
        %2208 = vmatprep.mubr.f32.mxu0 0.0
        %2209 = vmatmul.mubr.f32.gmra.mxu0 %v2000
        %v2210 = vpop.f32.mrf.mxu0
        %v2211 = vadd.f32 0.0, %v2210
        %v2212 = vpop.f32.mrf.mxu0
        %2213 = vmatprep.mubr.f32.mxu0 0.0
        %2214 = vmatmul.mubr.f32.gmra.mxu0 %v2003
        %v2215 = vpop.f32.mrf.mxu0
        %v2216 = vadd.f32 0.0, %v2215
        %v2217 = vpop.f32.mrf.mxu0
        %2218 = vmatprep.mubr.f32.mxu0 0.0
        %2219 = vmatmul.mubr.f32.gmra.mxu0 %v2006
        %v2220 = vpop.f32.mrf.mxu0
        %v2221 = vadd.f32 0.0, %v2220
        %v2222 = vpop.f32.mrf.mxu0
        %2223 = vmatprep.mubr.f32.mxu0 0.0
        %2224 = vmatmul.mubr.f32.gmra.mxu0 %v2009
        %v2225 = vpop.f32.mrf.mxu0
        %v2226 = vadd.f32 0.0, %v2225
        %v2227 = vpop.f32.mrf.mxu0
        %2228 = vmatprep.mubr.f32.mxu0 0.0
        %2229 = vmatmul.mubr.f32.gmra.mxu0 %v2012
        %v2230 = vpop.f32.mrf.mxu0
        %v2231 = vadd.f32 0.0, %v2230
        %v2232 = vpop.f32.mrf.mxu0
        %2233 = vmatprep.mubr.f32.mxu0 0.0
        %2234 = vmatmul.mubr.f32.gmra.mxu0 %v2015
        %v2235 = vpop.f32.mrf.mxu0
        %v2236 = vadd.f32 0.0, %v2235
        %v2237 = vpop.f32.mrf.mxu0
        %2238 = vmatprep.mubr.f32.mxu0 0.0
        %2239 = vmatmul.mubr.f32.gmra.mxu0 %v2018
        %v2240 = vpop.f32.mrf.mxu0
        %v2241 = vadd.f32 0.0, %v2240
        %v2242 = vpop.f32.mrf.mxu0
        %2243 = vmatprep.mubr.f32.mxu0 0.0
        %2244 = vmatmul.mubr.f32.gmra.mxu0 %v2021
        %v2245 = vpop.f32.mrf.mxu0
        %v2246 = vadd.f32 0.0, %v2245
        %v2247 = vpop.f32.mrf.mxu0
        %2248 = vmatprep.mubr.f32.mxu0 0.0
        %2249 = vmatmul.mubr.f32.gmra.mxu0 %v2024
        %v2250 = vpop.f32.mrf.mxu0
        %v2251 = vadd.f32 0.0, %v2250
        %v2252 = vpop.f32.mrf.mxu0
        %2253 = vdwg.mxu0
        %v2254 = vadd.f32 %v1864, %v2096
        %v2255 = vadd.f32 %v1865, %v2101
        %v2256 = vadd.f32 %v1866, %v2106
        %v2257 = vadd.f32 %v1867, %v2111
        %v2258 = vadd.f32 %v1868, %v2116
        %v2259 = vadd.f32 %v1869, %v2121
        %v2260 = vadd.f32 %v1870, %v2126
        %v2261 = vadd.f32 %v1871, %v2131
        %v2262 = vadd.f32 %v1872, %v2136
        %v2263 = vadd.f32 %v1873, %v2141
        %v2264 = vadd.f32 %v1874, %v2146
        %v2265 = vadd.f32 %v1875, %v2151
        %v2266 = vadd.f32 %v1876, %v2156
        %v2267 = vadd.f32 %v1877, %v2161
        %v2268 = vadd.f32 %v1878, %v2166
        %v2269 = vadd.f32 %v1879, %v2171
        %v2270 = vadd.f32 %v1880, %v2176
        %v2271 = vadd.f32 %v1881, %v2181
        %v2272 = vadd.f32 %v1882, %v2186
        %v2273 = vadd.f32 %v1883, %v2191
        %v2274 = vadd.f32 %v1884, %v2196
        %v2275 = vadd.f32 %v1885, %v2201
        %v2276 = vadd.f32 %v1886, %v2206
        %v2277 = vadd.f32 %v1887, %v2211
        %v2278 = vadd.f32 %v1888, %v2216
        %v2279 = vadd.f32 %v1889, %v2221
        %v2280 = vadd.f32 %v1890, %v2226
        %v2281 = vadd.f32 %v1891, %v2231
        %v2282 = vadd.f32 %v1892, %v2236
        %v2283 = vadd.f32 %v1893, %v2241
        %v2284 = vadd.f32 %v1894, %v2246
        %v2285 = vadd.f32 %v1895, %v2251
        %v2286 = vld [vmem:[%s367 + $0x2] sm:$0xff]
        %v2287 = vld [vmem:[%s367 + $0xa] sm:$0xff]
        %v2288 = vld [vmem:[%s367 + $0x1a] sm:$0xff]
        %v2289 = vld [vmem:[%s367 + $0x22] sm:$0xff]
        %v2290 = vld [vmem:[%s367 + $0x32] sm:$0xff]
        %v2291 = vld [vmem:[%s367 + $0x3a] sm:$0xff]
        %v2292 = vld [vmem:[%s367 + $0x4a] sm:$0xff]
        %v2293 = vld [vmem:[%s367 + $0x52] sm:$0xff]
        %v2294 = vld [vmem:[%s367 + $0x62] sm:$0xff]
        %v2295 = vld [vmem:[%s367 + $0x6a] sm:$0xff]
        %v2296 = vld [vmem:[%s367 + $0x7a] sm:$0xff]
        %v2297 = vld [vmem:[%s367 + $0x82] sm:$0xff]
        %v2298 = vld [vmem:[%s367 + $0x92] sm:$0xff]
        %v2299 = vld [vmem:[%s367 + $0x9a] sm:$0xff]
        %v2300 = vld [vmem:[%s367 + $0xaa] sm:$0xff]
        %v2301 = vld [vmem:[%s367 + $0xb2] sm:$0xff]
        %v2302 = vld [vmem:[%s367 + $0xc2] sm:$0xff]
        %v2303 = vld [vmem:[%s367 + $0xca] sm:$0xff]
        %v2304 = vld [vmem:[%s367 + $0xda] sm:$0xff]
        %v2305 = vld [vmem:[%s367 + $0xe2] sm:$0xff]
        %v2306 = vld [vmem:[%s367 + $0xf2] sm:$0xff]
        %v2307 = vld [vmem:[%s367 + $0xfa] sm:$0xff]
        %v2308 = vld [vmem:[%s367 + $0x10a] sm:$0xff]
        %v2309 = vld [vmem:[%s367 + $0x112] sm:$0xff]
        %v2310 = vld [vmem:[%s367 + $0x122] sm:$0xff]
        %v2311 = vld [vmem:[%s367 + $0x12a] sm:$0xff]
        %v2312 = vld [vmem:[%s367 + $0x13a] sm:$0xff]
        %v2313 = vld [vmem:[%s367 + $0x142] sm:$0xff]
        %v2314 = vld [vmem:[%s367 + $0x152] sm:$0xff]
        %v2315 = vld [vmem:[%s367 + $0x15a] sm:$0xff]
        %v2316 = vld [vmem:[%s367 + $0x16a] sm:$0xff]
        %v2317 = vld [vmem:[%s367 + $0x172] sm:$0xff]
        %s2318 = scalar_lea.vmem %s1, 20
        %v2319 = vld [vmem:[%s2318] sm:$0xf]
        %v2321 = vsel %vm223, %v2286, 0
        %v2324 = vsel %vm223, %v2287, 0
        %v2327 = vsel %vm223, %v2288, 0
        %v2330 = vsel %vm223, %v2289, 0
        %v2333 = vsel %vm223, %v2290, 0
        %v2336 = vsel %vm223, %v2291, 0
        %v2339 = vsel %vm223, %v2292, 0
        %v2342 = vsel %vm223, %v2293, 0
        %v2345 = vsel %vm223, %v2294, 0
        %v2348 = vsel %vm223, %v2295, 0
        %v2351 = vsel %vm223, %v2296, 0
        %v2354 = vsel %vm223, %v2297, 0
        %v2357 = vsel %vm223, %v2298, 0
        %v2360 = vsel %vm223, %v2299, 0
        %v2363 = vsel %vm223, %v2300, 0
        %v2366 = vsel %vm223, %v2301, 0
        %v2369 = vsel %vm223, %v2302, 0
        %v2372 = vsel %vm223, %v2303, 0
        %v2375 = vsel %vm223, %v2304, 0
        %v2378 = vsel %vm223, %v2305, 0
        %v2381 = vsel %vm223, %v2306, 0
        %v2384 = vsel %vm223, %v2307, 0
        %v2387 = vsel %vm223, %v2308, 0
        %v2390 = vsel %vm223, %v2309, 0
        %v2393 = vsel %vm223, %v2310, 0
        %v2396 = vsel %vm223, %v2311, 0
        %v2399 = vsel %vm223, %v2312, 0
        %v2402 = vsel %vm223, %v2313, 0
        %v2405 = vsel %vm223, %v2314, 0
        %v2408 = vsel %vm223, %v2315, 0
        %v2411 = vsel %vm223, %v2316, 0
        %v2414 = vsel %vm223, %v2317, 0
        %v2417 = vsel %vm563, %v2319, 0
        %2419 = vmatprep.subr.mxu0 0.0
        %2420 = vmatpush1.msra.mxu0 0.0
        %2421 = vmatprep.subr.mxu0 0.0
        %2422 = vmatpush1.msra.mxu0 0.0
        %2423 = vmatprep.subr.mxu0 0.0
        %2424 = vmatpush1.msra.mxu0 0.0
        %2425 = vmatprep.subr.mxu0 0.0
        %2426 = vmatpush1.msra.mxu0 0.0
        %2427 = vmatprep.subr.mxu0 0.0
        %2428 = vmatpush1.msra.mxu0 0.0
        %2429 = vmatprep.subr.mxu0 0.0
        %2430 = vmatpush1.msra.mxu0 0.0
        %2431 = vmatprep.subr.mxu0 0.0
        %2432 = vmatpush1.msra.mxu0 0.0
        %2433 = vmatprep.subr.mxu0 0.0
        %2434 = vmatpush1.msra.mxu0 0.0
        %2435 = vmatprep.subr.mxu0 0.0
        %2436 = vmatpush1.msra.mxu0 0.0
        %2437 = vmatprep.subr.mxu0 0.0
        %2438 = vmatpush1.msra.mxu0 0.0
        %2439 = vmatprep.subr.mxu0 0.0
        %2440 = vmatpush1.msra.mxu0 0.0
        %2441 = vmatprep.subr.mxu0 0.0
        %2442 = vmatpush1.msra.mxu0 0.0
        %2443 = vmatprep.subr.mxu0 0.0
        %2444 = vmatpush1.msra.mxu0 0.0
        %2445 = vmatprep.subr.mxu0 0.0
        %2446 = vmatpush1.msra.mxu0 0.0
        %2447 = vmatprep.subr.mxu0 0.0
        %2448 = vmatpush1.msra.mxu0 0.0
        %2449 = vmatprep.subr.mxu0 0.0
        %2450 = vmatpush1.msra.mxu0 %v2417
        %2451 = vmatprep.subr.mxu0 0.0
        %2452 = vmatpush2.msra.mxu0 0.0
        %2453 = vmatprep.subr.mxu0 0.0
        %2454 = vmatpush2.msra.mxu0 0.0
        %2455 = vmatprep.subr.mxu0 0.0
        %2456 = vmatpush2.msra.mxu0 0.0
        %2457 = vmatprep.subr.mxu0 0.0
        %2458 = vmatpush2.msra.mxu0 0.0
        %2459 = vmatprep.subr.mxu0 0.0
        %2460 = vmatpush2.msra.mxu0 0.0
        %2461 = vmatprep.subr.mxu0 0.0
        %2462 = vmatpush2.msra.mxu0 0.0
        %2463 = vmatprep.subr.mxu0 0.0
        %2464 = vmatpush2.msra.mxu0 0.0
        %2465 = vmatprep.subr.mxu0 0.0
        %2466 = vmatpush2.msra.mxu0 0.0
        %2467 = vmatprep.subr.mxu0 0.0
        %2468 = vmatpush2.msra.mxu0 0.0
        %2469 = vmatprep.subr.mxu0 0.0
        %2470 = vmatpush2.msra.mxu0 0.0
        %2471 = vmatprep.subr.mxu0 0.0
        %2472 = vmatpush2.msra.mxu0 0.0
        %2473 = vmatprep.subr.mxu0 0.0
        %2474 = vmatpush2.msra.mxu0 0.0
        %2475 = vmatprep.subr.mxu0 0.0
        %2476 = vmatpush2.msra.mxu0 0.0
        %2477 = vmatprep.subr.mxu0 0.0
        %2478 = vmatpush2.msra.mxu0 0.0
        %2479 = vmatprep.subr.mxu0 0.0
        %2480 = vmatpush2.msra.mxu0 0.0
        %2481 = vmatprep.subr.mxu0 0.0
        %2482 = vmatpush2.msra.mxu0 0.0
        %2483 = vmatprep.mubr.f32.mxu0 0.0
        %2484 = vmatmul.mubr.f32.gmra.mxu0 %v2321
        %v2485 = vpop.f32.mrf.mxu0
        %v2486 = vadd.f32 0.0, %v2485
        %v2487 = vpop.f32.mrf.mxu0
        %2488 = vmatprep.mubr.f32.mxu0 0.0
        %2489 = vmatmul.mubr.f32.gmra.mxu0 %v2324
        %v2490 = vpop.f32.mrf.mxu0
        %v2491 = vadd.f32 0.0, %v2490
        %v2492 = vpop.f32.mrf.mxu0
        %2493 = vmatprep.mubr.f32.mxu0 0.0
        %2494 = vmatmul.mubr.f32.gmra.mxu0 %v2327
        %v2495 = vpop.f32.mrf.mxu0
        %v2496 = vadd.f32 0.0, %v2495
        %v2497 = vpop.f32.mrf.mxu0
        %2498 = vmatprep.mubr.f32.mxu0 0.0
        %2499 = vmatmul.mubr.f32.gmra.mxu0 %v2330
        %v2500 = vpop.f32.mrf.mxu0
        %v2501 = vadd.f32 0.0, %v2500
        %v2502 = vpop.f32.mrf.mxu0
        %2503 = vmatprep.mubr.f32.mxu0 0.0
        %2504 = vmatmul.mubr.f32.gmra.mxu0 %v2333
        %v2505 = vpop.f32.mrf.mxu0
        %v2506 = vadd.f32 0.0, %v2505
        %v2507 = vpop.f32.mrf.mxu0
        %2508 = vmatprep.mubr.f32.mxu0 0.0
        %2509 = vmatmul.mubr.f32.gmra.mxu0 %v2336
        %v2510 = vpop.f32.mrf.mxu0
        %v2511 = vadd.f32 0.0, %v2510
        %v2512 = vpop.f32.mrf.mxu0
        %2513 = vmatprep.mubr.f32.mxu0 0.0
        %2514 = vmatmul.mubr.f32.gmra.mxu0 %v2339
        %v2515 = vpop.f32.mrf.mxu0
        %v2516 = vadd.f32 0.0, %v2515
        %v2517 = vpop.f32.mrf.mxu0
        %2518 = vmatprep.mubr.f32.mxu0 0.0
        %2519 = vmatmul.mubr.f32.gmra.mxu0 %v2342
        %v2520 = vpop.f32.mrf.mxu0
        %v2521 = vadd.f32 0.0, %v2520
        %v2522 = vpop.f32.mrf.mxu0
        %2523 = vmatprep.mubr.f32.mxu0 0.0
        %2524 = vmatmul.mubr.f32.gmra.mxu0 %v2345
        %v2525 = vpop.f32.mrf.mxu0
        %v2526 = vadd.f32 0.0, %v2525
        %v2527 = vpop.f32.mrf.mxu0
        %2528 = vmatprep.mubr.f32.mxu0 0.0
        %2529 = vmatmul.mubr.f32.gmra.mxu0 %v2348
        %v2530 = vpop.f32.mrf.mxu0
        %v2531 = vadd.f32 0.0, %v2530
        %v2532 = vpop.f32.mrf.mxu0
        %2533 = vmatprep.mubr.f32.mxu0 0.0
        %2534 = vmatmul.mubr.f32.gmra.mxu0 %v2351
        %v2535 = vpop.f32.mrf.mxu0
        %v2536 = vadd.f32 0.0, %v2535
        %v2537 = vpop.f32.mrf.mxu0
        %2538 = vmatprep.mubr.f32.mxu0 0.0
        %2539 = vmatmul.mubr.f32.gmra.mxu0 %v2354
        %v2540 = vpop.f32.mrf.mxu0
        %v2541 = vadd.f32 0.0, %v2540
        %v2542 = vpop.f32.mrf.mxu0
        %2543 = vmatprep.mubr.f32.mxu0 0.0
        %2544 = vmatmul.mubr.f32.gmra.mxu0 %v2357
        %v2545 = vpop.f32.mrf.mxu0
        %v2546 = vadd.f32 0.0, %v2545
        %v2547 = vpop.f32.mrf.mxu0
        %2548 = vmatprep.mubr.f32.mxu0 0.0
        %2549 = vmatmul.mubr.f32.gmra.mxu0 %v2360
        %v2550 = vpop.f32.mrf.mxu0
        %v2551 = vadd.f32 0.0, %v2550
        %v2552 = vpop.f32.mrf.mxu0
        %2553 = vmatprep.mubr.f32.mxu0 0.0
        %2554 = vmatmul.mubr.f32.gmra.mxu0 %v2363
        %v2555 = vpop.f32.mrf.mxu0
        %v2556 = vadd.f32 0.0, %v2555
        %v2557 = vpop.f32.mrf.mxu0
        %2558 = vmatprep.mubr.f32.mxu0 0.0
        %2559 = vmatmul.mubr.f32.gmra.mxu0 %v2366
        %v2560 = vpop.f32.mrf.mxu0
        %v2561 = vadd.f32 0.0, %v2560
        %v2562 = vpop.f32.mrf.mxu0
        %2563 = vmatprep.mubr.f32.mxu0 0.0
        %2564 = vmatmul.mubr.f32.gmra.mxu0 %v2369
        %v2565 = vpop.f32.mrf.mxu0
        %v2566 = vadd.f32 0.0, %v2565
        %v2567 = vpop.f32.mrf.mxu0
        %2568 = vmatprep.mubr.f32.mxu0 0.0
        %2569 = vmatmul.mubr.f32.gmra.mxu0 %v2372
        %v2570 = vpop.f32.mrf.mxu0
        %v2571 = vadd.f32 0.0, %v2570
        %v2572 = vpop.f32.mrf.mxu0
        %2573 = vmatprep.mubr.f32.mxu0 0.0
        %2574 = vmatmul.mubr.f32.gmra.mxu0 %v2375
        %v2575 = vpop.f32.mrf.mxu0
        %v2576 = vadd.f32 0.0, %v2575
        %v2577 = vpop.f32.mrf.mxu0
        %2578 = vmatprep.mubr.f32.mxu0 0.0
        %2579 = vmatmul.mubr.f32.gmra.mxu0 %v2378
        %v2580 = vpop.f32.mrf.mxu0
        %v2581 = vadd.f32 0.0, %v2580
        %v2582 = vpop.f32.mrf.mxu0
        %2583 = vmatprep.mubr.f32.mxu0 0.0
        %2584 = vmatmul.mubr.f32.gmra.mxu0 %v2381
        %v2585 = vpop.f32.mrf.mxu0
        %v2586 = vadd.f32 0.0, %v2585
        %v2587 = vpop.f32.mrf.mxu0
        %2588 = vmatprep.mubr.f32.mxu0 0.0
        %2589 = vmatmul.mubr.f32.gmra.mxu0 %v2384
        %v2590 = vpop.f32.mrf.mxu0
        %v2591 = vadd.f32 0.0, %v2590
        %v2592 = vpop.f32.mrf.mxu0
        %2593 = vmatprep.mubr.f32.mxu0 0.0
        %2594 = vmatmul.mubr.f32.gmra.mxu0 %v2387
        %v2595 = vpop.f32.mrf.mxu0
        %v2596 = vadd.f32 0.0, %v2595
        %v2597 = vpop.f32.mrf.mxu0
        %2598 = vmatprep.mubr.f32.mxu0 0.0
        %2599 = vmatmul.mubr.f32.gmra.mxu0 %v2390
        %v2600 = vpop.f32.mrf.mxu0
        %v2601 = vadd.f32 0.0, %v2600
        %v2602 = vpop.f32.mrf.mxu0
        %2603 = vmatprep.mubr.f32.mxu0 0.0
        %2604 = vmatmul.mubr.f32.gmra.mxu0 %v2393
        %v2605 = vpop.f32.mrf.mxu0
        %v2606 = vadd.f32 0.0, %v2605
        %v2607 = vpop.f32.mrf.mxu0
        %2608 = vmatprep.mubr.f32.mxu0 0.0
        %2609 = vmatmul.mubr.f32.gmra.mxu0 %v2396
        %v2610 = vpop.f32.mrf.mxu0
        %v2611 = vadd.f32 0.0, %v2610
        %v2612 = vpop.f32.mrf.mxu0
        %2613 = vmatprep.mubr.f32.mxu0 0.0
        %2614 = vmatmul.mubr.f32.gmra.mxu0 %v2399
        %v2615 = vpop.f32.mrf.mxu0
        %v2616 = vadd.f32 0.0, %v2615
        %v2617 = vpop.f32.mrf.mxu0
        %2618 = vmatprep.mubr.f32.mxu0 0.0
        %2619 = vmatmul.mubr.f32.gmra.mxu0 %v2402
        %v2620 = vpop.f32.mrf.mxu0
        %v2621 = vadd.f32 0.0, %v2620
        %v2622 = vpop.f32.mrf.mxu0
        %2623 = vmatprep.mubr.f32.mxu0 0.0
        %2624 = vmatmul.mubr.f32.gmra.mxu0 %v2405
        %v2625 = vpop.f32.mrf.mxu0
        %v2626 = vadd.f32 0.0, %v2625
        %v2627 = vpop.f32.mrf.mxu0
        %2628 = vmatprep.mubr.f32.mxu0 0.0
        %2629 = vmatmul.mubr.f32.gmra.mxu0 %v2408
        %v2630 = vpop.f32.mrf.mxu0
        %v2631 = vadd.f32 0.0, %v2630
        %v2632 = vpop.f32.mrf.mxu0
        %2633 = vmatprep.mubr.f32.mxu0 0.0
        %2634 = vmatmul.mubr.f32.gmra.mxu0 %v2411
        %v2635 = vpop.f32.mrf.mxu0
        %v2636 = vadd.f32 0.0, %v2635
        %v2637 = vpop.f32.mrf.mxu0
        %2638 = vmatprep.mubr.f32.mxu0 0.0
        %2639 = vmatmul.mubr.f32.gmra.mxu0 %v2414
        %v2640 = vpop.f32.mrf.mxu0
        %v2641 = vadd.f32 0.0, %v2640
        %v2642 = vpop.f32.mrf.mxu0
        %2643 = vdwg.mxu0
        %v2644 = vadd.f32 %v2254, %v2486
        %v2645 = vadd.f32 %v2255, %v2491
        %v2646 = vadd.f32 %v2256, %v2496
        %v2647 = vadd.f32 %v2257, %v2501
        %v2648 = vadd.f32 %v2258, %v2506
        %v2649 = vadd.f32 %v2259, %v2511
        %v2650 = vadd.f32 %v2260, %v2516
        %v2651 = vadd.f32 %v2261, %v2521
        %v2652 = vadd.f32 %v2262, %v2526
        %v2653 = vadd.f32 %v2263, %v2531
        %v2654 = vadd.f32 %v2264, %v2536
        %v2655 = vadd.f32 %v2265, %v2541
        %v2656 = vadd.f32 %v2266, %v2546
        %v2657 = vadd.f32 %v2267, %v2551
        %v2658 = vadd.f32 %v2268, %v2556
        %v2659 = vadd.f32 %v2269, %v2561
        %v2660 = vadd.f32 %v2270, %v2566
        %v2661 = vadd.f32 %v2271, %v2571
        %v2662 = vadd.f32 %v2272, %v2576
        %v2663 = vadd.f32 %v2273, %v2581
        %v2664 = vadd.f32 %v2274, %v2586
        %v2665 = vadd.f32 %v2275, %v2591
        %v2666 = vadd.f32 %v2276, %v2596
        %v2667 = vadd.f32 %v2277, %v2601
        %v2668 = vadd.f32 %v2278, %v2606
        %v2669 = vadd.f32 %v2279, %v2611
        %v2670 = vadd.f32 %v2280, %v2616
        %v2671 = vadd.f32 %v2281, %v2621
        %v2672 = vadd.f32 %v2282, %v2626
        %v2673 = vadd.f32 %v2283, %v2631
        %v2674 = vadd.f32 %v2284, %v2636
        %v2675 = vadd.f32 %v2285, %v2641
        %s2676 = scalar_lea.vmem [#allocation2], 48
        %v2677 = vld [vmem:[%s2676] sm:$0xff]
        %v2678 = vld [vmem:[%s2676 + $0x8] sm:$0xff]
        %v2679 = vld [vmem:[%s2676 + $0x18] sm:$0xff]
        %v2680 = vld [vmem:[%s2676 + $0x20] sm:$0xff]
        %v2681 = vld [vmem:[%s2676 + $0x30] sm:$0xff]
        %v2682 = vld [vmem:[%s2676 + $0x38] sm:$0xff]
        %v2683 = vld [vmem:[%s2676 + $0x48] sm:$0xff]
        %v2684 = vld [vmem:[%s2676 + $0x50] sm:$0xff]
        %v2685 = vld [vmem:[%s2676 + $0x60] sm:$0xff]
        %v2686 = vld [vmem:[%s2676 + $0x68] sm:$0xff]
        %v2687 = vld [vmem:[%s2676 + $0x78] sm:$0xff]
        %v2688 = vld [vmem:[%s2676 + $0x80] sm:$0xff]
        %v2689 = vld [vmem:[%s2676 + $0x90] sm:$0xff]
        %v2690 = vld [vmem:[%s2676 + $0x98] sm:$0xff]
        %v2691 = vld [vmem:[%s2676 + $0xa8] sm:$0xff]
        %v2692 = vld [vmem:[%s2676 + $0xb0] sm:$0xff]
        %v2693 = vld [vmem:[%s2676 + $0xc0] sm:$0xff]
        %v2694 = vld [vmem:[%s2676 + $0xc8] sm:$0xff]
        %v2695 = vld [vmem:[%s2676 + $0xd8] sm:$0xff]
        %v2696 = vld [vmem:[%s2676 + $0xe0] sm:$0xff]
        %v2697 = vld [vmem:[%s2676 + $0xf0] sm:$0xff]
        %v2698 = vld [vmem:[%s2676 + $0xf8] sm:$0xff]
        %v2699 = vld [vmem:[%s2676 + $0x108] sm:$0xff]
        %v2700 = vld [vmem:[%s2676 + $0x110] sm:$0xff]
        %v2701 = vld [vmem:[%s2676 + $0x120] sm:$0xff]
        %v2702 = vld [vmem:[%s2676 + $0x128] sm:$0xff]
        %v2703 = vld [vmem:[%s2676 + $0x138] sm:$0xff]
        %v2704 = vld [vmem:[%s2676 + $0x140] sm:$0xff]
        %v2705 = vld [vmem:[%s2676 + $0x150] sm:$0xff]
        %v2706 = vld [vmem:[%s2676 + $0x158] sm:$0xff]
        %v2707 = vld [vmem:[%s2676 + $0x168] sm:$0xff]
        %v2708 = vld [vmem:[%s2676 + $0x170] sm:$0xff]
        %s2709 = scalar_lea.vmem %s1, 24
        %v2710 = vld [vmem:[%s2709] sm:$0xf]
        %v2712 = vsel %vm223, %v2677, 0
        %v2715 = vsel %vm223, %v2678, 0
        %v2718 = vsel %vm223, %v2679, 0
        %v2721 = vsel %vm223, %v2680, 0
        %v2724 = vsel %vm223, %v2681, 0
        %v2727 = vsel %vm223, %v2682, 0
        %v2730 = vsel %vm223, %v2683, 0
        %v2733 = vsel %vm223, %v2684, 0
        %v2736 = vsel %vm223, %v2685, 0
        %v2739 = vsel %vm223, %v2686, 0
        %v2742 = vsel %vm223, %v2687, 0
        %v2745 = vsel %vm223, %v2688, 0
        %v2748 = vsel %vm223, %v2689, 0
        %v2751 = vsel %vm223, %v2690, 0
        %v2754 = vsel %vm223, %v2691, 0
        %v2757 = vsel %vm223, %v2692, 0
        %v2760 = vsel %vm223, %v2693, 0
        %v2763 = vsel %vm223, %v2694, 0
        %v2766 = vsel %vm223, %v2695, 0
        %v2769 = vsel %vm223, %v2696, 0
        %v2772 = vsel %vm223, %v2697, 0
        %v2775 = vsel %vm223, %v2698, 0
        %v2778 = vsel %vm223, %v2699, 0
        %v2781 = vsel %vm223, %v2700, 0
        %v2784 = vsel %vm223, %v2701, 0
        %v2787 = vsel %vm223, %v2702, 0
        %v2790 = vsel %vm223, %v2703, 0
        %v2793 = vsel %vm223, %v2704, 0
        %v2796 = vsel %vm223, %v2705, 0
        %v2799 = vsel %vm223, %v2706, 0
        %v2802 = vsel %vm223, %v2707, 0
        %v2805 = vsel %vm223, %v2708, 0
        %v2808 = vsel %vm563, %v2710, 0
        %2810 = vmatprep.subr.mxu0 0.0
        %2811 = vmatpush1.msra.mxu0 0.0
        %2812 = vmatprep.subr.mxu0 0.0
        %2813 = vmatpush1.msra.mxu0 0.0
        %2814 = vmatprep.subr.mxu0 0.0
        %2815 = vmatpush1.msra.mxu0 0.0
        %2816 = vmatprep.subr.mxu0 0.0
        %2817 = vmatpush1.msra.mxu0 0.0
        %2818 = vmatprep.subr.mxu0 0.0
        %2819 = vmatpush1.msra.mxu0 0.0
        %2820 = vmatprep.subr.mxu0 0.0
        %2821 = vmatpush1.msra.mxu0 0.0
        %2822 = vmatprep.subr.mxu0 0.0
        %2823 = vmatpush1.msra.mxu0 0.0
        %2824 = vmatprep.subr.mxu0 0.0
        %2825 = vmatpush1.msra.mxu0 0.0
        %2826 = vmatprep.subr.mxu0 0.0
        %2827 = vmatpush1.msra.mxu0 0.0
        %2828 = vmatprep.subr.mxu0 0.0
        %2829 = vmatpush1.msra.mxu0 0.0
        %2830 = vmatprep.subr.mxu0 0.0
        %2831 = vmatpush1.msra.mxu0 0.0
        %2832 = vmatprep.subr.mxu0 0.0
        %2833 = vmatpush1.msra.mxu0 0.0
        %2834 = vmatprep.subr.mxu0 0.0
        %2835 = vmatpush1.msra.mxu0 0.0
        %2836 = vmatprep.subr.mxu0 0.0
        %2837 = vmatpush1.msra.mxu0 0.0
        %2838 = vmatprep.subr.mxu0 0.0
        %2839 = vmatpush1.msra.mxu0 0.0
        %2840 = vmatprep.subr.mxu0 0.0
        %2841 = vmatpush1.msra.mxu0 %v2808
        %2842 = vmatprep.subr.mxu0 0.0
        %2843 = vmatpush2.msra.mxu0 0.0
        %2844 = vmatprep.subr.mxu0 0.0
        %2845 = vmatpush2.msra.mxu0 0.0
        %2846 = vmatprep.subr.mxu0 0.0
        %2847 = vmatpush2.msra.mxu0 0.0
        %2848 = vmatprep.subr.mxu0 0.0
        %2849 = vmatpush2.msra.mxu0 0.0
        %2850 = vmatprep.subr.mxu0 0.0
        %2851 = vmatpush2.msra.mxu0 0.0
        %2852 = vmatprep.subr.mxu0 0.0
        %2853 = vmatpush2.msra.mxu0 0.0
        %2854 = vmatprep.subr.mxu0 0.0
        %2855 = vmatpush2.msra.mxu0 0.0
        %2856 = vmatprep.subr.mxu0 0.0
        %2857 = vmatpush2.msra.mxu0 0.0
        %2858 = vmatprep.subr.mxu0 0.0
        %2859 = vmatpush2.msra.mxu0 0.0
        %2860 = vmatprep.subr.mxu0 0.0
        %2861 = vmatpush2.msra.mxu0 0.0
        %2862 = vmatprep.subr.mxu0 0.0
        %2863 = vmatpush2.msra.mxu0 0.0
        %2864 = vmatprep.subr.mxu0 0.0
        %2865 = vmatpush2.msra.mxu0 0.0
        %2866 = vmatprep.subr.mxu0 0.0
        %2867 = vmatpush2.msra.mxu0 0.0
        %2868 = vmatprep.subr.mxu0 0.0
        %2869 = vmatpush2.msra.mxu0 0.0
        %2870 = vmatprep.subr.mxu0 0.0
        %2871 = vmatpush2.msra.mxu0 0.0
        %2872 = vmatprep.subr.mxu0 0.0
        %2873 = vmatpush2.msra.mxu0 0.0
        %2874 = vmatprep.mubr.f32.mxu0 0.0
        %2875 = vmatmul.mubr.f32.gmra.mxu0 %v2712
        %v2876 = vpop.f32.mrf.mxu0
        %v2877 = vadd.f32 0.0, %v2876
        %v2878 = vpop.f32.mrf.mxu0
        %2879 = vmatprep.mubr.f32.mxu0 0.0
        %2880 = vmatmul.mubr.f32.gmra.mxu0 %v2715
        %v2881 = vpop.f32.mrf.mxu0
        %v2882 = vadd.f32 0.0, %v2881
        %v2883 = vpop.f32.mrf.mxu0
        %2884 = vmatprep.mubr.f32.mxu0 0.0
        %2885 = vmatmul.mubr.f32.gmra.mxu0 %v2718
        %v2886 = vpop.f32.mrf.mxu0
        %v2887 = vadd.f32 0.0, %v2886
        %v2888 = vpop.f32.mrf.mxu0
        %2889 = vmatprep.mubr.f32.mxu0 0.0
        %2890 = vmatmul.mubr.f32.gmra.mxu0 %v2721
        %v2891 = vpop.f32.mrf.mxu0
        %v2892 = vadd.f32 0.0, %v2891
        %v2893 = vpop.f32.mrf.mxu0
        %2894 = vmatprep.mubr.f32.mxu0 0.0
        %2895 = vmatmul.mubr.f32.gmra.mxu0 %v2724
        %v2896 = vpop.f32.mrf.mxu0
        %v2897 = vadd.f32 0.0, %v2896
        %v2898 = vpop.f32.mrf.mxu0
        %2899 = vmatprep.mubr.f32.mxu0 0.0
        %2900 = vmatmul.mubr.f32.gmra.mxu0 %v2727
        %v2901 = vpop.f32.mrf.mxu0
        %v2902 = vadd.f32 0.0, %v2901
        %v2903 = vpop.f32.mrf.mxu0
        %2904 = vmatprep.mubr.f32.mxu0 0.0
        %2905 = vmatmul.mubr.f32.gmra.mxu0 %v2730
        %v2906 = vpop.f32.mrf.mxu0
        %v2907 = vadd.f32 0.0, %v2906
        %v2908 = vpop.f32.mrf.mxu0
        %2909 = vmatprep.mubr.f32.mxu0 0.0
        %2910 = vmatmul.mubr.f32.gmra.mxu0 %v2733
        %v2911 = vpop.f32.mrf.mxu0
        %v2912 = vadd.f32 0.0, %v2911
        %v2913 = vpop.f32.mrf.mxu0
        %2914 = vmatprep.mubr.f32.mxu0 0.0
        %2915 = vmatmul.mubr.f32.gmra.mxu0 %v2736
        %v2916 = vpop.f32.mrf.mxu0
        %v2917 = vadd.f32 0.0, %v2916
        %v2918 = vpop.f32.mrf.mxu0
        %2919 = vmatprep.mubr.f32.mxu0 0.0
        %2920 = vmatmul.mubr.f32.gmra.mxu0 %v2739
        %v2921 = vpop.f32.mrf.mxu0
        %v2922 = vadd.f32 0.0, %v2921
        %v2923 = vpop.f32.mrf.mxu0
        %2924 = vmatprep.mubr.f32.mxu0 0.0
        %2925 = vmatmul.mubr.f32.gmra.mxu0 %v2742
        %v2926 = vpop.f32.mrf.mxu0
        %v2927 = vadd.f32 0.0, %v2926
        %v2928 = vpop.f32.mrf.mxu0
        %2929 = vmatprep.mubr.f32.mxu0 0.0
        %2930 = vmatmul.mubr.f32.gmra.mxu0 %v2745
        %v2931 = vpop.f32.mrf.mxu0
        %v2932 = vadd.f32 0.0, %v2931
        %v2933 = vpop.f32.mrf.mxu0
        %2934 = vmatprep.mubr.f32.mxu0 0.0
        %2935 = vmatmul.mubr.f32.gmra.mxu0 %v2748
        %v2936 = vpop.f32.mrf.mxu0
        %v2937 = vadd.f32 0.0, %v2936
        %v2938 = vpop.f32.mrf.mxu0
        %2939 = vmatprep.mubr.f32.mxu0 0.0
        %2940 = vmatmul.mubr.f32.gmra.mxu0 %v2751
        %v2941 = vpop.f32.mrf.mxu0
        %v2942 = vadd.f32 0.0, %v2941
        %v2943 = vpop.f32.mrf.mxu0
        %2944 = vmatprep.mubr.f32.mxu0 0.0
        %2945 = vmatmul.mubr.f32.gmra.mxu0 %v2754
        %v2946 = vpop.f32.mrf.mxu0
        %v2947 = vadd.f32 0.0, %v2946
        %v2948 = vpop.f32.mrf.mxu0
        %2949 = vmatprep.mubr.f32.mxu0 0.0
        %2950 = vmatmul.mubr.f32.gmra.mxu0 %v2757
        %v2951 = vpop.f32.mrf.mxu0
        %v2952 = vadd.f32 0.0, %v2951
        %v2953 = vpop.f32.mrf.mxu0
        %2954 = vmatprep.mubr.f32.mxu0 0.0
        %2955 = vmatmul.mubr.f32.gmra.mxu0 %v2760
        %v2956 = vpop.f32.mrf.mxu0
        %v2957 = vadd.f32 0.0, %v2956
        %v2958 = vpop.f32.mrf.mxu0
        %2959 = vmatprep.mubr.f32.mxu0 0.0
        %2960 = vmatmul.mubr.f32.gmra.mxu0 %v2763
        %v2961 = vpop.f32.mrf.mxu0
        %v2962 = vadd.f32 0.0, %v2961
        %v2963 = vpop.f32.mrf.mxu0
        %2964 = vmatprep.mubr.f32.mxu0 0.0
        %2965 = vmatmul.mubr.f32.gmra.mxu0 %v2766
        %v2966 = vpop.f32.mrf.mxu0
        %v2967 = vadd.f32 0.0, %v2966
        %v2968 = vpop.f32.mrf.mxu0
        %2969 = vmatprep.mubr.f32.mxu0 0.0
        %2970 = vmatmul.mubr.f32.gmra.mxu0 %v2769
        %v2971 = vpop.f32.mrf.mxu0
        %v2972 = vadd.f32 0.0, %v2971
        %v2973 = vpop.f32.mrf.mxu0
        %2974 = vmatprep.mubr.f32.mxu0 0.0
        %2975 = vmatmul.mubr.f32.gmra.mxu0 %v2772
        %v2976 = vpop.f32.mrf.mxu0
        %v2977 = vadd.f32 0.0, %v2976
        %v2978 = vpop.f32.mrf.mxu0
        %2979 = vmatprep.mubr.f32.mxu0 0.0
        %2980 = vmatmul.mubr.f32.gmra.mxu0 %v2775
        %v2981 = vpop.f32.mrf.mxu0
        %v2982 = vadd.f32 0.0, %v2981
        %v2983 = vpop.f32.mrf.mxu0
        %2984 = vmatprep.mubr.f32.mxu0 0.0
        %2985 = vmatmul.mubr.f32.gmra.mxu0 %v2778
        %v2986 = vpop.f32.mrf.mxu0
        %v2987 = vadd.f32 0.0, %v2986
        %v2988 = vpop.f32.mrf.mxu0
        %2989 = vmatprep.mubr.f32.mxu0 0.0
        %2990 = vmatmul.mubr.f32.gmra.mxu0 %v2781
        %v2991 = vpop.f32.mrf.mxu0
        %v2992 = vadd.f32 0.0, %v2991
        %v2993 = vpop.f32.mrf.mxu0
        %2994 = vmatprep.mubr.f32.mxu0 0.0
        %2995 = vmatmul.mubr.f32.gmra.mxu0 %v2784
        %v2996 = vpop.f32.mrf.mxu0
        %v2997 = vadd.f32 0.0, %v2996
        %v2998 = vpop.f32.mrf.mxu0
        %2999 = vmatprep.mubr.f32.mxu0 0.0
        %3000 = vmatmul.mubr.f32.gmra.mxu0 %v2787
        %v3001 = vpop.f32.mrf.mxu0
        %v3002 = vadd.f32 0.0, %v3001
        %v3003 = vpop.f32.mrf.mxu0
        %3004 = vmatprep.mubr.f32.mxu0 0.0
        %3005 = vmatmul.mubr.f32.gmra.mxu0 %v2790
        %v3006 = vpop.f32.mrf.mxu0
        %v3007 = vadd.f32 0.0, %v3006
        %v3008 = vpop.f32.mrf.mxu0
        %3009 = vmatprep.mubr.f32.mxu0 0.0
        %3010 = vmatmul.mubr.f32.gmra.mxu0 %v2793
        %v3011 = vpop.f32.mrf.mxu0
        %v3012 = vadd.f32 0.0, %v3011
        %v3013 = vpop.f32.mrf.mxu0
        %3014 = vmatprep.mubr.f32.mxu0 0.0
        %3015 = vmatmul.mubr.f32.gmra.mxu0 %v2796
        %v3016 = vpop.f32.mrf.mxu0
        %v3017 = vadd.f32 0.0, %v3016
        %v3018 = vpop.f32.mrf.mxu0
        %3019 = vmatprep.mubr.f32.mxu0 0.0
        %3020 = vmatmul.mubr.f32.gmra.mxu0 %v2799
        %v3021 = vpop.f32.mrf.mxu0
        %v3022 = vadd.f32 0.0, %v3021
        %v3023 = vpop.f32.mrf.mxu0
        %3024 = vmatprep.mubr.f32.mxu0 0.0
        %3025 = vmatmul.mubr.f32.gmra.mxu0 %v2802
        %v3026 = vpop.f32.mrf.mxu0
        %v3027 = vadd.f32 0.0, %v3026
        %v3028 = vpop.f32.mrf.mxu0
        %3029 = vmatprep.mubr.f32.mxu0 0.0
        %3030 = vmatmul.mubr.f32.gmra.mxu0 %v2805
        %v3031 = vpop.f32.mrf.mxu0
        %v3032 = vadd.f32 0.0, %v3031
        %v3033 = vpop.f32.mrf.mxu0
        %3034 = vdwg.mxu0
        %v3035 = vadd.f32 %v2644, %v2877
        %v3036 = vadd.f32 %v2645, %v2882
        %v3037 = vadd.f32 %v2646, %v2887
        %v3038 = vadd.f32 %v2647, %v2892
        %v3039 = vadd.f32 %v2648, %v2897
        %v3040 = vadd.f32 %v2649, %v2902
        %v3041 = vadd.f32 %v2650, %v2907
        %v3042 = vadd.f32 %v2651, %v2912
        %v3043 = vadd.f32 %v2652, %v2917
        %v3044 = vadd.f32 %v2653, %v2922
        %v3045 = vadd.f32 %v2654, %v2927
        %v3046 = vadd.f32 %v2655, %v2932
        %v3047 = vadd.f32 %v2656, %v2937
        %v3048 = vadd.f32 %v2657, %v2942
        %v3049 = vadd.f32 %v2658, %v2947
        %v3050 = vadd.f32 %v2659, %v2952
        %v3051 = vadd.f32 %v2660, %v2957
        %v3052 = vadd.f32 %v2661, %v2962
        %v3053 = vadd.f32 %v2662, %v2967
        %v3054 = vadd.f32 %v2663, %v2972
        %v3055 = vadd.f32 %v2664, %v2977
        %v3056 = vadd.f32 %v2665, %v2982
        %v3057 = vadd.f32 %v2666, %v2987
        %v3058 = vadd.f32 %v2667, %v2992
        %v3059 = vadd.f32 %v2668, %v2997
        %v3060 = vadd.f32 %v2669, %v3002
        %v3061 = vadd.f32 %v2670, %v3007
        %v3062 = vadd.f32 %v2671, %v3012
        %v3063 = vadd.f32 %v2672, %v3017
        %v3064 = vadd.f32 %v2673, %v3022
        %v3065 = vadd.f32 %v2674, %v3027
        %v3066 = vadd.f32 %v2675, %v3032
        %v3067 = vld [vmem:[%s2676 + $0x1] sm:$0xff]
        %v3068 = vld [vmem:[%s2676 + $0x9] sm:$0xff]
        %v3069 = vld [vmem:[%s2676 + $0x19] sm:$0xff]
        %v3070 = vld [vmem:[%s2676 + $0x21] sm:$0xff]
        %v3071 = vld [vmem:[%s2676 + $0x31] sm:$0xff]
        %v3072 = vld [vmem:[%s2676 + $0x39] sm:$0xff]
        %v3073 = vld [vmem:[%s2676 + $0x49] sm:$0xff]
        %v3074 = vld [vmem:[%s2676 + $0x51] sm:$0xff]
        %v3075 = vld [vmem:[%s2676 + $0x61] sm:$0xff]
        %v3076 = vld [vmem:[%s2676 + $0x69] sm:$0xff]
        %v3077 = vld [vmem:[%s2676 + $0x79] sm:$0xff]
        %v3078 = vld [vmem:[%s2676 + $0x81] sm:$0xff]
        %v3079 = vld [vmem:[%s2676 + $0x91] sm:$0xff]
        %v3080 = vld [vmem:[%s2676 + $0x99] sm:$0xff]
        %v3081 = vld [vmem:[%s2676 + $0xa9] sm:$0xff]
        %v3082 = vld [vmem:[%s2676 + $0xb1] sm:$0xff]
        %v3083 = vld [vmem:[%s2676 + $0xc1] sm:$0xff]
        %v3084 = vld [vmem:[%s2676 + $0xc9] sm:$0xff]
        %v3085 = vld [vmem:[%s2676 + $0xd9] sm:$0xff]
        %v3086 = vld [vmem:[%s2676 + $0xe1] sm:$0xff]
        %v3087 = vld [vmem:[%s2676 + $0xf1] sm:$0xff]
        %v3088 = vld [vmem:[%s2676 + $0xf9] sm:$0xff]
        %v3089 = vld [vmem:[%s2676 + $0x109] sm:$0xff]
        %v3090 = vld [vmem:[%s2676 + $0x111] sm:$0xff]
        %v3091 = vld [vmem:[%s2676 + $0x121] sm:$0xff]
        %v3092 = vld [vmem:[%s2676 + $0x129] sm:$0xff]
        %v3093 = vld [vmem:[%s2676 + $0x139] sm:$0xff]
        %v3094 = vld [vmem:[%s2676 + $0x141] sm:$0xff]
        %v3095 = vld [vmem:[%s2676 + $0x151] sm:$0xff]
        %v3096 = vld [vmem:[%s2676 + $0x159] sm:$0xff]
        %v3097 = vld [vmem:[%s2676 + $0x169] sm:$0xff]
        %v3098 = vld [vmem:[%s2676 + $0x171] sm:$0xff]
        %s3099 = scalar_lea.vmem %s1, 28
        %v3100 = vld [vmem:[%s3099] sm:$0xf]
        %v3102 = vsel %vm223, %v3067, 0
        %v3105 = vsel %vm223, %v3068, 0
        %v3108 = vsel %vm223, %v3069, 0
        %v3111 = vsel %vm223, %v3070, 0
        %v3114 = vsel %vm223, %v3071, 0
        %v3117 = vsel %vm223, %v3072, 0
        %v3120 = vsel %vm223, %v3073, 0
        %v3123 = vsel %vm223, %v3074, 0
        %v3126 = vsel %vm223, %v3075, 0
        %v3129 = vsel %vm223, %v3076, 0
        %v3132 = vsel %vm223, %v3077, 0
        %v3135 = vsel %vm223, %v3078, 0
        %v3138 = vsel %vm223, %v3079, 0
        %v3141 = vsel %vm223, %v3080, 0
        %v3144 = vsel %vm223, %v3081, 0
        %v3147 = vsel %vm223, %v3082, 0
        %v3150 = vsel %vm223, %v3083, 0
        %v3153 = vsel %vm223, %v3084, 0
        %v3156 = vsel %vm223, %v3085, 0
        %v3159 = vsel %vm223, %v3086, 0
        %v3162 = vsel %vm223, %v3087, 0
        %v3165 = vsel %vm223, %v3088, 0
        %v3168 = vsel %vm223, %v3089, 0
        %v3171 = vsel %vm223, %v3090, 0
        %v3174 = vsel %vm223, %v3091, 0
        %v3177 = vsel %vm223, %v3092, 0
        %v3180 = vsel %vm223, %v3093, 0
        %v3183 = vsel %vm223, %v3094, 0
        %v3186 = vsel %vm223, %v3095, 0
        %v3189 = vsel %vm223, %v3096, 0
        %v3192 = vsel %vm223, %v3097, 0
        %v3195 = vsel %vm223, %v3098, 0
        %v3198 = vsel %vm563, %v3100, 0
        %3200 = vmatprep.subr.mxu0 0.0
        %3201 = vmatpush1.msra.mxu0 0.0
        %3202 = vmatprep.subr.mxu0 0.0
        %3203 = vmatpush1.msra.mxu0 0.0
        %3204 = vmatprep.subr.mxu0 0.0
        %3205 = vmatpush1.msra.mxu0 0.0
        %3206 = vmatprep.subr.mxu0 0.0
        %3207 = vmatpush1.msra.mxu0 0.0
        %3208 = vmatprep.subr.mxu0 0.0
        %3209 = vmatpush1.msra.mxu0 0.0
        %3210 = vmatprep.subr.mxu0 0.0
        %3211 = vmatpush1.msra.mxu0 0.0
        %3212 = vmatprep.subr.mxu0 0.0
        %3213 = vmatpush1.msra.mxu0 0.0
        %3214 = vmatprep.subr.mxu0 0.0
        %3215 = vmatpush1.msra.mxu0 0.0
        %3216 = vmatprep.subr.mxu0 0.0
        %3217 = vmatpush1.msra.mxu0 0.0
        %3218 = vmatprep.subr.mxu0 0.0
        %3219 = vmatpush1.msra.mxu0 0.0
        %3220 = vmatprep.subr.mxu0 0.0
        %3221 = vmatpush1.msra.mxu0 0.0
        %3222 = vmatprep.subr.mxu0 0.0
        %3223 = vmatpush1.msra.mxu0 0.0
        %3224 = vmatprep.subr.mxu0 0.0
        %3225 = vmatpush1.msra.mxu0 0.0
        %3226 = vmatprep.subr.mxu0 0.0
        %3227 = vmatpush1.msra.mxu0 0.0
        %3228 = vmatprep.subr.mxu0 0.0
        %3229 = vmatpush1.msra.mxu0 0.0
        %3230 = vmatprep.subr.mxu0 0.0
        %3231 = vmatpush1.msra.mxu0 %v3198
        %3232 = vmatprep.subr.mxu0 0.0
        %3233 = vmatpush2.msra.mxu0 0.0
        %3234 = vmatprep.subr.mxu0 0.0
        %3235 = vmatpush2.msra.mxu0 0.0
        %3236 = vmatprep.subr.mxu0 0.0
        %3237 = vmatpush2.msra.mxu0 0.0
        %3238 = vmatprep.subr.mxu0 0.0
        %3239 = vmatpush2.msra.mxu0 0.0
        %3240 = vmatprep.subr.mxu0 0.0
        %3241 = vmatpush2.msra.mxu0 0.0
        %3242 = vmatprep.subr.mxu0 0.0
        %3243 = vmatpush2.msra.mxu0 0.0
        %3244 = vmatprep.subr.mxu0 0.0
        %3245 = vmatpush2.msra.mxu0 0.0
        %3246 = vmatprep.subr.mxu0 0.0
        %3247 = vmatpush2.msra.mxu0 0.0
        %3248 = vmatprep.subr.mxu0 0.0
        %3249 = vmatpush2.msra.mxu0 0.0
        %3250 = vmatprep.subr.mxu0 0.0
        %3251 = vmatpush2.msra.mxu0 0.0
        %3252 = vmatprep.subr.mxu0 0.0
        %3253 = vmatpush2.msra.mxu0 0.0
        %3254 = vmatprep.subr.mxu0 0.0
        %3255 = vmatpush2.msra.mxu0 0.0
        %3256 = vmatprep.subr.mxu0 0.0
        %3257 = vmatpush2.msra.mxu0 0.0
        %3258 = vmatprep.subr.mxu0 0.0
        %3259 = vmatpush2.msra.mxu0 0.0
        %3260 = vmatprep.subr.mxu0 0.0
        %3261 = vmatpush2.msra.mxu0 0.0
        %3262 = vmatprep.subr.mxu0 0.0
        %3263 = vmatpush2.msra.mxu0 0.0
        %3264 = vmatprep.mubr.f32.mxu0 0.0
        %3265 = vmatmul.mubr.f32.gmra.mxu0 %v3102
        %v3266 = vpop.f32.mrf.mxu0
        %v3267 = vadd.f32 0.0, %v3266
        %v3268 = vpop.f32.mrf.mxu0
        %3269 = vmatprep.mubr.f32.mxu0 0.0
        %3270 = vmatmul.mubr.f32.gmra.mxu0 %v3105
        %v3271 = vpop.f32.mrf.mxu0
        %v3272 = vadd.f32 0.0, %v3271
        %v3273 = vpop.f32.mrf.mxu0
        %3274 = vmatprep.mubr.f32.mxu0 0.0
        %3275 = vmatmul.mubr.f32.gmra.mxu0 %v3108
        %v3276 = vpop.f32.mrf.mxu0
        %v3277 = vadd.f32 0.0, %v3276
        %v3278 = vpop.f32.mrf.mxu0
        %3279 = vmatprep.mubr.f32.mxu0 0.0
        %3280 = vmatmul.mubr.f32.gmra.mxu0 %v3111
        %v3281 = vpop.f32.mrf.mxu0
        %v3282 = vadd.f32 0.0, %v3281
        %v3283 = vpop.f32.mrf.mxu0
        %3284 = vmatprep.mubr.f32.mxu0 0.0
        %3285 = vmatmul.mubr.f32.gmra.mxu0 %v3114
        %v3286 = vpop.f32.mrf.mxu0
        %v3287 = vadd.f32 0.0, %v3286
        %v3288 = vpop.f32.mrf.mxu0
        %3289 = vmatprep.mubr.f32.mxu0 0.0
        %3290 = vmatmul.mubr.f32.gmra.mxu0 %v3117
        %v3291 = vpop.f32.mrf.mxu0
        %v3292 = vadd.f32 0.0, %v3291
        %v3293 = vpop.f32.mrf.mxu0
        %3294 = vmatprep.mubr.f32.mxu0 0.0
        %3295 = vmatmul.mubr.f32.gmra.mxu0 %v3120
        %v3296 = vpop.f32.mrf.mxu0
        %v3297 = vadd.f32 0.0, %v3296
        %v3298 = vpop.f32.mrf.mxu0
        %3299 = vmatprep.mubr.f32.mxu0 0.0
        %3300 = vmatmul.mubr.f32.gmra.mxu0 %v3123
        %v3301 = vpop.f32.mrf.mxu0
        %v3302 = vadd.f32 0.0, %v3301
        %v3303 = vpop.f32.mrf.mxu0
        %3304 = vmatprep.mubr.f32.mxu0 0.0
        %3305 = vmatmul.mubr.f32.gmra.mxu0 %v3126
        %v3306 = vpop.f32.mrf.mxu0
        %v3307 = vadd.f32 0.0, %v3306
        %v3308 = vpop.f32.mrf.mxu0
        %3309 = vmatprep.mubr.f32.mxu0 0.0
        %3310 = vmatmul.mubr.f32.gmra.mxu0 %v3129
        %v3311 = vpop.f32.mrf.mxu0
        %v3312 = vadd.f32 0.0, %v3311
        %v3313 = vpop.f32.mrf.mxu0
        %3314 = vmatprep.mubr.f32.mxu0 0.0
        %3315 = vmatmul.mubr.f32.gmra.mxu0 %v3132
        %v3316 = vpop.f32.mrf.mxu0
        %v3317 = vadd.f32 0.0, %v3316
        %v3318 = vpop.f32.mrf.mxu0
        %3319 = vmatprep.mubr.f32.mxu0 0.0
        %3320 = vmatmul.mubr.f32.gmra.mxu0 %v3135
        %v3321 = vpop.f32.mrf.mxu0
        %v3322 = vadd.f32 0.0, %v3321
        %v3323 = vpop.f32.mrf.mxu0
        %3324 = vmatprep.mubr.f32.mxu0 0.0
        %3325 = vmatmul.mubr.f32.gmra.mxu0 %v3138
        %v3326 = vpop.f32.mrf.mxu0
        %v3327 = vadd.f32 0.0, %v3326
        %v3328 = vpop.f32.mrf.mxu0
        %3329 = vmatprep.mubr.f32.mxu0 0.0
        %3330 = vmatmul.mubr.f32.gmra.mxu0 %v3141
        %v3331 = vpop.f32.mrf.mxu0
        %v3332 = vadd.f32 0.0, %v3331
        %v3333 = vpop.f32.mrf.mxu0
        %3334 = vmatprep.mubr.f32.mxu0 0.0
        %3335 = vmatmul.mubr.f32.gmra.mxu0 %v3144
        %v3336 = vpop.f32.mrf.mxu0
        %v3337 = vadd.f32 0.0, %v3336
        %v3338 = vpop.f32.mrf.mxu0
        %3339 = vmatprep.mubr.f32.mxu0 0.0
        %3340 = vmatmul.mubr.f32.gmra.mxu0 %v3147
        %v3341 = vpop.f32.mrf.mxu0
        %v3342 = vadd.f32 0.0, %v3341
        %v3343 = vpop.f32.mrf.mxu0
        %3344 = vmatprep.mubr.f32.mxu0 0.0
        %3345 = vmatmul.mubr.f32.gmra.mxu0 %v3150
        %v3346 = vpop.f32.mrf.mxu0
        %v3347 = vadd.f32 0.0, %v3346
        %v3348 = vpop.f32.mrf.mxu0
        %3349 = vmatprep.mubr.f32.mxu0 0.0
        %3350 = vmatmul.mubr.f32.gmra.mxu0 %v3153
        %v3351 = vpop.f32.mrf.mxu0
        %v3352 = vadd.f32 0.0, %v3351
        %v3353 = vpop.f32.mrf.mxu0
        %3354 = vmatprep.mubr.f32.mxu0 0.0
        %3355 = vmatmul.mubr.f32.gmra.mxu0 %v3156
        %v3356 = vpop.f32.mrf.mxu0
        %v3357 = vadd.f32 0.0, %v3356
        %v3358 = vpop.f32.mrf.mxu0
        %3359 = vmatprep.mubr.f32.mxu0 0.0
        %3360 = vmatmul.mubr.f32.gmra.mxu0 %v3159
        %v3361 = vpop.f32.mrf.mxu0
        %v3362 = vadd.f32 0.0, %v3361
        %v3363 = vpop.f32.mrf.mxu0
        %3364 = vmatprep.mubr.f32.mxu0 0.0
        %3365 = vmatmul.mubr.f32.gmra.mxu0 %v3162
        %v3366 = vpop.f32.mrf.mxu0
        %v3367 = vadd.f32 0.0, %v3366
        %v3368 = vpop.f32.mrf.mxu0
        %3369 = vmatprep.mubr.f32.mxu0 0.0
        %3370 = vmatmul.mubr.f32.gmra.mxu0 %v3165
        %v3371 = vpop.f32.mrf.mxu0
        %v3372 = vadd.f32 0.0, %v3371
        %v3373 = vpop.f32.mrf.mxu0
        %3374 = vmatprep.mubr.f32.mxu0 0.0
        %3375 = vmatmul.mubr.f32.gmra.mxu0 %v3168
        %v3376 = vpop.f32.mrf.mxu0
        %v3377 = vadd.f32 0.0, %v3376
        %v3378 = vpop.f32.mrf.mxu0
        %3379 = vmatprep.mubr.f32.mxu0 0.0
        %3380 = vmatmul.mubr.f32.gmra.mxu0 %v3171
        %v3381 = vpop.f32.mrf.mxu0
        %v3382 = vadd.f32 0.0, %v3381
        %v3383 = vpop.f32.mrf.mxu0
        %3384 = vmatprep.mubr.f32.mxu0 0.0
        %3385 = vmatmul.mubr.f32.gmra.mxu0 %v3174
        %v3386 = vpop.f32.mrf.mxu0
        %v3387 = vadd.f32 0.0, %v3386
        %v3388 = vpop.f32.mrf.mxu0
        %3389 = vmatprep.mubr.f32.mxu0 0.0
        %3390 = vmatmul.mubr.f32.gmra.mxu0 %v3177
        %v3391 = vpop.f32.mrf.mxu0
        %v3392 = vadd.f32 0.0, %v3391
        %v3393 = vpop.f32.mrf.mxu0
        %3394 = vmatprep.mubr.f32.mxu0 0.0
        %3395 = vmatmul.mubr.f32.gmra.mxu0 %v3180
        %v3396 = vpop.f32.mrf.mxu0
        %v3397 = vadd.f32 0.0, %v3396
        %v3398 = vpop.f32.mrf.mxu0
        %3399 = vmatprep.mubr.f32.mxu0 0.0
        %3400 = vmatmul.mubr.f32.gmra.mxu0 %v3183
        %v3401 = vpop.f32.mrf.mxu0
        %v3402 = vadd.f32 0.0, %v3401
        %v3403 = vpop.f32.mrf.mxu0
        %3404 = vmatprep.mubr.f32.mxu0 0.0
        %3405 = vmatmul.mubr.f32.gmra.mxu0 %v3186
        %v3406 = vpop.f32.mrf.mxu0
        %v3407 = vadd.f32 0.0, %v3406
        %v3408 = vpop.f32.mrf.mxu0
        %3409 = vmatprep.mubr.f32.mxu0 0.0
        %3410 = vmatmul.mubr.f32.gmra.mxu0 %v3189
        %v3411 = vpop.f32.mrf.mxu0
        %v3412 = vadd.f32 0.0, %v3411
        %v3413 = vpop.f32.mrf.mxu0
        %3414 = vmatprep.mubr.f32.mxu0 0.0
        %3415 = vmatmul.mubr.f32.gmra.mxu0 %v3192
        %v3416 = vpop.f32.mrf.mxu0
        %v3417 = vadd.f32 0.0, %v3416
        %v3418 = vpop.f32.mrf.mxu0
        %3419 = vmatprep.mubr.f32.mxu0 0.0
        %3420 = vmatmul.mubr.f32.gmra.mxu0 %v3195
        %v3421 = vpop.f32.mrf.mxu0
        %v3422 = vadd.f32 0.0, %v3421
        %v3423 = vpop.f32.mrf.mxu0
        %3424 = vdwg.mxu0
        %v3425 = vadd.f32 %v3035, %v3267
        %v3426 = vadd.f32 %v3036, %v3272
        %v3427 = vadd.f32 %v3037, %v3277
        %v3428 = vadd.f32 %v3038, %v3282
        %v3429 = vadd.f32 %v3039, %v3287
        %v3430 = vadd.f32 %v3040, %v3292
        %v3431 = vadd.f32 %v3041, %v3297
        %v3432 = vadd.f32 %v3042, %v3302
        %v3433 = vadd.f32 %v3043, %v3307
        %v3434 = vadd.f32 %v3044, %v3312
        %v3435 = vadd.f32 %v3045, %v3317
        %v3436 = vadd.f32 %v3046, %v3322
        %v3437 = vadd.f32 %v3047, %v3327
        %v3438 = vadd.f32 %v3048, %v3332
        %v3439 = vadd.f32 %v3049, %v3337
        %v3440 = vadd.f32 %v3050, %v3342
        %v3441 = vadd.f32 %v3051, %v3347
        %v3442 = vadd.f32 %v3052, %v3352
        %v3443 = vadd.f32 %v3053, %v3357
        %v3444 = vadd.f32 %v3054, %v3362
        %v3445 = vadd.f32 %v3055, %v3367
        %v3446 = vadd.f32 %v3056, %v3372
        %v3447 = vadd.f32 %v3057, %v3377
        %v3448 = vadd.f32 %v3058, %v3382
        %v3449 = vadd.f32 %v3059, %v3387
        %v3450 = vadd.f32 %v3060, %v3392
        %v3451 = vadd.f32 %v3061, %v3397
        %v3452 = vadd.f32 %v3062, %v3402
        %v3453 = vadd.f32 %v3063, %v3407
        %v3454 = vadd.f32 %v3064, %v3412
        %v3455 = vadd.f32 %v3065, %v3417
        %v3456 = vadd.f32 %v3066, %v3422
        %v3457 = vld [vmem:[%s2676 + $0x2] sm:$0xff]
        %v3458 = vld [vmem:[%s2676 + $0xa] sm:$0xff]
        %v3459 = vld [vmem:[%s2676 + $0x1a] sm:$0xff]
        %v3460 = vld [vmem:[%s2676 + $0x22] sm:$0xff]
        %v3461 = vld [vmem:[%s2676 + $0x32] sm:$0xff]
        %v3462 = vld [vmem:[%s2676 + $0x3a] sm:$0xff]
        %v3463 = vld [vmem:[%s2676 + $0x4a] sm:$0xff]
        %v3464 = vld [vmem:[%s2676 + $0x52] sm:$0xff]
        %v3465 = vld [vmem:[%s2676 + $0x62] sm:$0xff]
        %v3466 = vld [vmem:[%s2676 + $0x6a] sm:$0xff]
        %v3467 = vld [vmem:[%s2676 + $0x7a] sm:$0xff]
        %v3468 = vld [vmem:[%s2676 + $0x82] sm:$0xff]
        %v3469 = vld [vmem:[%s2676 + $0x92] sm:$0xff]
        %v3470 = vld [vmem:[%s2676 + $0x9a] sm:$0xff]
        %v3471 = vld [vmem:[%s2676 + $0xaa] sm:$0xff]
        %v3472 = vld [vmem:[%s2676 + $0xb2] sm:$0xff]
        %v3473 = vld [vmem:[%s2676 + $0xc2] sm:$0xff]
        %v3474 = vld [vmem:[%s2676 + $0xca] sm:$0xff]
        %v3475 = vld [vmem:[%s2676 + $0xda] sm:$0xff]
        %v3476 = vld [vmem:[%s2676 + $0xe2] sm:$0xff]
        %v3477 = vld [vmem:[%s2676 + $0xf2] sm:$0xff]
        %v3478 = vld [vmem:[%s2676 + $0xfa] sm:$0xff]
        %v3479 = vld [vmem:[%s2676 + $0x10a] sm:$0xff]
        %v3480 = vld [vmem:[%s2676 + $0x112] sm:$0xff]
        %v3481 = vld [vmem:[%s2676 + $0x122] sm:$0xff]
        %v3482 = vld [vmem:[%s2676 + $0x12a] sm:$0xff]
        %v3483 = vld [vmem:[%s2676 + $0x13a] sm:$0xff]
        %v3484 = vld [vmem:[%s2676 + $0x142] sm:$0xff]
        %v3485 = vld [vmem:[%s2676 + $0x152] sm:$0xff]
        %v3486 = vld [vmem:[%s2676 + $0x15a] sm:$0xff]
        %v3487 = vld [vmem:[%s2676 + $0x16a] sm:$0xff]
        %v3488 = vld [vmem:[%s2676 + $0x172] sm:$0xff]
        %s3489 = scalar_lea.vmem %s1, 32
        %v3490 = vld [vmem:[%s3489] sm:$0xf]
        %v3492 = vsel %vm223, %v3457, 0
        %v3495 = vsel %vm223, %v3458, 0
        %v3498 = vsel %vm223, %v3459, 0
        %v3501 = vsel %vm223, %v3460, 0
        %v3504 = vsel %vm223, %v3461, 0
        %v3507 = vsel %vm223, %v3462, 0
        %v3510 = vsel %vm223, %v3463, 0
        %v3513 = vsel %vm223, %v3464, 0
        %v3516 = vsel %vm223, %v3465, 0
        %v3519 = vsel %vm223, %v3466, 0
        %v3522 = vsel %vm223, %v3467, 0
        %v3525 = vsel %vm223, %v3468, 0
        %v3528 = vsel %vm223, %v3469, 0
        %v3531 = vsel %vm223, %v3470, 0
        %v3534 = vsel %vm223, %v3471, 0
        %v3537 = vsel %vm223, %v3472, 0
        %v3540 = vsel %vm223, %v3473, 0
        %v3543 = vsel %vm223, %v3474, 0
        %v3546 = vsel %vm223, %v3475, 0
        %v3549 = vsel %vm223, %v3476, 0
        %v3552 = vsel %vm223, %v3477, 0
        %v3555 = vsel %vm223, %v3478, 0
        %v3558 = vsel %vm223, %v3479, 0
        %v3561 = vsel %vm223, %v3480, 0
        %v3564 = vsel %vm223, %v3481, 0
        %v3567 = vsel %vm223, %v3482, 0
        %v3570 = vsel %vm223, %v3483, 0
        %v3573 = vsel %vm223, %v3484, 0
        %v3576 = vsel %vm223, %v3485, 0
        %v3579 = vsel %vm223, %v3486, 0
        %v3582 = vsel %vm223, %v3487, 0
        %v3585 = vsel %vm223, %v3488, 0
        %v3588 = vsel %vm563, %v3490, 0
        %3590 = vmatprep.subr.mxu0 0.0
        %3591 = vmatpush1.msra.mxu0 0.0
        %3592 = vmatprep.subr.mxu0 0.0
        %3593 = vmatpush1.msra.mxu0 0.0
        %3594 = vmatprep.subr.mxu0 0.0
        %3595 = vmatpush1.msra.mxu0 0.0
        %3596 = vmatprep.subr.mxu0 0.0
        %3597 = vmatpush1.msra.mxu0 0.0
        %3598 = vmatprep.subr.mxu0 0.0
        %3599 = vmatpush1.msra.mxu0 0.0
        %3600 = vmatprep.subr.mxu0 0.0
        %3601 = vmatpush1.msra.mxu0 0.0
        %3602 = vmatprep.subr.mxu0 0.0
        %3603 = vmatpush1.msra.mxu0 0.0
        %3604 = vmatprep.subr.mxu0 0.0
        %3605 = vmatpush1.msra.mxu0 0.0
        %3606 = vmatprep.subr.mxu0 0.0
        %3607 = vmatpush1.msra.mxu0 0.0
        %3608 = vmatprep.subr.mxu0 0.0
        %3609 = vmatpush1.msra.mxu0 0.0
        %3610 = vmatprep.subr.mxu0 0.0
        %3611 = vmatpush1.msra.mxu0 0.0
        %3612 = vmatprep.subr.mxu0 0.0
        %3613 = vmatpush1.msra.mxu0 0.0
        %3614 = vmatprep.subr.mxu0 0.0
        %3615 = vmatpush1.msra.mxu0 0.0
        %3616 = vmatprep.subr.mxu0 0.0
        %3617 = vmatpush1.msra.mxu0 0.0
        %3618 = vmatprep.subr.mxu0 0.0
        %3619 = vmatpush1.msra.mxu0 0.0
        %3620 = vmatprep.subr.mxu0 0.0
        %3621 = vmatpush1.msra.mxu0 %v3588
        %3622 = vmatprep.subr.mxu0 0.0
        %3623 = vmatpush2.msra.mxu0 0.0
        %3624 = vmatprep.subr.mxu0 0.0
        %3625 = vmatpush2.msra.mxu0 0.0
        %3626 = vmatprep.subr.mxu0 0.0
        %3627 = vmatpush2.msra.mxu0 0.0
        %3628 = vmatprep.subr.mxu0 0.0
        %3629 = vmatpush2.msra.mxu0 0.0
        %3630 = vmatprep.subr.mxu0 0.0
        %3631 = vmatpush2.msra.mxu0 0.0
        %3632 = vmatprep.subr.mxu0 0.0
        %3633 = vmatpush2.msra.mxu0 0.0
        %3634 = vmatprep.subr.mxu0 0.0
        %3635 = vmatpush2.msra.mxu0 0.0
        %3636 = vmatprep.subr.mxu0 0.0
        %3637 = vmatpush2.msra.mxu0 0.0
        %3638 = vmatprep.subr.mxu0 0.0
        %3639 = vmatpush2.msra.mxu0 0.0
        %3640 = vmatprep.subr.mxu0 0.0
        %3641 = vmatpush2.msra.mxu0 0.0
        %3642 = vmatprep.subr.mxu0 0.0
        %3643 = vmatpush2.msra.mxu0 0.0
        %3644 = vmatprep.subr.mxu0 0.0
        %3645 = vmatpush2.msra.mxu0 0.0
        %3646 = vmatprep.subr.mxu0 0.0
        %3647 = vmatpush2.msra.mxu0 0.0
        %3648 = vmatprep.subr.mxu0 0.0
        %3649 = vmatpush2.msra.mxu0 0.0
        %3650 = vmatprep.subr.mxu0 0.0
        %3651 = vmatpush2.msra.mxu0 0.0
        %3652 = vmatprep.subr.mxu0 0.0
        %3653 = vmatpush2.msra.mxu0 0.0
        %3654 = vmatprep.mubr.f32.mxu0 0.0
        %3655 = vmatmul.mubr.f32.gmra.mxu0 %v3492
        %v3656 = vpop.f32.mrf.mxu0
        %v3657 = vadd.f32 0.0, %v3656
        %v3658 = vpop.f32.mrf.mxu0
        %3659 = vmatprep.mubr.f32.mxu0 0.0
        %3660 = vmatmul.mubr.f32.gmra.mxu0 %v3495
        %v3661 = vpop.f32.mrf.mxu0
        %v3662 = vadd.f32 0.0, %v3661
        %v3663 = vpop.f32.mrf.mxu0
        %3664 = vmatprep.mubr.f32.mxu0 0.0
        %3665 = vmatmul.mubr.f32.gmra.mxu0 %v3498
        %v3666 = vpop.f32.mrf.mxu0
        %v3667 = vadd.f32 0.0, %v3666
        %v3668 = vpop.f32.mrf.mxu0
        %3669 = vmatprep.mubr.f32.mxu0 0.0
        %3670 = vmatmul.mubr.f32.gmra.mxu0 %v3501
        %v3671 = vpop.f32.mrf.mxu0
        %v3672 = vadd.f32 0.0, %v3671
        %v3673 = vpop.f32.mrf.mxu0
        %3674 = vmatprep.mubr.f32.mxu0 0.0
        %3675 = vmatmul.mubr.f32.gmra.mxu0 %v3504
        %v3676 = vpop.f32.mrf.mxu0
        %v3677 = vadd.f32 0.0, %v3676
        %v3678 = vpop.f32.mrf.mxu0
        %3679 = vmatprep.mubr.f32.mxu0 0.0
        %3680 = vmatmul.mubr.f32.gmra.mxu0 %v3507
        %v3681 = vpop.f32.mrf.mxu0
        %v3682 = vadd.f32 0.0, %v3681
        %v3683 = vpop.f32.mrf.mxu0
        %3684 = vmatprep.mubr.f32.mxu0 0.0
        %3685 = vmatmul.mubr.f32.gmra.mxu0 %v3510
        %v3686 = vpop.f32.mrf.mxu0
        %v3687 = vadd.f32 0.0, %v3686
        %v3688 = vpop.f32.mrf.mxu0
        %3689 = vmatprep.mubr.f32.mxu0 0.0
        %3690 = vmatmul.mubr.f32.gmra.mxu0 %v3513
        %v3691 = vpop.f32.mrf.mxu0
        %v3692 = vadd.f32 0.0, %v3691
        %v3693 = vpop.f32.mrf.mxu0
        %3694 = vmatprep.mubr.f32.mxu0 0.0
        %3695 = vmatmul.mubr.f32.gmra.mxu0 %v3516
        %v3696 = vpop.f32.mrf.mxu0
        %v3697 = vadd.f32 0.0, %v3696
        %v3698 = vpop.f32.mrf.mxu0
        %3699 = vmatprep.mubr.f32.mxu0 0.0
        %3700 = vmatmul.mubr.f32.gmra.mxu0 %v3519
        %v3701 = vpop.f32.mrf.mxu0
        %v3702 = vadd.f32 0.0, %v3701
        %v3703 = vpop.f32.mrf.mxu0
        %3704 = vmatprep.mubr.f32.mxu0 0.0
        %3705 = vmatmul.mubr.f32.gmra.mxu0 %v3522
        %v3706 = vpop.f32.mrf.mxu0
        %v3707 = vadd.f32 0.0, %v3706
        %v3708 = vpop.f32.mrf.mxu0
        %3709 = vmatprep.mubr.f32.mxu0 0.0
        %3710 = vmatmul.mubr.f32.gmra.mxu0 %v3525
        %v3711 = vpop.f32.mrf.mxu0
        %v3712 = vadd.f32 0.0, %v3711
        %v3713 = vpop.f32.mrf.mxu0
        %3714 = vmatprep.mubr.f32.mxu0 0.0
        %3715 = vmatmul.mubr.f32.gmra.mxu0 %v3528
        %v3716 = vpop.f32.mrf.mxu0
        %v3717 = vadd.f32 0.0, %v3716
        %v3718 = vpop.f32.mrf.mxu0
        %3719 = vmatprep.mubr.f32.mxu0 0.0
        %3720 = vmatmul.mubr.f32.gmra.mxu0 %v3531
        %v3721 = vpop.f32.mrf.mxu0
        %v3722 = vadd.f32 0.0, %v3721
        %v3723 = vpop.f32.mrf.mxu0
        %3724 = vmatprep.mubr.f32.mxu0 0.0
        %3725 = vmatmul.mubr.f32.gmra.mxu0 %v3534
        %v3726 = vpop.f32.mrf.mxu0
        %v3727 = vadd.f32 0.0, %v3726
        %v3728 = vpop.f32.mrf.mxu0
        %3729 = vmatprep.mubr.f32.mxu0 0.0
        %3730 = vmatmul.mubr.f32.gmra.mxu0 %v3537
        %v3731 = vpop.f32.mrf.mxu0
        %v3732 = vadd.f32 0.0, %v3731
        %v3733 = vpop.f32.mrf.mxu0
        %3734 = vmatprep.mubr.f32.mxu0 0.0
        %3735 = vmatmul.mubr.f32.gmra.mxu0 %v3540
        %v3736 = vpop.f32.mrf.mxu0
        %v3737 = vadd.f32 0.0, %v3736
        %v3738 = vpop.f32.mrf.mxu0
        %3739 = vmatprep.mubr.f32.mxu0 0.0
        %3740 = vmatmul.mubr.f32.gmra.mxu0 %v3543
        %v3741 = vpop.f32.mrf.mxu0
        %v3742 = vadd.f32 0.0, %v3741
        %v3743 = vpop.f32.mrf.mxu0
        %3744 = vmatprep.mubr.f32.mxu0 0.0
        %3745 = vmatmul.mubr.f32.gmra.mxu0 %v3546
        %v3746 = vpop.f32.mrf.mxu0
        %v3747 = vadd.f32 0.0, %v3746
        %v3748 = vpop.f32.mrf.mxu0
        %3749 = vmatprep.mubr.f32.mxu0 0.0
        %3750 = vmatmul.mubr.f32.gmra.mxu0 %v3549
        %v3751 = vpop.f32.mrf.mxu0
        %v3752 = vadd.f32 0.0, %v3751
        %v3753 = vpop.f32.mrf.mxu0
        %3754 = vmatprep.mubr.f32.mxu0 0.0
        %3755 = vmatmul.mubr.f32.gmra.mxu0 %v3552
        %v3756 = vpop.f32.mrf.mxu0
        %v3757 = vadd.f32 0.0, %v3756
        %v3758 = vpop.f32.mrf.mxu0
        %3759 = vmatprep.mubr.f32.mxu0 0.0
        %3760 = vmatmul.mubr.f32.gmra.mxu0 %v3555
        %v3761 = vpop.f32.mrf.mxu0
        %v3762 = vadd.f32 0.0, %v3761
        %v3763 = vpop.f32.mrf.mxu0
        %3764 = vmatprep.mubr.f32.mxu0 0.0
        %3765 = vmatmul.mubr.f32.gmra.mxu0 %v3558
        %v3766 = vpop.f32.mrf.mxu0
        %v3767 = vadd.f32 0.0, %v3766
        %v3768 = vpop.f32.mrf.mxu0
        %3769 = vmatprep.mubr.f32.mxu0 0.0
        %3770 = vmatmul.mubr.f32.gmra.mxu0 %v3561
        %v3771 = vpop.f32.mrf.mxu0
        %v3772 = vadd.f32 0.0, %v3771
        %v3773 = vpop.f32.mrf.mxu0
        %3774 = vmatprep.mubr.f32.mxu0 0.0
        %3775 = vmatmul.mubr.f32.gmra.mxu0 %v3564
        %v3776 = vpop.f32.mrf.mxu0
        %v3777 = vadd.f32 0.0, %v3776
        %v3778 = vpop.f32.mrf.mxu0
        %3779 = vmatprep.mubr.f32.mxu0 0.0
        %3780 = vmatmul.mubr.f32.gmra.mxu0 %v3567
        %v3781 = vpop.f32.mrf.mxu0
        %v3782 = vadd.f32 0.0, %v3781
        %v3783 = vpop.f32.mrf.mxu0
        %3784 = vmatprep.mubr.f32.mxu0 0.0
        %3785 = vmatmul.mubr.f32.gmra.mxu0 %v3570
        %v3786 = vpop.f32.mrf.mxu0
        %v3787 = vadd.f32 0.0, %v3786
        %v3788 = vpop.f32.mrf.mxu0
        %3789 = vmatprep.mubr.f32.mxu0 0.0
        %3790 = vmatmul.mubr.f32.gmra.mxu0 %v3573
        %v3791 = vpop.f32.mrf.mxu0
        %v3792 = vadd.f32 0.0, %v3791
        %v3793 = vpop.f32.mrf.mxu0
        %3794 = vmatprep.mubr.f32.mxu0 0.0
        %3795 = vmatmul.mubr.f32.gmra.mxu0 %v3576
        %v3796 = vpop.f32.mrf.mxu0
        %v3797 = vadd.f32 0.0, %v3796
        %v3798 = vpop.f32.mrf.mxu0
        %3799 = vmatprep.mubr.f32.mxu0 0.0
        %3800 = vmatmul.mubr.f32.gmra.mxu0 %v3579
        %v3801 = vpop.f32.mrf.mxu0
        %v3802 = vadd.f32 0.0, %v3801
        %v3803 = vpop.f32.mrf.mxu0
        %3804 = vmatprep.mubr.f32.mxu0 0.0
        %3805 = vmatmul.mubr.f32.gmra.mxu0 %v3582
        %v3806 = vpop.f32.mrf.mxu0
        %v3807 = vadd.f32 0.0, %v3806
        %v3808 = vpop.f32.mrf.mxu0
        %3809 = vmatprep.mubr.f32.mxu0 0.0
        %3810 = vmatmul.mubr.f32.gmra.mxu0 %v3585
        %v3811 = vpop.f32.mrf.mxu0
        %v3812 = vadd.f32 0.0, %v3811
        %v3813 = vpop.f32.mrf.mxu0
        %3814 = vdwg.mxu0
        %v3815 = vadd.f32 %v3425, %v3657
        %v3816 = vadd.f32 %v3426, %v3662
        %v3817 = vadd.f32 %v3427, %v3667
        %v3818 = vadd.f32 %v3428, %v3672
        %v3819 = vadd.f32 %v3429, %v3677
        %v3820 = vadd.f32 %v3430, %v3682
        %v3821 = vadd.f32 %v3431, %v3687
        %v3822 = vadd.f32 %v3432, %v3692
        %v3823 = vadd.f32 %v3433, %v3697
        %v3824 = vadd.f32 %v3434, %v3702
        %v3825 = vadd.f32 %v3435, %v3707
        %v3826 = vadd.f32 %v3436, %v3712
        %v3827 = vadd.f32 %v3437, %v3717
        %v3828 = vadd.f32 %v3438, %v3722
        %v3829 = vadd.f32 %v3439, %v3727
        %v3830 = vadd.f32 %v3440, %v3732
        %v3831 = vadd.f32 %v3441, %v3737
        %v3832 = vadd.f32 %v3442, %v3742
        %v3833 = vadd.f32 %v3443, %v3747
        %v3834 = vadd.f32 %v3444, %v3752
        %v3835 = vadd.f32 %v3445, %v3757
        %v3836 = vadd.f32 %v3446, %v3762
        %v3837 = vadd.f32 %v3447, %v3767
        %v3838 = vadd.f32 %v3448, %v3772
        %v3839 = vadd.f32 %v3449, %v3777
        %v3840 = vadd.f32 %v3450, %v3782
        %v3841 = vadd.f32 %v3451, %v3787
        %v3842 = vadd.f32 %v3452, %v3792
        %v3843 = vadd.f32 %v3453, %v3797
        %v3844 = vadd.f32 %v3454, %v3802
        %v3845 = vadd.f32 %v3455, %v3807
        %v3846 = vadd.f32 %v3456, %v3812
        %v3847 = vld [vmem:[%s2] sm:$0x1]
        %v3849 = vlaneseq
        %v3850 = vshrl.u32 %v3849, 7
        %v3851 = vsub.s32 0, %v3850
        %v3852 = vrot.slane %v3847, %v3851
        %v3854 = vadd.f32 %v3815, %v3852
        %v3855 = vadd.f32 %v3816, %v3852
        %v3856 = vadd.f32 %v3817, %v3852
        %v3857 = vadd.f32 %v3818, %v3852
        %v3858 = vadd.f32 %v3819, %v3852
        %v3859 = vadd.f32 %v3820, %v3852
        %v3860 = vadd.f32 %v3821, %v3852
        %v3861 = vadd.f32 %v3822, %v3852
        %v3862 = vadd.f32 %v3823, %v3852
        %v3863 = vadd.f32 %v3824, %v3852
        %v3864 = vadd.f32 %v3825, %v3852
        %v3865 = vadd.f32 %v3826, %v3852
        %v3866 = vadd.f32 %v3827, %v3852
        %v3867 = vadd.f32 %v3828, %v3852
        %v3868 = vadd.f32 %v3829, %v3852
        %v3869 = vadd.f32 %v3830, %v3852
        %v3870 = vadd.f32 %v3831, %v3852
        %v3871 = vadd.f32 %v3832, %v3852
        %v3872 = vadd.f32 %v3833, %v3852
        %v3873 = vadd.f32 %v3834, %v3852
        %v3874 = vadd.f32 %v3835, %v3852
        %v3875 = vadd.f32 %v3836, %v3852
        %v3876 = vadd.f32 %v3837, %v3852
        %v3877 = vadd.f32 %v3838, %v3852
        %v3878 = vadd.f32 %v3839, %v3852
        %v3879 = vadd.f32 %v3840, %v3852
        %v3880 = vadd.f32 %v3841, %v3852
        %v3881 = vadd.f32 %v3842, %v3852
        %v3882 = vadd.f32 %v3843, %v3852
        %v3883 = vadd.f32 %v3844, %v3852
        %v3884 = vadd.f32 %v3845, %v3852
        %v3885 = vadd.f32 %v3846, %v3852
        %s3886 = scalar_lea.vmem [#allocation3], 24
        %3887 = vst.msk [vmem:[%s3886 + $0x1] sm:$0xff] %vm279, %v3854
        %3888 = vst.msk [vmem:[%s3886 + $0x9] sm:$0xff] %vm279, %v3855
        %3889 = vst.msk [vmem:[%s3886 + $0x19] sm:$0xff] %vm279, %v3856
        %3890 = vst.msk [vmem:[%s3886 + $0x21] sm:$0xff] %vm279, %v3857
        %3891 = vst.msk [vmem:[%s3886 + $0x31] sm:$0xff] %vm279, %v3858
        %3892 = vst.msk [vmem:[%s3886 + $0x39] sm:$0xff] %vm279, %v3859
        %3893 = vst.msk [vmem:[%s3886 + $0x49] sm:$0xff] %vm279, %v3860
        %3894 = vst.msk [vmem:[%s3886 + $0x51] sm:$0xff] %vm279, %v3861
        %3895 = vst.msk [vmem:[%s3886 + $0x61] sm:$0xff] %vm279, %v3862
        %3896 = vst.msk [vmem:[%s3886 + $0x69] sm:$0xff] %vm279, %v3863
        %3897 = vst.msk [vmem:[%s3886 + $0x79] sm:$0xff] %vm279, %v3864
        %3898 = vst.msk [vmem:[%s3886 + $0x81] sm:$0xff] %vm279, %v3865
        %3899 = vst.msk [vmem:[%s3886 + $0x91] sm:$0xff] %vm279, %v3866
        %3900 = vst.msk [vmem:[%s3886 + $0x99] sm:$0xff] %vm279, %v3867
        %3901 = vst.msk [vmem:[%s3886 + $0xa9] sm:$0xff] %vm279, %v3868
        %3902 = vst.msk [vmem:[%s3886 + $0xb1] sm:$0xff] %vm279, %v3869
        %3903 = vst.msk [vmem:[%s3886 + $0xc1] sm:$0xff] %vm279, %v3870
        %3904 = vst.msk [vmem:[%s3886 + $0xc9] sm:$0xff] %vm279, %v3871
        %3905 = vst.msk [vmem:[%s3886 + $0xd9] sm:$0xff] %vm279, %v3872
        %3906 = vst.msk [vmem:[%s3886 + $0xe1] sm:$0xff] %vm279, %v3873
        %3907 = vst.msk [vmem:[%s3886 + $0xf1] sm:$0xff] %vm279, %v3874
        %3908 = vst.msk [vmem:[%s3886 + $0xf9] sm:$0xff] %vm279, %v3875
        %3909 = vst.msk [vmem:[%s3886 + $0x109] sm:$0xff] %vm279, %v3876
        %3910 = vst.msk [vmem:[%s3886 + $0x111] sm:$0xff] %vm279, %v3877
        %3911 = vst.msk [vmem:[%s3886 + $0x121] sm:$0xff] %vm279, %v3878
        %3912 = vst.msk [vmem:[%s3886 + $0x129] sm:$0xff] %vm279, %v3879
        %3913 = vst.msk [vmem:[%s3886 + $0x139] sm:$0xff] %vm279, %v3880
        %3914 = vst.msk [vmem:[%s3886 + $0x141] sm:$0xff] %vm279, %v3881
        %3915 = vst.msk [vmem:[%s3886 + $0x151] sm:$0xff] %vm279, %v3882
        %3916 = vst.msk [vmem:[%s3886 + $0x159] sm:$0xff] %vm279, %v3883
        %3917 = vst.msk [vmem:[%s3886 + $0x169] sm:$0xff] %vm279, %v3884
        %3918 = vst.msk [vmem:[%s3886 + $0x171] sm:$0xff] %vm279, %v3885
        %v3919 = vld [vmem:[#allocation3] sm:$0xff]
        %v3920 = vld [vmem:[#allocation3 + $0x8] sm:$0xff]
        %v3921 = vld [vmem:[#allocation3 + $0x18] sm:$0xff]
        %v3922 = vld [vmem:[#allocation3 + $0x20] sm:$0xff]
        %v3923 = vld [vmem:[#allocation3 + $0x30] sm:$0xff]
        %v3924 = vld [vmem:[#allocation3 + $0x38] sm:$0xff]
        %v3925 = vld [vmem:[#allocation3 + $0x48] sm:$0xff]
        %v3926 = vld [vmem:[#allocation3 + $0x50] sm:$0xff]
        %v3927 = vld [vmem:[#allocation3 + $0x60] sm:$0xff]
        %v3928 = vld [vmem:[#allocation3 + $0x68] sm:$0xff]
        %v3929 = vld [vmem:[#allocation3 + $0x78] sm:$0xff]
        %v3930 = vld [vmem:[#allocation3 + $0x80] sm:$0xff]
        %v3931 = vld [vmem:[#allocation3 + $0x90] sm:$0xff]
        %v3932 = vld [vmem:[#allocation3 + $0x98] sm:$0xff]
        %v3933 = vld [vmem:[#allocation3 + $0xa8] sm:$0xff]
        %v3934 = vld [vmem:[#allocation3 + $0xb0] sm:$0xff]
        %v3935 = vld [vmem:[#allocation3 + $0xc0] sm:$0xff]
        %v3936 = vld [vmem:[#allocation3 + $0xc8] sm:$0xff]
        %v3937 = vld [vmem:[#allocation3 + $0xd8] sm:$0xff]
        %v3938 = vld [vmem:[#allocation3 + $0xe0] sm:$0xff]
        %v3939 = vld [vmem:[#allocation3 + $0xf0] sm:$0xff]
        %v3940 = vld [vmem:[#allocation3 + $0xf8] sm:$0xff]
        %v3941 = vld [vmem:[#allocation3 + $0x108] sm:$0xff]
        %v3942 = vld [vmem:[#allocation3 + $0x110] sm:$0xff]
        %v3943 = vld [vmem:[#allocation3 + $0x120] sm:$0xff]
        %v3944 = vld [vmem:[#allocation3 + $0x128] sm:$0xff]
        %v3945 = vld [vmem:[#allocation3 + $0x138] sm:$0xff]
        %v3946 = vld [vmem:[#allocation3 + $0x140] sm:$0xff]
        %v3947 = vld [vmem:[#allocation3 + $0x150] sm:$0xff]
        %v3948 = vld [vmem:[#allocation3 + $0x158] sm:$0xff]
        %v3949 = vld [vmem:[#allocation3 + $0x168] sm:$0xff]
        %v3950 = vld [vmem:[#allocation3 + $0x170] sm:$0xff]
        %v3951 = vld [vmem:[%s3] sm:$0xff]
        %v3952 = vld [vmem:[#allocation3 + $0x1] sm:$0xff]
        %v3953 = vld [vmem:[#allocation3 + $0x9] sm:$0xff]
        %v3954 = vld [vmem:[#allocation3 + $0x19] sm:$0xff]
        %v3955 = vld [vmem:[#allocation3 + $0x21] sm:$0xff]
        %v3956 = vld [vmem:[#allocation3 + $0x31] sm:$0xff]
        %v3957 = vld [vmem:[#allocation3 + $0x39] sm:$0xff]
        %v3958 = vld [vmem:[#allocation3 + $0x49] sm:$0xff]
        %v3959 = vld [vmem:[#allocation3 + $0x51] sm:$0xff]
        %v3960 = vld [vmem:[#allocation3 + $0x61] sm:$0xff]
        %v3961 = vld [vmem:[#allocation3 + $0x69] sm:$0xff]
        %v3962 = vld [vmem:[#allocation3 + $0x79] sm:$0xff]
        %v3963 = vld [vmem:[#allocation3 + $0x81] sm:$0xff]
        %v3964 = vld [vmem:[#allocation3 + $0x91] sm:$0xff]
        %v3965 = vld [vmem:[#allocation3 + $0x99] sm:$0xff]
        %v3966 = vld [vmem:[#allocation3 + $0xa9] sm:$0xff]
        %v3967 = vld [vmem:[#allocation3 + $0xb1] sm:$0xff]
        %v3968 = vld [vmem:[#allocation3 + $0xc1] sm:$0xff]
        %v3969 = vld [vmem:[#allocation3 + $0xc9] sm:$0xff]
        %v3970 = vld [vmem:[#allocation3 + $0xd9] sm:$0xff]
        %v3971 = vld [vmem:[#allocation3 + $0xe1] sm:$0xff]
        %v3972 = vld [vmem:[#allocation3 + $0xf1] sm:$0xff]
        %v3973 = vld [vmem:[#allocation3 + $0xf9] sm:$0xff]
        %v3974 = vld [vmem:[#allocation3 + $0x109] sm:$0xff]
        %v3975 = vld [vmem:[#allocation3 + $0x111] sm:$0xff]
        %v3976 = vld [vmem:[#allocation3 + $0x121] sm:$0xff]
        %v3977 = vld [vmem:[#allocation3 + $0x129] sm:$0xff]
        %v3978 = vld [vmem:[#allocation3 + $0x139] sm:$0xff]
        %v3979 = vld [vmem:[#allocation3 + $0x141] sm:$0xff]
        %v3980 = vld [vmem:[#allocation3 + $0x151] sm:$0xff]
        %v3981 = vld [vmem:[#allocation3 + $0x159] sm:$0xff]
        %v3982 = vld [vmem:[#allocation3 + $0x169] sm:$0xff]
        %v3983 = vld [vmem:[#allocation3 + $0x171] sm:$0xff]
        %s3984 = scalar_lea.vmem %s3, 8
        %v3985 = vld [vmem:[%s3984] sm:$0xff]
        %v3987 = vsel %vm279, %v3985, 0
        %v3990 = vsel %vm279, %v3952, 0
        %v3993 = vsel %vm279, %v3953, 0
        %v3996 = vsel %vm279, %v3954, 0
        %v3999 = vsel %vm279, %v3955, 0
        %v4002 = vsel %vm279, %v3956, 0
        %v4005 = vsel %vm279, %v3957, 0
        %v4008 = vsel %vm279, %v3958, 0
        %v4011 = vsel %vm279, %v3959, 0
        %v4014 = vsel %vm279, %v3960, 0
        %v4017 = vsel %vm279, %v3961, 0
        %v4020 = vsel %vm279, %v3962, 0
        %v4023 = vsel %vm279, %v3963, 0
        %v4026 = vsel %vm279, %v3964, 0
        %v4029 = vsel %vm279, %v3965, 0
        %v4032 = vsel %vm279, %v3966, 0
        %v4035 = vsel %vm279, %v3967, 0
        %v4038 = vsel %vm279, %v3968, 0
        %v4041 = vsel %vm279, %v3969, 0
        %v4044 = vsel %vm279, %v3970, 0
        %v4047 = vsel %vm279, %v3971, 0
        %v4050 = vsel %vm279, %v3972, 0
        %v4053 = vsel %vm279, %v3973, 0
        %v4056 = vsel %vm279, %v3974, 0
        %v4059 = vsel %vm279, %v3975, 0
        %v4062 = vsel %vm279, %v3976, 0
        %v4065 = vsel %vm279, %v3977, 0
        %v4068 = vsel %vm279, %v3978, 0
        %v4071 = vsel %vm279, %v3979, 0
        %v4074 = vsel %vm279, %v3980, 0
        %v4077 = vsel %vm279, %v3981, 0
        %v4080 = vsel %vm279, %v3982, 0
        %v4083 = vsel %vm279, %v3983, 0
        %4085 = vmatprep.subr.mxu0 0.0
        %4086 = vmatpush1.xpose.msra.mxu0 %v4035
        %4087 = vmatprep.subr.mxu0 0.0
        %4088 = vmatpush1.xpose.msra.mxu0 %v4032
        %4089 = vmatprep.subr.mxu0 0.0
        %4090 = vmatpush1.xpose.msra.mxu0 %v4029
        %4091 = vmatprep.subr.mxu0 0.0
        %4092 = vmatpush1.xpose.msra.mxu0 %v4026
        %4093 = vmatprep.subr.mxu0 0.0
        %4094 = vmatpush1.xpose.msra.mxu0 %v4023
        %4095 = vmatprep.subr.mxu0 0.0
        %4096 = vmatpush1.xpose.msra.mxu0 %v4020
        %4097 = vmatprep.subr.mxu0 0.0
        %4098 = vmatpush1.xpose.msra.mxu0 %v4017
        %4099 = vmatprep.subr.mxu0 0.0
        %4100 = vmatpush1.xpose.msra.mxu0 %v4014
        %4101 = vmatprep.subr.mxu0 0.0
        %4102 = vmatpush1.xpose.msra.mxu0 %v4011
        %4103 = vmatprep.subr.mxu0 0.0
        %4104 = vmatpush1.xpose.msra.mxu0 %v4008
        %4105 = vmatprep.subr.mxu0 0.0
        %4106 = vmatpush1.xpose.msra.mxu0 %v4005
        %4107 = vmatprep.subr.mxu0 0.0
        %4108 = vmatpush1.xpose.msra.mxu0 %v4002
        %4109 = vmatprep.subr.mxu0 0.0
        %4110 = vmatpush1.xpose.msra.mxu0 %v3999
        %4111 = vmatprep.subr.mxu0 0.0
        %4112 = vmatpush1.xpose.msra.mxu0 %v3996
        %4113 = vmatprep.subr.mxu0 0.0
        %4114 = vmatpush1.xpose.msra.mxu0 %v3993
        %4115 = vmatprep.subr.mxu0 0.0
        %4116 = vmatpush1.xpose.msra.mxu0 %v3990
        %4117 = vmatprep.subr.mxu0 0.0
        %4118 = vmatpush2.xpose.msra.mxu0 %v4083
        %4119 = vmatprep.subr.mxu0 0.0
        %4120 = vmatpush2.xpose.msra.mxu0 %v4080
        %4121 = vmatprep.subr.mxu0 0.0
        %4122 = vmatpush2.xpose.msra.mxu0 %v4077
        %4123 = vmatprep.subr.mxu0 0.0
        %4124 = vmatpush2.xpose.msra.mxu0 %v4074
        %4125 = vmatprep.subr.mxu0 0.0
        %4126 = vmatpush2.xpose.msra.mxu0 %v4071
        %4127 = vmatprep.subr.mxu0 0.0
        %4128 = vmatpush2.xpose.msra.mxu0 %v4068
        %4129 = vmatprep.subr.mxu0 0.0
        %4130 = vmatpush2.xpose.msra.mxu0 %v4065
        %4131 = vmatprep.subr.mxu0 0.0
        %4132 = vmatpush2.xpose.msra.mxu0 %v4062
        %4133 = vmatprep.subr.mxu0 0.0
        %4134 = vmatpush2.xpose.msra.mxu0 %v4059
        %4135 = vmatprep.subr.mxu0 0.0
        %4136 = vmatpush2.xpose.msra.mxu0 %v4056
        %4137 = vmatprep.subr.mxu0 0.0
        %4138 = vmatpush2.xpose.msra.mxu0 %v4053
        %4139 = vmatprep.subr.mxu0 0.0
        %4140 = vmatpush2.xpose.msra.mxu0 %v4050
        %4141 = vmatprep.subr.mxu0 0.0
        %4142 = vmatpush2.xpose.msra.mxu0 %v4047
        %4143 = vmatprep.subr.mxu0 0.0
        %4144 = vmatpush2.xpose.msra.mxu0 %v4044
        %4145 = vmatprep.subr.mxu0 0.0
        %4146 = vmatpush2.xpose.msra.mxu0 %v4041
        %4147 = vmatprep.subr.mxu0 0.0
        %4148 = vmatpush2.xpose.msra.mxu0 %v4038
        %4149 = vmatprep.mubr.f32.mxu0 0.0
        %4150 = vmatmul.mubr.f32.gmra.mxu0 %v3987
        %v4151 = vpop.f32.mrf.mxu0
        %v4152 = vadd.f32 0.0, %v4151
        %v4153 = vpop.f32.mrf.mxu0
        %v4154 = vadd.f32 0.0, %v4153
        %4155 = vdwg.mxu0
        %v4157 = vsel %vm279, %v3951, 0
        %v4160 = vsel %vm279, %v3919, 0
        %v4163 = vsel %vm279, %v3920, 0
        %v4166 = vsel %vm279, %v3921, 0
        %v4169 = vsel %vm279, %v3922, 0
        %v4172 = vsel %vm279, %v3923, 0
        %v4175 = vsel %vm279, %v3924, 0
        %v4178 = vsel %vm279, %v3925, 0
        %v4181 = vsel %vm279, %v3926, 0
        %v4184 = vsel %vm279, %v3927, 0
        %v4187 = vsel %vm279, %v3928, 0
        %v4190 = vsel %vm279, %v3929, 0
        %v4193 = vsel %vm279, %v3930, 0
        %v4196 = vsel %vm279, %v3931, 0
        %v4199 = vsel %vm279, %v3932, 0
        %v4202 = vsel %vm279, %v3933, 0
        %v4205 = vsel %vm279, %v3934, 0
        %v4208 = vsel %vm279, %v3935, 0
        %v4211 = vsel %vm279, %v3936, 0
        %v4214 = vsel %vm279, %v3937, 0
        %v4217 = vsel %vm279, %v3938, 0
        %v4220 = vsel %vm279, %v3939, 0
        %v4223 = vsel %vm279, %v3940, 0
        %v4226 = vsel %vm279, %v3941, 0
        %v4229 = vsel %vm279, %v3942, 0
        %v4232 = vsel %vm279, %v3943, 0
        %v4235 = vsel %vm279, %v3944, 0
        %v4238 = vsel %vm279, %v3945, 0
        %v4241 = vsel %vm279, %v3946, 0
        %v4244 = vsel %vm279, %v3947, 0
        %v4247 = vsel %vm279, %v3948, 0
        %v4250 = vsel %vm279, %v3949, 0
        %v4253 = vsel %vm279, %v3950, 0
        %4255 = vmatprep.subr.mxu0 0.0
        %4256 = vmatpush1.xpose.msra.mxu0 %v4205
        %4257 = vmatprep.subr.mxu0 0.0
        %4258 = vmatpush1.xpose.msra.mxu0 %v4202
        %4259 = vmatprep.subr.mxu0 0.0
        %4260 = vmatpush1.xpose.msra.mxu0 %v4199
        %4261 = vmatprep.subr.mxu0 0.0
        %4262 = vmatpush1.xpose.msra.mxu0 %v4196
        %4263 = vmatprep.subr.mxu0 0.0
        %4264 = vmatpush1.xpose.msra.mxu0 %v4193
        %4265 = vmatprep.subr.mxu0 0.0
        %4266 = vmatpush1.xpose.msra.mxu0 %v4190
        %4267 = vmatprep.subr.mxu0 0.0
        %4268 = vmatpush1.xpose.msra.mxu0 %v4187
        %4269 = vmatprep.subr.mxu0 0.0
        %4270 = vmatpush1.xpose.msra.mxu0 %v4184
        %4271 = vmatprep.subr.mxu0 0.0
        %4272 = vmatpush1.xpose.msra.mxu0 %v4181
        %4273 = vmatprep.subr.mxu0 0.0
        %4274 = vmatpush1.xpose.msra.mxu0 %v4178
        %4275 = vmatprep.subr.mxu0 0.0
        %4276 = vmatpush1.xpose.msra.mxu0 %v4175
        %4277 = vmatprep.subr.mxu0 0.0
        %4278 = vmatpush1.xpose.msra.mxu0 %v4172
        %4279 = vmatprep.subr.mxu0 0.0
        %4280 = vmatpush1.xpose.msra.mxu0 %v4169
        %4281 = vmatprep.subr.mxu0 0.0
        %4282 = vmatpush1.xpose.msra.mxu0 %v4166
        %4283 = vmatprep.subr.mxu0 0.0
        %4284 = vmatpush1.xpose.msra.mxu0 %v4163
        %4285 = vmatprep.subr.mxu0 0.0
        %4286 = vmatpush1.xpose.msra.mxu0 %v4160
        %4287 = vmatprep.subr.mxu0 0.0
        %4288 = vmatpush2.xpose.msra.mxu0 %v4253
        %4289 = vmatprep.subr.mxu0 0.0
        %4290 = vmatpush2.xpose.msra.mxu0 %v4250
        %4291 = vmatprep.subr.mxu0 0.0
        %4292 = vmatpush2.xpose.msra.mxu0 %v4247
        %4293 = vmatprep.subr.mxu0 0.0
        %4294 = vmatpush2.xpose.msra.mxu0 %v4244
        %4295 = vmatprep.subr.mxu0 0.0
        %4296 = vmatpush2.xpose.msra.mxu0 %v4241
        %4297 = vmatprep.subr.mxu0 0.0
        %4298 = vmatpush2.xpose.msra.mxu0 %v4238
        %4299 = vmatprep.subr.mxu0 0.0
        %4300 = vmatpush2.xpose.msra.mxu0 %v4235
        %4301 = vmatprep.subr.mxu0 0.0
        %4302 = vmatpush2.xpose.msra.mxu0 %v4232
        %4303 = vmatprep.subr.mxu0 0.0
        %4304 = vmatpush2.xpose.msra.mxu0 %v4229
        %4305 = vmatprep.subr.mxu0 0.0
        %4306 = vmatpush2.xpose.msra.mxu0 %v4226
        %4307 = vmatprep.subr.mxu0 0.0
        %4308 = vmatpush2.xpose.msra.mxu0 %v4223
        %4309 = vmatprep.subr.mxu0 0.0
        %4310 = vmatpush2.xpose.msra.mxu0 %v4220
        %4311 = vmatprep.subr.mxu0 0.0
        %4312 = vmatpush2.xpose.msra.mxu0 %v4217
        %4313 = vmatprep.subr.mxu0 0.0
        %4314 = vmatpush2.xpose.msra.mxu0 %v4214
        %4315 = vmatprep.subr.mxu0 0.0
        %4316 = vmatpush2.xpose.msra.mxu0 %v4211
        %4317 = vmatprep.subr.mxu0 0.0
        %4318 = vmatpush2.xpose.msra.mxu0 %v4208
        %4319 = vmatprep.mubr.f32.mxu0 0.0
        %4320 = vmatmul.mubr.f32.gmra.mxu0 %v4157
        %v4321 = vpop.f32.mrf.mxu0
        %v4322 = vadd.f32 %v4152, %v4321
        %v4323 = vpop.f32.mrf.mxu0
        %v4324 = vadd.f32 %v4154, %v4323
        %4325 = vdwg.mxu0
        %v4326 = vld [vmem:[#allocation3 + $0x2] sm:$0xff]
        %v4327 = vld [vmem:[#allocation3 + $0xa] sm:$0xff]
        %v4328 = vld [vmem:[#allocation3 + $0x1a] sm:$0xff]
        %v4329 = vld [vmem:[#allocation3 + $0x22] sm:$0xff]
        %v4330 = vld [vmem:[#allocation3 + $0x32] sm:$0xff]
        %v4331 = vld [vmem:[#allocation3 + $0x3a] sm:$0xff]
        %v4332 = vld [vmem:[#allocation3 + $0x4a] sm:$0xff]
        %v4333 = vld [vmem:[#allocation3 + $0x52] sm:$0xff]
        %v4334 = vld [vmem:[#allocation3 + $0x62] sm:$0xff]
        %v4335 = vld [vmem:[#allocation3 + $0x6a] sm:$0xff]
        %v4336 = vld [vmem:[#allocation3 + $0x7a] sm:$0xff]
        %v4337 = vld [vmem:[#allocation3 + $0x82] sm:$0xff]
        %v4338 = vld [vmem:[#allocation3 + $0x92] sm:$0xff]
        %v4339 = vld [vmem:[#allocation3 + $0x9a] sm:$0xff]
        %v4340 = vld [vmem:[#allocation3 + $0xaa] sm:$0xff]
        %v4341 = vld [vmem:[#allocation3 + $0xb2] sm:$0xff]
        %v4342 = vld [vmem:[#allocation3 + $0xc2] sm:$0xff]
        %v4343 = vld [vmem:[#allocation3 + $0xca] sm:$0xff]
        %v4344 = vld [vmem:[#allocation3 + $0xda] sm:$0xff]
        %v4345 = vld [vmem:[#allocation3 + $0xe2] sm:$0xff]
        %v4346 = vld [vmem:[#allocation3 + $0xf2] sm:$0xff]
        %v4347 = vld [vmem:[#allocation3 + $0xfa] sm:$0xff]
        %v4348 = vld [vmem:[#allocation3 + $0x10a] sm:$0xff]
        %v4349 = vld [vmem:[#allocation3 + $0x112] sm:$0xff]
        %v4350 = vld [vmem:[#allocation3 + $0x122] sm:$0xff]
        %v4351 = vld [vmem:[#allocation3 + $0x12a] sm:$0xff]
        %v4352 = vld [vmem:[#allocation3 + $0x13a] sm:$0xff]
        %v4353 = vld [vmem:[#allocation3 + $0x142] sm:$0xff]
        %v4354 = vld [vmem:[#allocation3 + $0x152] sm:$0xff]
        %v4355 = vld [vmem:[#allocation3 + $0x15a] sm:$0xff]
        %v4356 = vld [vmem:[#allocation3 + $0x16a] sm:$0xff]
        %v4357 = vld [vmem:[#allocation3 + $0x172] sm:$0xff]
        %s4358 = scalar_lea.vmem %s3, 16
        %v4359 = vld [vmem:[%s4358] sm:$0xff]
        %v4361 = vsel %vm279, %v4359, 0
        %v4364 = vsel %vm279, %v4326, 0
        %v4367 = vsel %vm279, %v4327, 0
        %v4370 = vsel %vm279, %v4328, 0
        %v4373 = vsel %vm279, %v4329, 0
        %v4376 = vsel %vm279, %v4330, 0
        %v4379 = vsel %vm279, %v4331, 0
        %v4382 = vsel %vm279, %v4332, 0
        %v4385 = vsel %vm279, %v4333, 0
        %v4388 = vsel %vm279, %v4334, 0
        %v4391 = vsel %vm279, %v4335, 0
        %v4394 = vsel %vm279, %v4336, 0
        %v4397 = vsel %vm279, %v4337, 0
        %v4400 = vsel %vm279, %v4338, 0
        %v4403 = vsel %vm279, %v4339, 0
        %v4406 = vsel %vm279, %v4340, 0
        %v4409 = vsel %vm279, %v4341, 0
        %v4412 = vsel %vm279, %v4342, 0
        %v4415 = vsel %vm279, %v4343, 0
        %v4418 = vsel %vm279, %v4344, 0
        %v4421 = vsel %vm279, %v4345, 0
        %v4424 = vsel %vm279, %v4346, 0
        %v4427 = vsel %vm279, %v4347, 0
        %v4430 = vsel %vm279, %v4348, 0
        %v4433 = vsel %vm279, %v4349, 0
        %v4436 = vsel %vm279, %v4350, 0
        %v4439 = vsel %vm279, %v4351, 0
        %v4442 = vsel %vm279, %v4352, 0
        %v4445 = vsel %vm279, %v4353, 0
        %v4448 = vsel %vm279, %v4354, 0
        %v4451 = vsel %vm279, %v4355, 0
        %v4454 = vsel %vm279, %v4356, 0
        %v4457 = vsel %vm279, %v4357, 0
        %4459 = vmatprep.subr.mxu0 0.0
        %4460 = vmatpush1.xpose.msra.mxu0 %v4409
        %4461 = vmatprep.subr.mxu0 0.0
        %4462 = vmatpush1.xpose.msra.mxu0 %v4406
        %4463 = vmatprep.subr.mxu0 0.0
        %4464 = vmatpush1.xpose.msra.mxu0 %v4403
        %4465 = vmatprep.subr.mxu0 0.0
        %4466 = vmatpush1.xpose.msra.mxu0 %v4400
        %4467 = vmatprep.subr.mxu0 0.0
        %4468 = vmatpush1.xpose.msra.mxu0 %v4397
        %4469 = vmatprep.subr.mxu0 0.0
        %4470 = vmatpush1.xpose.msra.mxu0 %v4394
        %4471 = vmatprep.subr.mxu0 0.0
        %4472 = vmatpush1.xpose.msra.mxu0 %v4391
        %4473 = vmatprep.subr.mxu0 0.0
        %4474 = vmatpush1.xpose.msra.mxu0 %v4388
        %4475 = vmatprep.subr.mxu0 0.0
        %4476 = vmatpush1.xpose.msra.mxu0 %v4385
        %4477 = vmatprep.subr.mxu0 0.0
        %4478 = vmatpush1.xpose.msra.mxu0 %v4382
        %4479 = vmatprep.subr.mxu0 0.0
        %4480 = vmatpush1.xpose.msra.mxu0 %v4379
        %4481 = vmatprep.subr.mxu0 0.0
        %4482 = vmatpush1.xpose.msra.mxu0 %v4376
        %4483 = vmatprep.subr.mxu0 0.0
        %4484 = vmatpush1.xpose.msra.mxu0 %v4373
        %4485 = vmatprep.subr.mxu0 0.0
        %4486 = vmatpush1.xpose.msra.mxu0 %v4370
        %4487 = vmatprep.subr.mxu0 0.0
        %4488 = vmatpush1.xpose.msra.mxu0 %v4367
        %4489 = vmatprep.subr.mxu0 0.0
        %4490 = vmatpush1.xpose.msra.mxu0 %v4364
        %4491 = vmatprep.subr.mxu0 0.0
        %4492 = vmatpush2.xpose.msra.mxu0 %v4457
        %4493 = vmatprep.subr.mxu0 0.0
        %4494 = vmatpush2.xpose.msra.mxu0 %v4454
        %4495 = vmatprep.subr.mxu0 0.0
        %4496 = vmatpush2.xpose.msra.mxu0 %v4451
        %4497 = vmatprep.subr.mxu0 0.0
        %4498 = vmatpush2.xpose.msra.mxu0 %v4448
        %4499 = vmatprep.subr.mxu0 0.0
        %4500 = vmatpush2.xpose.msra.mxu0 %v4445
        %4501 = vmatprep.subr.mxu0 0.0
        %4502 = vmatpush2.xpose.msra.mxu0 %v4442
        %4503 = vmatprep.subr.mxu0 0.0
        %4504 = vmatpush2.xpose.msra.mxu0 %v4439
        %4505 = vmatprep.subr.mxu0 0.0
        %4506 = vmatpush2.xpose.msra.mxu0 %v4436
        %4507 = vmatprep.subr.mxu0 0.0
        %4508 = vmatpush2.xpose.msra.mxu0 %v4433
        %4509 = vmatprep.subr.mxu0 0.0
        %4510 = vmatpush2.xpose.msra.mxu0 %v4430
        %4511 = vmatprep.subr.mxu0 0.0
        %4512 = vmatpush2.xpose.msra.mxu0 %v4427
        %4513 = vmatprep.subr.mxu0 0.0
        %4514 = vmatpush2.xpose.msra.mxu0 %v4424
        %4515 = vmatprep.subr.mxu0 0.0
        %4516 = vmatpush2.xpose.msra.mxu0 %v4421
        %4517 = vmatprep.subr.mxu0 0.0
        %4518 = vmatpush2.xpose.msra.mxu0 %v4418
        %4519 = vmatprep.subr.mxu0 0.0
        %4520 = vmatpush2.xpose.msra.mxu0 %v4415
        %4521 = vmatprep.subr.mxu0 0.0
        %4522 = vmatpush2.xpose.msra.mxu0 %v4412
        %4523 = vmatprep.mubr.f32.mxu0 0.0
        %4524 = vmatmul.mubr.f32.gmra.mxu0 %v4361
        %v4525 = vpop.f32.mrf.mxu0
        %v4526 = vadd.f32 0.0, %v4525
        %v4527 = vpop.f32.mrf.mxu0
        %v4528 = vadd.f32 0.0, %v4527
        %4529 = vdwg.mxu0
        %v4530 = vadd.f32 %v4322, %v4526
        %v4531 = vadd.f32 %v4324, %v4528
        %v4532 = vld [vmem:[%s3886] sm:$0xff]
        %v4533 = vld [vmem:[%s3886 + $0x8] sm:$0xff]
        %v4534 = vld [vmem:[%s3886 + $0x18] sm:$0xff]
        %v4535 = vld [vmem:[%s3886 + $0x20] sm:$0xff]
        %v4536 = vld [vmem:[%s3886 + $0x30] sm:$0xff]
        %v4537 = vld [vmem:[%s3886 + $0x38] sm:$0xff]
        %v4538 = vld [vmem:[%s3886 + $0x48] sm:$0xff]
        %v4539 = vld [vmem:[%s3886 + $0x50] sm:$0xff]
        %v4540 = vld [vmem:[%s3886 + $0x60] sm:$0xff]
        %v4541 = vld [vmem:[%s3886 + $0x68] sm:$0xff]
        %v4542 = vld [vmem:[%s3886 + $0x78] sm:$0xff]
        %v4543 = vld [vmem:[%s3886 + $0x80] sm:$0xff]
        %v4544 = vld [vmem:[%s3886 + $0x90] sm:$0xff]
        %v4545 = vld [vmem:[%s3886 + $0x98] sm:$0xff]
        %v4546 = vld [vmem:[%s3886 + $0xa8] sm:$0xff]
        %v4547 = vld [vmem:[%s3886 + $0xb0] sm:$0xff]
        %v4548 = vld [vmem:[%s3886 + $0xc0] sm:$0xff]
        %v4549 = vld [vmem:[%s3886 + $0xc8] sm:$0xff]
        %v4550 = vld [vmem:[%s3886 + $0xd8] sm:$0xff]
        %v4551 = vld [vmem:[%s3886 + $0xe0] sm:$0xff]
        %v4552 = vld [vmem:[%s3886 + $0xf0] sm:$0xff]
        %v4553 = vld [vmem:[%s3886 + $0xf8] sm:$0xff]
        %v4554 = vld [vmem:[%s3886 + $0x108] sm:$0xff]
        %v4555 = vld [vmem:[%s3886 + $0x110] sm:$0xff]
        %v4556 = vld [vmem:[%s3886 + $0x120] sm:$0xff]
        %v4557 = vld [vmem:[%s3886 + $0x128] sm:$0xff]
        %v4558 = vld [vmem:[%s3886 + $0x138] sm:$0xff]
        %v4559 = vld [vmem:[%s3886 + $0x140] sm:$0xff]
        %v4560 = vld [vmem:[%s3886 + $0x150] sm:$0xff]
        %v4561 = vld [vmem:[%s3886 + $0x158] sm:$0xff]
        %v4562 = vld [vmem:[%s3886 + $0x168] sm:$0xff]
        %v4563 = vld [vmem:[%s3886 + $0x170] sm:$0xff]
        %s4564 = scalar_lea.vmem %s3, 24
        %v4565 = vld [vmem:[%s4564] sm:$0xff]
        %v4567 = vsel %vm279, %v4565, 0
        %v4570 = vsel %vm279, %v4532, 0
        %v4573 = vsel %vm279, %v4533, 0
        %v4576 = vsel %vm279, %v4534, 0
        %v4579 = vsel %vm279, %v4535, 0
        %v4582 = vsel %vm279, %v4536, 0
        %v4585 = vsel %vm279, %v4537, 0
        %v4588 = vsel %vm279, %v4538, 0
        %v4591 = vsel %vm279, %v4539, 0
        %v4594 = vsel %vm279, %v4540, 0
        %v4597 = vsel %vm279, %v4541, 0
        %v4600 = vsel %vm279, %v4542, 0
        %v4603 = vsel %vm279, %v4543, 0
        %v4606 = vsel %vm279, %v4544, 0
        %v4609 = vsel %vm279, %v4545, 0
        %v4612 = vsel %vm279, %v4546, 0
        %v4615 = vsel %vm279, %v4547, 0
        %v4618 = vsel %vm279, %v4548, 0
        %v4621 = vsel %vm279, %v4549, 0
        %v4624 = vsel %vm279, %v4550, 0
        %v4627 = vsel %vm279, %v4551, 0
        %v4630 = vsel %vm279, %v4552, 0
        %v4633 = vsel %vm279, %v4553, 0
        %v4636 = vsel %vm279, %v4554, 0
        %v4639 = vsel %vm279, %v4555, 0
        %v4642 = vsel %vm279, %v4556, 0
        %v4645 = vsel %vm279, %v4557, 0
        %v4648 = vsel %vm279, %v4558, 0
        %v4651 = vsel %vm279, %v4559, 0
        %v4654 = vsel %vm279, %v4560, 0
        %v4657 = vsel %vm279, %v4561, 0
        %v4660 = vsel %vm279, %v4562, 0
        %v4663 = vsel %vm279, %v4563, 0
        %4665 = vmatprep.subr.mxu0 0.0
        %4666 = vmatpush1.xpose.msra.mxu0 %v4615
        %4667 = vmatprep.subr.mxu0 0.0
        %4668 = vmatpush1.xpose.msra.mxu0 %v4612
        %4669 = vmatprep.subr.mxu0 0.0
        %4670 = vmatpush1.xpose.msra.mxu0 %v4609
        %4671 = vmatprep.subr.mxu0 0.0
        %4672 = vmatpush1.xpose.msra.mxu0 %v4606
        %4673 = vmatprep.subr.mxu0 0.0
        %4674 = vmatpush1.xpose.msra.mxu0 %v4603
        %4675 = vmatprep.subr.mxu0 0.0
        %4676 = vmatpush1.xpose.msra.mxu0 %v4600
        %4677 = vmatprep.subr.mxu0 0.0
        %4678 = vmatpush1.xpose.msra.mxu0 %v4597
        %4679 = vmatprep.subr.mxu0 0.0
        %4680 = vmatpush1.xpose.msra.mxu0 %v4594
        %4681 = vmatprep.subr.mxu0 0.0
        %4682 = vmatpush1.xpose.msra.mxu0 %v4591
        %4683 = vmatprep.subr.mxu0 0.0
        %4684 = vmatpush1.xpose.msra.mxu0 %v4588
        %4685 = vmatprep.subr.mxu0 0.0
        %4686 = vmatpush1.xpose.msra.mxu0 %v4585
        %4687 = vmatprep.subr.mxu0 0.0
        %4688 = vmatpush1.xpose.msra.mxu0 %v4582
        %4689 = vmatprep.subr.mxu0 0.0
        %4690 = vmatpush1.xpose.msra.mxu0 %v4579
        %4691 = vmatprep.subr.mxu0 0.0
        %4692 = vmatpush1.xpose.msra.mxu0 %v4576
        %4693 = vmatprep.subr.mxu0 0.0
        %4694 = vmatpush1.xpose.msra.mxu0 %v4573
        %4695 = vmatprep.subr.mxu0 0.0
        %4696 = vmatpush1.xpose.msra.mxu0 %v4570
        %4697 = vmatprep.subr.mxu0 0.0
        %4698 = vmatpush2.xpose.msra.mxu0 %v4663
        %4699 = vmatprep.subr.mxu0 0.0
        %4700 = vmatpush2.xpose.msra.mxu0 %v4660
        %4701 = vmatprep.subr.mxu0 0.0
        %4702 = vmatpush2.xpose.msra.mxu0 %v4657
        %4703 = vmatprep.subr.mxu0 0.0
        %4704 = vmatpush2.xpose.msra.mxu0 %v4654
        %4705 = vmatprep.subr.mxu0 0.0
        %4706 = vmatpush2.xpose.msra.mxu0 %v4651
        %4707 = vmatprep.subr.mxu0 0.0
        %4708 = vmatpush2.xpose.msra.mxu0 %v4648
        %4709 = vmatprep.subr.mxu0 0.0
        %4710 = vmatpush2.xpose.msra.mxu0 %v4645
        %4711 = vmatprep.subr.mxu0 0.0
        %4712 = vmatpush2.xpose.msra.mxu0 %v4642
        %4713 = vmatprep.subr.mxu0 0.0
        %4714 = vmatpush2.xpose.msra.mxu0 %v4639
        %4715 = vmatprep.subr.mxu0 0.0
        %4716 = vmatpush2.xpose.msra.mxu0 %v4636
        %4717 = vmatprep.subr.mxu0 0.0
        %4718 = vmatpush2.xpose.msra.mxu0 %v4633
        %4719 = vmatprep.subr.mxu0 0.0
        %4720 = vmatpush2.xpose.msra.mxu0 %v4630
        %4721 = vmatprep.subr.mxu0 0.0
        %4722 = vmatpush2.xpose.msra.mxu0 %v4627
        %4723 = vmatprep.subr.mxu0 0.0
        %4724 = vmatpush2.xpose.msra.mxu0 %v4624
        %4725 = vmatprep.subr.mxu0 0.0
        %4726 = vmatpush2.xpose.msra.mxu0 %v4621
        %4727 = vmatprep.subr.mxu0 0.0
        %4728 = vmatpush2.xpose.msra.mxu0 %v4618
        %4729 = vmatprep.mubr.f32.mxu0 0.0
        %4730 = vmatmul.mubr.f32.gmra.mxu0 %v4567
        %v4731 = vpop.f32.mrf.mxu0
        %v4732 = vadd.f32 0.0, %v4731
        %v4733 = vpop.f32.mrf.mxu0
        %v4734 = vadd.f32 0.0, %v4733
        %4735 = vdwg.mxu0
        %v4736 = vadd.f32 %v4530, %v4732
        %v4737 = vadd.f32 %v4531, %v4734
        %v4738 = vld [vmem:[%s3886 + $0x1] sm:$0xff]
        %v4739 = vld [vmem:[%s3886 + $0x9] sm:$0xff]
        %v4740 = vld [vmem:[%s3886 + $0x19] sm:$0xff]
        %v4741 = vld [vmem:[%s3886 + $0x21] sm:$0xff]
        %v4742 = vld [vmem:[%s3886 + $0x31] sm:$0xff]
        %v4743 = vld [vmem:[%s3886 + $0x39] sm:$0xff]
        %v4744 = vld [vmem:[%s3886 + $0x49] sm:$0xff]
        %v4745 = vld [vmem:[%s3886 + $0x51] sm:$0xff]
        %v4746 = vld [vmem:[%s3886 + $0x61] sm:$0xff]
        %v4747 = vld [vmem:[%s3886 + $0x69] sm:$0xff]
        %v4748 = vld [vmem:[%s3886 + $0x79] sm:$0xff]
        %v4749 = vld [vmem:[%s3886 + $0x81] sm:$0xff]
        %v4750 = vld [vmem:[%s3886 + $0x91] sm:$0xff]
        %v4751 = vld [vmem:[%s3886 + $0x99] sm:$0xff]
        %v4752 = vld [vmem:[%s3886 + $0xa9] sm:$0xff]
        %v4753 = vld [vmem:[%s3886 + $0xb1] sm:$0xff]
        %v4754 = vld [vmem:[%s3886 + $0xc1] sm:$0xff]
        %v4755 = vld [vmem:[%s3886 + $0xc9] sm:$0xff]
        %v4756 = vld [vmem:[%s3886 + $0xd9] sm:$0xff]
        %v4757 = vld [vmem:[%s3886 + $0xe1] sm:$0xff]
        %v4758 = vld [vmem:[%s3886 + $0xf1] sm:$0xff]
        %v4759 = vld [vmem:[%s3886 + $0xf9] sm:$0xff]
        %v4760 = vld [vmem:[%s3886 + $0x109] sm:$0xff]
        %v4761 = vld [vmem:[%s3886 + $0x111] sm:$0xff]
        %v4762 = vld [vmem:[%s3886 + $0x121] sm:$0xff]
        %v4763 = vld [vmem:[%s3886 + $0x129] sm:$0xff]
        %v4764 = vld [vmem:[%s3886 + $0x139] sm:$0xff]
        %v4765 = vld [vmem:[%s3886 + $0x141] sm:$0xff]
        %v4766 = vld [vmem:[%s3886 + $0x151] sm:$0xff]
        %v4767 = vld [vmem:[%s3886 + $0x159] sm:$0xff]
        %v4768 = vld [vmem:[%s3886 + $0x169] sm:$0xff]
        %v4769 = vld [vmem:[%s3886 + $0x171] sm:$0xff]
        %s4770 = scalar_lea.vmem %s3, 32
        %v4771 = vld [vmem:[%s4770] sm:$0xff]
        %v4773 = vsel %vm279, %v4771, 0
        %v4776 = vsel %vm279, %v4738, 0
        %v4779 = vsel %vm279, %v4739, 0
        %v4782 = vsel %vm279, %v4740, 0
        %v4785 = vsel %vm279, %v4741, 0
        %v4788 = vsel %vm279, %v4742, 0
        %v4791 = vsel %vm279, %v4743, 0
        %v4794 = vsel %vm279, %v4744, 0
        %v4797 = vsel %vm279, %v4745, 0
        %v4800 = vsel %vm279, %v4746, 0
        %v4803 = vsel %vm279, %v4747, 0
        %v4806 = vsel %vm279, %v4748, 0
        %v4809 = vsel %vm279, %v4749, 0
        %v4812 = vsel %vm279, %v4750, 0
        %v4815 = vsel %vm279, %v4751, 0
        %v4818 = vsel %vm279, %v4752, 0
        %v4821 = vsel %vm279, %v4753, 0
        %v4824 = vsel %vm279, %v4754, 0
        %v4827 = vsel %vm279, %v4755, 0
        %v4830 = vsel %vm279, %v4756, 0
        %v4833 = vsel %vm279, %v4757, 0
        %v4836 = vsel %vm279, %v4758, 0
        %v4839 = vsel %vm279, %v4759, 0
        %v4842 = vsel %vm279, %v4760, 0
        %v4845 = vsel %vm279, %v4761, 0
        %v4848 = vsel %vm279, %v4762, 0
        %v4851 = vsel %vm279, %v4763, 0
        %v4854 = vsel %vm279, %v4764, 0
        %v4857 = vsel %vm279, %v4765, 0
        %v4860 = vsel %vm279, %v4766, 0
        %v4863 = vsel %vm279, %v4767, 0
        %v4866 = vsel %vm279, %v4768, 0
        %v4869 = vsel %vm279, %v4769, 0
        %4871 = vmatprep.subr.mxu0 0.0
        %4872 = vmatpush1.xpose.msra.mxu0 %v4821
        %4873 = vmatprep.subr.mxu0 0.0
        %4874 = vmatpush1.xpose.msra.mxu0 %v4818
        %4875 = vmatprep.subr.mxu0 0.0
        %4876 = vmatpush1.xpose.msra.mxu0 %v4815
        %4877 = vmatprep.subr.mxu0 0.0
        %4878 = vmatpush1.xpose.msra.mxu0 %v4812
        %4879 = vmatprep.subr.mxu0 0.0
        %4880 = vmatpush1.xpose.msra.mxu0 %v4809
        %4881 = vmatprep.subr.mxu0 0.0
        %4882 = vmatpush1.xpose.msra.mxu0 %v4806
        %4883 = vmatprep.subr.mxu0 0.0
        %4884 = vmatpush1.xpose.msra.mxu0 %v4803
        %4885 = vmatprep.subr.mxu0 0.0
        %4886 = vmatpush1.xpose.msra.mxu0 %v4800
        %4887 = vmatprep.subr.mxu0 0.0
        %4888 = vmatpush1.xpose.msra.mxu0 %v4797
        %4889 = vmatprep.subr.mxu0 0.0
        %4890 = vmatpush1.xpose.msra.mxu0 %v4794
        %4891 = vmatprep.subr.mxu0 0.0
        %4892 = vmatpush1.xpose.msra.mxu0 %v4791
        %4893 = vmatprep.subr.mxu0 0.0
        %4894 = vmatpush1.xpose.msra.mxu0 %v4788
        %4895 = vmatprep.subr.mxu0 0.0
        %4896 = vmatpush1.xpose.msra.mxu0 %v4785
        %4897 = vmatprep.subr.mxu0 0.0
        %4898 = vmatpush1.xpose.msra.mxu0 %v4782
        %4899 = vmatprep.subr.mxu0 0.0
        %4900 = vmatpush1.xpose.msra.mxu0 %v4779
        %4901 = vmatprep.subr.mxu0 0.0
        %4902 = vmatpush1.xpose.msra.mxu0 %v4776
        %4903 = vmatprep.subr.mxu0 0.0
        %4904 = vmatpush2.xpose.msra.mxu0 %v4869
        %4905 = vmatprep.subr.mxu0 0.0
        %4906 = vmatpush2.xpose.msra.mxu0 %v4866
        %4907 = vmatprep.subr.mxu0 0.0
        %4908 = vmatpush2.xpose.msra.mxu0 %v4863
        %4909 = vmatprep.subr.mxu0 0.0
        %4910 = vmatpush2.xpose.msra.mxu0 %v4860
        %4911 = vmatprep.subr.mxu0 0.0
        %4912 = vmatpush2.xpose.msra.mxu0 %v4857
        %4913 = vmatprep.subr.mxu0 0.0
        %4914 = vmatpush2.xpose.msra.mxu0 %v4854
        %4915 = vmatprep.subr.mxu0 0.0
        %4916 = vmatpush2.xpose.msra.mxu0 %v4851
        %4917 = vmatprep.subr.mxu0 0.0
        %4918 = vmatpush2.xpose.msra.mxu0 %v4848
        %4919 = vmatprep.subr.mxu0 0.0
        %4920 = vmatpush2.xpose.msra.mxu0 %v4845
        %4921 = vmatprep.subr.mxu0 0.0
        %4922 = vmatpush2.xpose.msra.mxu0 %v4842
        %4923 = vmatprep.subr.mxu0 0.0
        %4924 = vmatpush2.xpose.msra.mxu0 %v4839
        %4925 = vmatprep.subr.mxu0 0.0
        %4926 = vmatpush2.xpose.msra.mxu0 %v4836
        %4927 = vmatprep.subr.mxu0 0.0
        %4928 = vmatpush2.xpose.msra.mxu0 %v4833
        %4929 = vmatprep.subr.mxu0 0.0
        %4930 = vmatpush2.xpose.msra.mxu0 %v4830
        %4931 = vmatprep.subr.mxu0 0.0
        %4932 = vmatpush2.xpose.msra.mxu0 %v4827
        %4933 = vmatprep.subr.mxu0 0.0
        %4934 = vmatpush2.xpose.msra.mxu0 %v4824
        %4935 = vmatprep.mubr.f32.mxu0 0.0
        %4936 = vmatmul.mubr.f32.gmra.mxu0 %v4773
        %v4937 = vpop.f32.mrf.mxu0
        %v4938 = vadd.f32 0.0, %v4937
        %v4939 = vpop.f32.mrf.mxu0
        %v4940 = vadd.f32 0.0, %v4939
        %4941 = vdwg.mxu0
        %v4942 = vadd.f32 %v4736, %v4938
        %v4943 = vadd.f32 %v4737, %v4940
        %v4944 = vld [vmem:[%s3886 + $0x2] sm:$0xff]
        %v4945 = vld [vmem:[%s3886 + $0xa] sm:$0xff]
        %v4946 = vld [vmem:[%s3886 + $0x1a] sm:$0xff]
        %v4947 = vld [vmem:[%s3886 + $0x22] sm:$0xff]
        %v4948 = vld [vmem:[%s3886 + $0x32] sm:$0xff]
        %v4949 = vld [vmem:[%s3886 + $0x3a] sm:$0xff]
        %v4950 = vld [vmem:[%s3886 + $0x4a] sm:$0xff]
        %v4951 = vld [vmem:[%s3886 + $0x52] sm:$0xff]
        %v4952 = vld [vmem:[%s3886 + $0x62] sm:$0xff]
        %v4953 = vld [vmem:[%s3886 + $0x6a] sm:$0xff]
        %v4954 = vld [vmem:[%s3886 + $0x7a] sm:$0xff]
        %v4955 = vld [vmem:[%s3886 + $0x82] sm:$0xff]
        %v4956 = vld [vmem:[%s3886 + $0x92] sm:$0xff]
        %v4957 = vld [vmem:[%s3886 + $0x9a] sm:$0xff]
        %v4958 = vld [vmem:[%s3886 + $0xaa] sm:$0xff]
        %v4959 = vld [vmem:[%s3886 + $0xb2] sm:$0xff]
        %v4960 = vld [vmem:[%s3886 + $0xc2] sm:$0xff]
        %v4961 = vld [vmem:[%s3886 + $0xca] sm:$0xff]
        %v4962 = vld [vmem:[%s3886 + $0xda] sm:$0xff]
        %v4963 = vld [vmem:[%s3886 + $0xe2] sm:$0xff]
        %v4964 = vld [vmem:[%s3886 + $0xf2] sm:$0xff]
        %v4965 = vld [vmem:[%s3886 + $0xfa] sm:$0xff]
        %v4966 = vld [vmem:[%s3886 + $0x10a] sm:$0xff]
        %v4967 = vld [vmem:[%s3886 + $0x112] sm:$0xff]
        %v4968 = vld [vmem:[%s3886 + $0x122] sm:$0xff]
        %v4969 = vld [vmem:[%s3886 + $0x12a] sm:$0xff]
        %v4970 = vld [vmem:[%s3886 + $0x13a] sm:$0xff]
        %v4971 = vld [vmem:[%s3886 + $0x142] sm:$0xff]
        %v4972 = vld [vmem:[%s3886 + $0x152] sm:$0xff]
        %v4973 = vld [vmem:[%s3886 + $0x15a] sm:$0xff]
        %v4974 = vld [vmem:[%s3886 + $0x16a] sm:$0xff]
        %v4975 = vld [vmem:[%s3886 + $0x172] sm:$0xff]
        %s4976 = scalar_lea.vmem %s3, 40
        %v4977 = vld [vmem:[%s4976] sm:$0xff]
        %v4979 = vsel %vm279, %v4977, 0
        %v4982 = vsel %vm279, %v4944, 0
        %v4985 = vsel %vm279, %v4945, 0
        %v4988 = vsel %vm279, %v4946, 0
        %v4991 = vsel %vm279, %v4947, 0
        %v4994 = vsel %vm279, %v4948, 0
        %v4997 = vsel %vm279, %v4949, 0
        %v5000 = vsel %vm279, %v4950, 0
        %v5003 = vsel %vm279, %v4951, 0
        %v5006 = vsel %vm279, %v4952, 0
        %v5009 = vsel %vm279, %v4953, 0
        %v5012 = vsel %vm279, %v4954, 0
        %v5015 = vsel %vm279, %v4955, 0
        %v5018 = vsel %vm279, %v4956, 0
        %v5021 = vsel %vm279, %v4957, 0
        %v5024 = vsel %vm279, %v4958, 0
        %v5027 = vsel %vm279, %v4959, 0
        %v5030 = vsel %vm279, %v4960, 0
        %v5033 = vsel %vm279, %v4961, 0
        %v5036 = vsel %vm279, %v4962, 0
        %v5039 = vsel %vm279, %v4963, 0
        %v5042 = vsel %vm279, %v4964, 0
        %v5045 = vsel %vm279, %v4965, 0
        %v5048 = vsel %vm279, %v4966, 0
        %v5051 = vsel %vm279, %v4967, 0
        %v5054 = vsel %vm279, %v4968, 0
        %v5057 = vsel %vm279, %v4969, 0
        %v5060 = vsel %vm279, %v4970, 0
        %v5063 = vsel %vm279, %v4971, 0
        %v5066 = vsel %vm279, %v4972, 0
        %v5069 = vsel %vm279, %v4973, 0
        %v5072 = vsel %vm279, %v4974, 0
        %v5075 = vsel %vm279, %v4975, 0
        %5077 = vmatprep.subr.mxu0 0.0
        %5078 = vmatpush1.xpose.msra.mxu0 %v5027
        %5079 = vmatprep.subr.mxu0 0.0
        %5080 = vmatpush1.xpose.msra.mxu0 %v5024
        %5081 = vmatprep.subr.mxu0 0.0
        %5082 = vmatpush1.xpose.msra.mxu0 %v5021
        %5083 = vmatprep.subr.mxu0 0.0
        %5084 = vmatpush1.xpose.msra.mxu0 %v5018
        %5085 = vmatprep.subr.mxu0 0.0
        %5086 = vmatpush1.xpose.msra.mxu0 %v5015
        %5087 = vmatprep.subr.mxu0 0.0
        %5088 = vmatpush1.xpose.msra.mxu0 %v5012
        %5089 = vmatprep.subr.mxu0 0.0
        %5090 = vmatpush1.xpose.msra.mxu0 %v5009
        %5091 = vmatprep.subr.mxu0 0.0
        %5092 = vmatpush1.xpose.msra.mxu0 %v5006
        %5093 = vmatprep.subr.mxu0 0.0
        %5094 = vmatpush1.xpose.msra.mxu0 %v5003
        %5095 = vmatprep.subr.mxu0 0.0
        %5096 = vmatpush1.xpose.msra.mxu0 %v5000
        %5097 = vmatprep.subr.mxu0 0.0
        %5098 = vmatpush1.xpose.msra.mxu0 %v4997
        %5099 = vmatprep.subr.mxu0 0.0
        %5100 = vmatpush1.xpose.msra.mxu0 %v4994
        %5101 = vmatprep.subr.mxu0 0.0
        %5102 = vmatpush1.xpose.msra.mxu0 %v4991
        %5103 = vmatprep.subr.mxu0 0.0
        %5104 = vmatpush1.xpose.msra.mxu0 %v4988
        %5105 = vmatprep.subr.mxu0 0.0
        %5106 = vmatpush1.xpose.msra.mxu0 %v4985
        %5107 = vmatprep.subr.mxu0 0.0
        %5108 = vmatpush1.xpose.msra.mxu0 %v4982
        %5109 = vmatprep.subr.mxu0 0.0
        %5110 = vmatpush2.xpose.msra.mxu0 %v5075
        %5111 = vmatprep.subr.mxu0 0.0
        %5112 = vmatpush2.xpose.msra.mxu0 %v5072
        %5113 = vmatprep.subr.mxu0 0.0
        %5114 = vmatpush2.xpose.msra.mxu0 %v5069
        %5115 = vmatprep.subr.mxu0 0.0
        %5116 = vmatpush2.xpose.msra.mxu0 %v5066
        %5117 = vmatprep.subr.mxu0 0.0
        %5118 = vmatpush2.xpose.msra.mxu0 %v5063
        %5119 = vmatprep.subr.mxu0 0.0
        %5120 = vmatpush2.xpose.msra.mxu0 %v5060
        %5121 = vmatprep.subr.mxu0 0.0
        %5122 = vmatpush2.xpose.msra.mxu0 %v5057
        %5123 = vmatprep.subr.mxu0 0.0
        %5124 = vmatpush2.xpose.msra.mxu0 %v5054
        %5125 = vmatprep.subr.mxu0 0.0
        %5126 = vmatpush2.xpose.msra.mxu0 %v5051
        %5127 = vmatprep.subr.mxu0 0.0
        %5128 = vmatpush2.xpose.msra.mxu0 %v5048
        %5129 = vmatprep.subr.mxu0 0.0
        %5130 = vmatpush2.xpose.msra.mxu0 %v5045
        %5131 = vmatprep.subr.mxu0 0.0
        %5132 = vmatpush2.xpose.msra.mxu0 %v5042
        %5133 = vmatprep.subr.mxu0 0.0
        %5134 = vmatpush2.xpose.msra.mxu0 %v5039
        %5135 = vmatprep.subr.mxu0 0.0
        %5136 = vmatpush2.xpose.msra.mxu0 %v5036
        %5137 = vmatprep.subr.mxu0 0.0
        %5138 = vmatpush2.xpose.msra.mxu0 %v5033
        %5139 = vmatprep.subr.mxu0 0.0
        %5140 = vmatpush2.xpose.msra.mxu0 %v5030
        %5141 = vmatprep.mubr.f32.mxu0 0.0
        %5142 = vmatmul.mubr.f32.gmra.mxu0 %v4979
        %v5143 = vpop.f32.mrf.mxu0
        %v5144 = vadd.f32 0.0, %v5143
        %v5145 = vpop.f32.mrf.mxu0
        %v5146 = vadd.f32 0.0, %v5145
        %5147 = vdwg.mxu0
        %v5148 = vadd.f32 %v4942, %v5144
        %v5149 = vadd.f32 %v4943, %v5146
        %s5150 = scalar_lea.vmem [#allocation3], 48
        %v5151 = vld [vmem:[%s5150] sm:$0xff]
        %v5152 = vld [vmem:[%s5150 + $0x8] sm:$0xff]
        %v5153 = vld [vmem:[%s5150 + $0x18] sm:$0xff]
        %v5154 = vld [vmem:[%s5150 + $0x20] sm:$0xff]
        %v5155 = vld [vmem:[%s5150 + $0x30] sm:$0xff]
        %v5156 = vld [vmem:[%s5150 + $0x38] sm:$0xff]
        %v5157 = vld [vmem:[%s5150 + $0x48] sm:$0xff]
        %v5158 = vld [vmem:[%s5150 + $0x50] sm:$0xff]
        %v5159 = vld [vmem:[%s5150 + $0x60] sm:$0xff]
        %v5160 = vld [vmem:[%s5150 + $0x68] sm:$0xff]
        %v5161 = vld [vmem:[%s5150 + $0x78] sm:$0xff]
        %v5162 = vld [vmem:[%s5150 + $0x80] sm:$0xff]
        %v5163 = vld [vmem:[%s5150 + $0x90] sm:$0xff]
        %v5164 = vld [vmem:[%s5150 + $0x98] sm:$0xff]
        %v5165 = vld [vmem:[%s5150 + $0xa8] sm:$0xff]
        %v5166 = vld [vmem:[%s5150 + $0xb0] sm:$0xff]
        %v5167 = vld [vmem:[%s5150 + $0xc0] sm:$0xff]
        %v5168 = vld [vmem:[%s5150 + $0xc8] sm:$0xff]
        %v5169 = vld [vmem:[%s5150 + $0xd8] sm:$0xff]
        %v5170 = vld [vmem:[%s5150 + $0xe0] sm:$0xff]
        %v5171 = vld [vmem:[%s5150 + $0xf0] sm:$0xff]
        %v5172 = vld [vmem:[%s5150 + $0xf8] sm:$0xff]
        %v5173 = vld [vmem:[%s5150 + $0x108] sm:$0xff]
        %v5174 = vld [vmem:[%s5150 + $0x110] sm:$0xff]
        %v5175 = vld [vmem:[%s5150 + $0x120] sm:$0xff]
        %v5176 = vld [vmem:[%s5150 + $0x128] sm:$0xff]
        %v5177 = vld [vmem:[%s5150 + $0x138] sm:$0xff]
        %v5178 = vld [vmem:[%s5150 + $0x140] sm:$0xff]
        %v5179 = vld [vmem:[%s5150 + $0x150] sm:$0xff]
        %v5180 = vld [vmem:[%s5150 + $0x158] sm:$0xff]
        %v5181 = vld [vmem:[%s5150 + $0x168] sm:$0xff]
        %v5182 = vld [vmem:[%s5150 + $0x170] sm:$0xff]
        %s5183 = scalar_lea.vmem %s3, 48
        %v5184 = vld [vmem:[%s5183] sm:$0xff]
        %v5186 = vsel %vm279, %v5184, 0
        %v5189 = vsel %vm279, %v5151, 0
        %v5192 = vsel %vm279, %v5152, 0
        %v5195 = vsel %vm279, %v5153, 0
        %v5198 = vsel %vm279, %v5154, 0
        %v5201 = vsel %vm279, %v5155, 0
        %v5204 = vsel %vm279, %v5156, 0
        %v5207 = vsel %vm279, %v5157, 0
        %v5210 = vsel %vm279, %v5158, 0
        %v5213 = vsel %vm279, %v5159, 0
        %v5216 = vsel %vm279, %v5160, 0
        %v5219 = vsel %vm279, %v5161, 0
        %v5222 = vsel %vm279, %v5162, 0
        %v5225 = vsel %vm279, %v5163, 0
        %v5228 = vsel %vm279, %v5164, 0
        %v5231 = vsel %vm279, %v5165, 0
        %v5234 = vsel %vm279, %v5166, 0
        %v5237 = vsel %vm279, %v5167, 0
        %v5240 = vsel %vm279, %v5168, 0
        %v5243 = vsel %vm279, %v5169, 0
        %v5246 = vsel %vm279, %v5170, 0
        %v5249 = vsel %vm279, %v5171, 0
        %v5252 = vsel %vm279, %v5172, 0
        %v5255 = vsel %vm279, %v5173, 0
        %v5258 = vsel %vm279, %v5174, 0
        %v5261 = vsel %vm279, %v5175, 0
        %v5264 = vsel %vm279, %v5176, 0
        %v5267 = vsel %vm279, %v5177, 0
        %v5270 = vsel %vm279, %v5178, 0
        %v5273 = vsel %vm279, %v5179, 0
        %v5276 = vsel %vm279, %v5180, 0
        %v5279 = vsel %vm279, %v5181, 0
        %v5282 = vsel %vm279, %v5182, 0
        %5284 = vmatprep.subr.mxu0 0.0
        %5285 = vmatpush1.xpose.msra.mxu0 %v5234
        %5286 = vmatprep.subr.mxu0 0.0
        %5287 = vmatpush1.xpose.msra.mxu0 %v5231
        %5288 = vmatprep.subr.mxu0 0.0
        %5289 = vmatpush1.xpose.msra.mxu0 %v5228
        %5290 = vmatprep.subr.mxu0 0.0
        %5291 = vmatpush1.xpose.msra.mxu0 %v5225
        %5292 = vmatprep.subr.mxu0 0.0
        %5293 = vmatpush1.xpose.msra.mxu0 %v5222
        %5294 = vmatprep.subr.mxu0 0.0
        %5295 = vmatpush1.xpose.msra.mxu0 %v5219
        %5296 = vmatprep.subr.mxu0 0.0
        %5297 = vmatpush1.xpose.msra.mxu0 %v5216
        %5298 = vmatprep.subr.mxu0 0.0
        %5299 = vmatpush1.xpose.msra.mxu0 %v5213
        %5300 = vmatprep.subr.mxu0 0.0
        %5301 = vmatpush1.xpose.msra.mxu0 %v5210
        %5302 = vmatprep.subr.mxu0 0.0
        %5303 = vmatpush1.xpose.msra.mxu0 %v5207
        %5304 = vmatprep.subr.mxu0 0.0
        %5305 = vmatpush1.xpose.msra.mxu0 %v5204
        %5306 = vmatprep.subr.mxu0 0.0
        %5307 = vmatpush1.xpose.msra.mxu0 %v5201
        %5308 = vmatprep.subr.mxu0 0.0
        %5309 = vmatpush1.xpose.msra.mxu0 %v5198
        %5310 = vmatprep.subr.mxu0 0.0
        %5311 = vmatpush1.xpose.msra.mxu0 %v5195
        %5312 = vmatprep.subr.mxu0 0.0
        %5313 = vmatpush1.xpose.msra.mxu0 %v5192
        %5314 = vmatprep.subr.mxu0 0.0
        %5315 = vmatpush1.xpose.msra.mxu0 %v5189
        %5316 = vmatprep.subr.mxu0 0.0
        %5317 = vmatpush2.xpose.msra.mxu0 %v5282
        %5318 = vmatprep.subr.mxu0 0.0
        %5319 = vmatpush2.xpose.msra.mxu0 %v5279
        %5320 = vmatprep.subr.mxu0 0.0
        %5321 = vmatpush2.xpose.msra.mxu0 %v5276
        %5322 = vmatprep.subr.mxu0 0.0
        %5323 = vmatpush2.xpose.msra.mxu0 %v5273
        %5324 = vmatprep.subr.mxu0 0.0
        %5325 = vmatpush2.xpose.msra.mxu0 %v5270
        %5326 = vmatprep.subr.mxu0 0.0
        %5327 = vmatpush2.xpose.msra.mxu0 %v5267
        %5328 = vmatprep.subr.mxu0 0.0
        %5329 = vmatpush2.xpose.msra.mxu0 %v5264
        %5330 = vmatprep.subr.mxu0 0.0
        %5331 = vmatpush2.xpose.msra.mxu0 %v5261
        %5332 = vmatprep.subr.mxu0 0.0
        %5333 = vmatpush2.xpose.msra.mxu0 %v5258
        %5334 = vmatprep.subr.mxu0 0.0
        %5335 = vmatpush2.xpose.msra.mxu0 %v5255
        %5336 = vmatprep.subr.mxu0 0.0
        %5337 = vmatpush2.xpose.msra.mxu0 %v5252
        %5338 = vmatprep.subr.mxu0 0.0
        %5339 = vmatpush2.xpose.msra.mxu0 %v5249
        %5340 = vmatprep.subr.mxu0 0.0
        %5341 = vmatpush2.xpose.msra.mxu0 %v5246
        %5342 = vmatprep.subr.mxu0 0.0
        %5343 = vmatpush2.xpose.msra.mxu0 %v5243
        %5344 = vmatprep.subr.mxu0 0.0
        %5345 = vmatpush2.xpose.msra.mxu0 %v5240
        %5346 = vmatprep.subr.mxu0 0.0
        %5347 = vmatpush2.xpose.msra.mxu0 %v5237
        %5348 = vmatprep.mubr.f32.mxu0 0.0
        %5349 = vmatmul.mubr.f32.gmra.mxu0 %v5186
        %v5350 = vpop.f32.mrf.mxu0
        %v5351 = vadd.f32 0.0, %v5350
        %v5352 = vpop.f32.mrf.mxu0
        %v5353 = vadd.f32 0.0, %v5352
        %5354 = vdwg.mxu0
        %v5355 = vadd.f32 %v5148, %v5351
        %v5356 = vadd.f32 %v5149, %v5353
        %v5357 = vld [vmem:[%s5150 + $0x1] sm:$0xff]
        %v5358 = vld [vmem:[%s5150 + $0x9] sm:$0xff]
        %v5359 = vld [vmem:[%s5150 + $0x19] sm:$0xff]
        %v5360 = vld [vmem:[%s5150 + $0x21] sm:$0xff]
        %v5361 = vld [vmem:[%s5150 + $0x31] sm:$0xff]
        %v5362 = vld [vmem:[%s5150 + $0x39] sm:$0xff]
        %v5363 = vld [vmem:[%s5150 + $0x49] sm:$0xff]
        %v5364 = vld [vmem:[%s5150 + $0x51] sm:$0xff]
        %v5365 = vld [vmem:[%s5150 + $0x61] sm:$0xff]
        %v5366 = vld [vmem:[%s5150 + $0x69] sm:$0xff]
        %v5367 = vld [vmem:[%s5150 + $0x79] sm:$0xff]
        %v5368 = vld [vmem:[%s5150 + $0x81] sm:$0xff]
        %v5369 = vld [vmem:[%s5150 + $0x91] sm:$0xff]
        %v5370 = vld [vmem:[%s5150 + $0x99] sm:$0xff]
        %v5371 = vld [vmem:[%s5150 + $0xa9] sm:$0xff]
        %v5372 = vld [vmem:[%s5150 + $0xb1] sm:$0xff]
        %v5373 = vld [vmem:[%s5150 + $0xc1] sm:$0xff]
        %v5374 = vld [vmem:[%s5150 + $0xc9] sm:$0xff]
        %v5375 = vld [vmem:[%s5150 + $0xd9] sm:$0xff]
        %v5376 = vld [vmem:[%s5150 + $0xe1] sm:$0xff]
        %v5377 = vld [vmem:[%s5150 + $0xf1] sm:$0xff]
        %v5378 = vld [vmem:[%s5150 + $0xf9] sm:$0xff]
        %v5379 = vld [vmem:[%s5150 + $0x109] sm:$0xff]
        %v5380 = vld [vmem:[%s5150 + $0x111] sm:$0xff]
        %v5381 = vld [vmem:[%s5150 + $0x121] sm:$0xff]
        %v5382 = vld [vmem:[%s5150 + $0x129] sm:$0xff]
        %v5383 = vld [vmem:[%s5150 + $0x139] sm:$0xff]
        %v5384 = vld [vmem:[%s5150 + $0x141] sm:$0xff]
        %v5385 = vld [vmem:[%s5150 + $0x151] sm:$0xff]
        %v5386 = vld [vmem:[%s5150 + $0x159] sm:$0xff]
        %v5387 = vld [vmem:[%s5150 + $0x169] sm:$0xff]
        %v5388 = vld [vmem:[%s5150 + $0x171] sm:$0xff]
        %s5389 = scalar_lea.vmem %s3, 56
        %v5390 = vld [vmem:[%s5389] sm:$0xff]
        %v5392 = vsel %vm279, %v5390, 0
        %v5395 = vsel %vm279, %v5357, 0
        %v5398 = vsel %vm279, %v5358, 0
        %v5401 = vsel %vm279, %v5359, 0
        %v5404 = vsel %vm279, %v5360, 0
        %v5407 = vsel %vm279, %v5361, 0
        %v5410 = vsel %vm279, %v5362, 0
        %v5413 = vsel %vm279, %v5363, 0
        %v5416 = vsel %vm279, %v5364, 0
        %v5419 = vsel %vm279, %v5365, 0
        %v5422 = vsel %vm279, %v5366, 0
        %v5425 = vsel %vm279, %v5367, 0
        %v5428 = vsel %vm279, %v5368, 0
        %v5431 = vsel %vm279, %v5369, 0
        %v5434 = vsel %vm279, %v5370, 0
        %v5437 = vsel %vm279, %v5371, 0
        %v5440 = vsel %vm279, %v5372, 0
        %v5443 = vsel %vm279, %v5373, 0
        %v5446 = vsel %vm279, %v5374, 0
        %v5449 = vsel %vm279, %v5375, 0
        %v5452 = vsel %vm279, %v5376, 0
        %v5455 = vsel %vm279, %v5377, 0
        %v5458 = vsel %vm279, %v5378, 0
        %v5461 = vsel %vm279, %v5379, 0
        %v5464 = vsel %vm279, %v5380, 0
        %v5467 = vsel %vm279, %v5381, 0
        %v5470 = vsel %vm279, %v5382, 0
        %v5473 = vsel %vm279, %v5383, 0
        %v5476 = vsel %vm279, %v5384, 0
        %v5479 = vsel %vm279, %v5385, 0
        %v5482 = vsel %vm279, %v5386, 0
        %v5485 = vsel %vm279, %v5387, 0
        %v5488 = vsel %vm279, %v5388, 0
        %5490 = vmatprep.subr.mxu0 0.0
        %5491 = vmatpush1.xpose.msra.mxu0 %v5440
        %5492 = vmatprep.subr.mxu0 0.0
        %5493 = vmatpush1.xpose.msra.mxu0 %v5437
        %5494 = vmatprep.subr.mxu0 0.0
        %5495 = vmatpush1.xpose.msra.mxu0 %v5434
        %5496 = vmatprep.subr.mxu0 0.0
        %5497 = vmatpush1.xpose.msra.mxu0 %v5431
        %5498 = vmatprep.subr.mxu0 0.0
        %5499 = vmatpush1.xpose.msra.mxu0 %v5428
        %5500 = vmatprep.subr.mxu0 0.0
        %5501 = vmatpush1.xpose.msra.mxu0 %v5425
        %5502 = vmatprep.subr.mxu0 0.0
        %5503 = vmatpush1.xpose.msra.mxu0 %v5422
        %5504 = vmatprep.subr.mxu0 0.0
        %5505 = vmatpush1.xpose.msra.mxu0 %v5419
        %5506 = vmatprep.subr.mxu0 0.0
        %5507 = vmatpush1.xpose.msra.mxu0 %v5416
        %5508 = vmatprep.subr.mxu0 0.0
        %5509 = vmatpush1.xpose.msra.mxu0 %v5413
        %5510 = vmatprep.subr.mxu0 0.0
        %5511 = vmatpush1.xpose.msra.mxu0 %v5410
        %5512 = vmatprep.subr.mxu0 0.0
        %5513 = vmatpush1.xpose.msra.mxu0 %v5407
        %5514 = vmatprep.subr.mxu0 0.0
        %5515 = vmatpush1.xpose.msra.mxu0 %v5404
        %5516 = vmatprep.subr.mxu0 0.0
        %5517 = vmatpush1.xpose.msra.mxu0 %v5401
        %5518 = vmatprep.subr.mxu0 0.0
        %5519 = vmatpush1.xpose.msra.mxu0 %v5398
        %5520 = vmatprep.subr.mxu0 0.0
        %5521 = vmatpush1.xpose.msra.mxu0 %v5395
        %5522 = vmatprep.subr.mxu0 0.0
        %5523 = vmatpush2.xpose.msra.mxu0 %v5488
        %5524 = vmatprep.subr.mxu0 0.0
        %5525 = vmatpush2.xpose.msra.mxu0 %v5485
        %5526 = vmatprep.subr.mxu0 0.0
        %5527 = vmatpush2.xpose.msra.mxu0 %v5482
        %5528 = vmatprep.subr.mxu0 0.0
        %5529 = vmatpush2.xpose.msra.mxu0 %v5479
        %5530 = vmatprep.subr.mxu0 0.0
        %5531 = vmatpush2.xpose.msra.mxu0 %v5476
        %5532 = vmatprep.subr.mxu0 0.0
        %5533 = vmatpush2.xpose.msra.mxu0 %v5473
        %5534 = vmatprep.subr.mxu0 0.0
        %5535 = vmatpush2.xpose.msra.mxu0 %v5470
        %5536 = vmatprep.subr.mxu0 0.0
        %5537 = vmatpush2.xpose.msra.mxu0 %v5467
        %5538 = vmatprep.subr.mxu0 0.0
        %5539 = vmatpush2.xpose.msra.mxu0 %v5464
        %5540 = vmatprep.subr.mxu0 0.0
        %5541 = vmatpush2.xpose.msra.mxu0 %v5461
        %5542 = vmatprep.subr.mxu0 0.0
        %5543 = vmatpush2.xpose.msra.mxu0 %v5458
        %5544 = vmatprep.subr.mxu0 0.0
        %5545 = vmatpush2.xpose.msra.mxu0 %v5455
        %5546 = vmatprep.subr.mxu0 0.0
        %5547 = vmatpush2.xpose.msra.mxu0 %v5452
        %5548 = vmatprep.subr.mxu0 0.0
        %5549 = vmatpush2.xpose.msra.mxu0 %v5449
        %5550 = vmatprep.subr.mxu0 0.0
        %5551 = vmatpush2.xpose.msra.mxu0 %v5446
        %5552 = vmatprep.subr.mxu0 0.0
        %5553 = vmatpush2.xpose.msra.mxu0 %v5443
        %5554 = vmatprep.mubr.f32.mxu0 0.0
        %5555 = vmatmul.mubr.f32.gmra.mxu0 %v5392
        %v5556 = vpop.f32.mrf.mxu0
        %v5557 = vadd.f32 0.0, %v5556
        %v5558 = vpop.f32.mrf.mxu0
        %v5559 = vadd.f32 0.0, %v5558
        %5560 = vdwg.mxu0
        %v5561 = vadd.f32 %v5355, %v5557
        %v5562 = vadd.f32 %v5356, %v5559
        %v5563 = vld [vmem:[%s5150 + $0x2] sm:$0xff]
        %v5564 = vld [vmem:[%s5150 + $0xa] sm:$0xff]
        %v5565 = vld [vmem:[%s5150 + $0x1a] sm:$0xff]
        %v5566 = vld [vmem:[%s5150 + $0x22] sm:$0xff]
        %v5567 = vld [vmem:[%s5150 + $0x32] sm:$0xff]
        %v5568 = vld [vmem:[%s5150 + $0x3a] sm:$0xff]
        %v5569 = vld [vmem:[%s5150 + $0x4a] sm:$0xff]
        %v5570 = vld [vmem:[%s5150 + $0x52] sm:$0xff]
        %v5571 = vld [vmem:[%s5150 + $0x62] sm:$0xff]
        %v5572 = vld [vmem:[%s5150 + $0x6a] sm:$0xff]
        %v5573 = vld [vmem:[%s5150 + $0x7a] sm:$0xff]
        %v5574 = vld [vmem:[%s5150 + $0x82] sm:$0xff]
        %v5575 = vld [vmem:[%s5150 + $0x92] sm:$0xff]
        %v5576 = vld [vmem:[%s5150 + $0x9a] sm:$0xff]
        %v5577 = vld [vmem:[%s5150 + $0xaa] sm:$0xff]
        %v5578 = vld [vmem:[%s5150 + $0xb2] sm:$0xff]
        %v5579 = vld [vmem:[%s5150 + $0xc2] sm:$0xff]
        %v5580 = vld [vmem:[%s5150 + $0xca] sm:$0xff]
        %v5581 = vld [vmem:[%s5150 + $0xda] sm:$0xff]
        %v5582 = vld [vmem:[%s5150 + $0xe2] sm:$0xff]
        %v5583 = vld [vmem:[%s5150 + $0xf2] sm:$0xff]
        %v5584 = vld [vmem:[%s5150 + $0xfa] sm:$0xff]
        %v5585 = vld [vmem:[%s5150 + $0x10a] sm:$0xff]
        %v5586 = vld [vmem:[%s5150 + $0x112] sm:$0xff]
        %v5587 = vld [vmem:[%s5150 + $0x122] sm:$0xff]
        %v5588 = vld [vmem:[%s5150 + $0x12a] sm:$0xff]
        %v5589 = vld [vmem:[%s5150 + $0x13a] sm:$0xff]
        %v5590 = vld [vmem:[%s5150 + $0x142] sm:$0xff]
        %v5591 = vld [vmem:[%s5150 + $0x152] sm:$0xff]
        %v5592 = vld [vmem:[%s5150 + $0x15a] sm:$0xff]
        %v5593 = vld [vmem:[%s5150 + $0x16a] sm:$0xff]
        %v5594 = vld [vmem:[%s5150 + $0x172] sm:$0xff]
        %s5595 = scalar_lea.vmem %s3, 64
        %v5596 = vld [vmem:[%s5595] sm:$0xff]
        %v5598 = vsel %vm279, %v5596, 0
        %v5601 = vsel %vm279, %v5563, 0
        %v5604 = vsel %vm279, %v5564, 0
        %v5607 = vsel %vm279, %v5565, 0
        %v5610 = vsel %vm279, %v5566, 0
        %v5613 = vsel %vm279, %v5567, 0
        %v5616 = vsel %vm279, %v5568, 0
        %v5619 = vsel %vm279, %v5569, 0
        %v5622 = vsel %vm279, %v5570, 0
        %v5625 = vsel %vm279, %v5571, 0
        %v5628 = vsel %vm279, %v5572, 0
        %v5631 = vsel %vm279, %v5573, 0
        %v5634 = vsel %vm279, %v5574, 0
        %v5637 = vsel %vm279, %v5575, 0
        %v5640 = vsel %vm279, %v5576, 0
        %v5643 = vsel %vm279, %v5577, 0
        %v5646 = vsel %vm279, %v5578, 0
        %v5649 = vsel %vm279, %v5579, 0
        %v5652 = vsel %vm279, %v5580, 0
        %v5655 = vsel %vm279, %v5581, 0
        %v5658 = vsel %vm279, %v5582, 0
        %v5661 = vsel %vm279, %v5583, 0
        %v5664 = vsel %vm279, %v5584, 0
        %v5667 = vsel %vm279, %v5585, 0
        %v5670 = vsel %vm279, %v5586, 0
        %v5673 = vsel %vm279, %v5587, 0
        %v5676 = vsel %vm279, %v5588, 0
        %v5679 = vsel %vm279, %v5589, 0
        %v5682 = vsel %vm279, %v5590, 0
        %v5685 = vsel %vm279, %v5591, 0
        %v5688 = vsel %vm279, %v5592, 0
        %v5691 = vsel %vm279, %v5593, 0
        %v5694 = vsel %vm279, %v5594, 0
        %5696 = vmatprep.subr.mxu0 0.0
        %5697 = vmatpush1.xpose.msra.mxu0 %v5646
        %5698 = vmatprep.subr.mxu0 0.0
        %5699 = vmatpush1.xpose.msra.mxu0 %v5643
        %5700 = vmatprep.subr.mxu0 0.0
        %5701 = vmatpush1.xpose.msra.mxu0 %v5640
        %5702 = vmatprep.subr.mxu0 0.0
        %5703 = vmatpush1.xpose.msra.mxu0 %v5637
        %5704 = vmatprep.subr.mxu0 0.0
        %5705 = vmatpush1.xpose.msra.mxu0 %v5634
        %5706 = vmatprep.subr.mxu0 0.0
        %5707 = vmatpush1.xpose.msra.mxu0 %v5631
        %5708 = vmatprep.subr.mxu0 0.0
        %5709 = vmatpush1.xpose.msra.mxu0 %v5628
        %5710 = vmatprep.subr.mxu0 0.0
        %5711 = vmatpush1.xpose.msra.mxu0 %v5625
        %5712 = vmatprep.subr.mxu0 0.0
        %5713 = vmatpush1.xpose.msra.mxu0 %v5622
        %5714 = vmatprep.subr.mxu0 0.0
        %5715 = vmatpush1.xpose.msra.mxu0 %v5619
        %5716 = vmatprep.subr.mxu0 0.0
        %5717 = vmatpush1.xpose.msra.mxu0 %v5616
        %5718 = vmatprep.subr.mxu0 0.0
        %5719 = vmatpush1.xpose.msra.mxu0 %v5613
        %5720 = vmatprep.subr.mxu0 0.0
        %5721 = vmatpush1.xpose.msra.mxu0 %v5610
        %5722 = vmatprep.subr.mxu0 0.0
        %5723 = vmatpush1.xpose.msra.mxu0 %v5607
        %5724 = vmatprep.subr.mxu0 0.0
        %5725 = vmatpush1.xpose.msra.mxu0 %v5604
        %5726 = vmatprep.subr.mxu0 0.0
        %5727 = vmatpush1.xpose.msra.mxu0 %v5601
        %5728 = vmatprep.subr.mxu0 0.0
        %5729 = vmatpush2.xpose.msra.mxu0 %v5694
        %5730 = vmatprep.subr.mxu0 0.0
        %5731 = vmatpush2.xpose.msra.mxu0 %v5691
        %5732 = vmatprep.subr.mxu0 0.0
        %5733 = vmatpush2.xpose.msra.mxu0 %v5688
        %5734 = vmatprep.subr.mxu0 0.0
        %5735 = vmatpush2.xpose.msra.mxu0 %v5685
        %5736 = vmatprep.subr.mxu0 0.0
        %5737 = vmatpush2.xpose.msra.mxu0 %v5682
        %5738 = vmatprep.subr.mxu0 0.0
        %5739 = vmatpush2.xpose.msra.mxu0 %v5679
        %5740 = vmatprep.subr.mxu0 0.0
        %5741 = vmatpush2.xpose.msra.mxu0 %v5676
        %5742 = vmatprep.subr.mxu0 0.0
        %5743 = vmatpush2.xpose.msra.mxu0 %v5673
        %5744 = vmatprep.subr.mxu0 0.0
        %5745 = vmatpush2.xpose.msra.mxu0 %v5670
        %5746 = vmatprep.subr.mxu0 0.0
        %5747 = vmatpush2.xpose.msra.mxu0 %v5667
        %5748 = vmatprep.subr.mxu0 0.0
        %5749 = vmatpush2.xpose.msra.mxu0 %v5664
        %5750 = vmatprep.subr.mxu0 0.0
        %5751 = vmatpush2.xpose.msra.mxu0 %v5661
        %5752 = vmatprep.subr.mxu0 0.0
        %5753 = vmatpush2.xpose.msra.mxu0 %v5658
        %5754 = vmatprep.subr.mxu0 0.0
        %5755 = vmatpush2.xpose.msra.mxu0 %v5655
        %5756 = vmatprep.subr.mxu0 0.0
        %5757 = vmatpush2.xpose.msra.mxu0 %v5652
        %5758 = vmatprep.subr.mxu0 0.0
        %5759 = vmatpush2.xpose.msra.mxu0 %v5649
        %5760 = vmatprep.mubr.f32.mxu0 0.0
        %5761 = vmatmul.mubr.f32.gmra.mxu0 %v5598
        %v5762 = vpop.f32.mrf.mxu0
        %v5763 = vadd.f32 0.0, %v5762
        %v5764 = vpop.f32.mrf.mxu0
        %v5765 = vadd.f32 0.0, %v5764
        %5766 = vdwg.mxu0
        %v5767 = vadd.f32 %v5561, %v5763
        %v5768 = vadd.f32 %v5562, %v5765
        %v5769 = vld [vmem:[%s4] sm:$0xff]
        %5771 = vset.pattern.permute.xlu0 0
        %5772 = vperm.xlu0 %5771, %v5769
        %v5773 = vpop.permute.xlu0 %5772
        %v5775 = vadd.f32 %v5767, %v5773
        %v5776 = vadd.f32 %v5768, %v5773
        %v5777 = vmax.f32 %v5775, 0.0
        %v5778 = vmax.f32 %v5776, 0.0
        %5779 = vst [vmem:[%s217] sm:$0xff] %v5777
        %5780 = vst [vmem:[%s217 + $0x8] sm:$0xff] %v5778
        %s5781 = sand.u32 %s137, 1
        %s5782 = scalar_lea.sflag [#allocation5], %s5781
        %s5783 = sand.u32 %s137, 1
        %s5784 = smul.addr %s5783, 16
        %s5785 = scalar_lea.vmem [#allocation4], %s5784
        // Predicated region
        $region41: #{tpu_custom_call.1} parent=39 // pred_check
          %p5786 = pneg %p147
        $region42: #{tpu_custom_call.1} parent=39 // pred_check_branch
          %5788 = sbr.rel (%p5786) target = $region44
        $region43: #{tpu_custom_call.1} parent=39 // pred_region
          %s5790 = ssub.s32 256, 256
          %5791 = vsyncadd %s5782, %s5790
          %s5792 = smul.addr %s19, 2
          %s5793 = smul.addr %s5792, 128
          %s5794 = scalar_lea.hbm %s5, %s5793
          %s5796 = sshll.u32 %s5785, 4
          %s5797 = int_to_ptr.vmem [resolvable:$true] %s5796
          %5799 = dma.vmem_to_hbm [thread:$0]  %s5797, 256, %s5794, %s5782
        $region44: #{tpu_custom_call.1} parent=39 // pred_fallthru
          _
      $region40: #{tpu_custom_call.1} parent=5 // pred_fallthru
        _
      %p5800 = scmp.le.s32.totalorder 2, %s14
      // Predicated region
      $region45: #{tpu_custom_call.1} parent=5 // pred_check
        %p5801 = pneg %p5800
      $region46: #{tpu_custom_call.1} parent=5 // pred_check_branch
        %5803 = sbr.rel (%p5801) target = $region48
      $region47: #{tpu_custom_call.1} parent=5 // pred_region
        %s5804 = ssub.s32 %s14, 2
        // Predicated region
        $region49: #{tpu_custom_call.1} parent=47 // pred_check
          %p5805 = pneg %p153
        $region50: #{tpu_custom_call.1} parent=47 // pred_check_branch
          %5807 = sbr.rel (%p5805) target = $region52
        $region51: #{tpu_custom_call.1} parent=47 // pred_region
          %s5808 = sand.u32 %s138, 1
          %s5809 = scalar_lea.sflag [#allocation5], %s5808
          %s5810 = sand.u32 %s138, 1
          %s5811 = smul.addr %s5810, 16
          %s5812 = scalar_lea.vmem [#allocation4], %s5811
          %5813 = dma.done %s5809, 256
        $region52: #{tpu_custom_call.1} parent=47 // pred_fallthru
          _
      $region48: #{tpu_custom_call.1} parent=5 // pred_fallthru
        _
    $region6: #{tpu_custom_call.1} parent=1 // loop_footer
      %s18 = sadd.s32 1, %s14
    $region7: #{tpu_custom_call.1} parent=1 // loop_footer_branch
      %13 = sbr.rel target = $region3
    $region8: #{tpu_custom_call.1} parent=1 // loop_exit
      _
    %5814 = vsyncpa [#allocation5], 1
    %s5815 = scalar_lea.sflag [#allocation5], 1
    %5816 = vsyncpa %s5815, 1

</llo_original>
